<compile_context>
chip_gen: v7x
topology: tpu7x:2x2x1
jax: 0.10.0
libtpu: 0.0.40
codegen_flags: <defaults>
</compile_context>

<pallas_src>
import functools

import numpy as np
import jax
import jax.numpy as jnp
from jax.experimental import pallas as pl
from jax.experimental.pallas import tpu as pltpu


def _cnn_lstm_kernel(num_layers, hidden_size, batch, seq_len,
                     x_ref, wcnn_ref, bcnn_ref, *rest):
    """rest = [w_ih_T_l, w_hh_T_l, bias_l]*L + [w_fc_T_pad, b_fc_pad, out_ref].

    Shapes (already transposed / reordered / fused vs. PyTorch):
      x_ref      : (Q*P, 3D)  [x_{p-1} | x_p | x_{p+1}] time-major rows (q outer, p inner)
      wcnn_ref   : (3D, C)    conv taps concatenated along K, C = 64
      bcnn_ref   : (1, C)
      w_ih_T_l   : (D_l, 4H)  gate order (i, f, o, g)
      w_hh_T_l   : (H, 4H)
      bias_l     : (1, 4H)    b_ih + b_hh, reordered
      w_fc_T_pad : (H, 128)   zero-padded to a full lane vreg
      b_fc_pad   : (1, 128)
      out_ref    : (Q*P, 128)
    """
    H = hidden_size
    P = batch          # LSTM batch  (= Conv1d length axis)
    Q = seq_len        # LSTM steps  (= Conv1d batch axis)
    H3 = 3 * H

    n_l = 3 * num_layers
    layer_refs = rest[:n_l]
    w_fc_ref, b_fc_ref = rest[n_l], rest[n_l + 1]
    out_ref = rest[n_l + 2]

    # ---- Conv1d(D -> 64, kernel=3, padding=1) + ReLU; MaxPool1d(1) is identity ----
    # Neighbour slabs were prepared in the wrapper, so the conv is ONE matmul.
    seq0 = jnp.maximum(
        jnp.dot(x_ref[...], wcnn_ref[...], preferred_element_type=jnp.float32)
        + bcnn_ref[...],
        0.0)                                                    # (Q*P, C)

    # Load weights once into values (they stay in vregs; no per-step ref reads).
    w_ih = [layer_refs[3 * l + 0][...] for l in range(num_layers)]
    w_hh = [layer_refs[3 * l + 1][...] for l in range(num_layers)]
    bias = [layer_refs[3 * l + 2][...] for l in range(num_layers)]
    w_fc = w_fc_ref[...]
    b_fc = b_fc_ref[...]

    # Layer-0 input projection (+ bias) hoisted out of the recurrence: one matmul,
    # result kept as a value (only a handful of vregs) and statically sliced below.
    gx0 = jnp.dot(seq0, w_ih[0], preferred_element_type=jnp.float32) + bias[0]

    zeros = jnp.zeros((P, H), jnp.float32)
    h = [zeros for _ in range(num_layers)]
    c = [zeros for _ in range(num_layers)]

    def cell(g, c_prev):
        sg = jax.nn.sigmoid(g[:, :H3])                          # one EUP launch
        i_g = sg[:, :H]
        f_g = sg[:, H:2 * H]
        o_g = sg[:, 2 * H:H3]
        c_new = f_g * c_prev + i_g * jnp.tanh(g[:, H3:])
        h_new = o_g * jnp.tanh(c_new)
        return h_new, c_new

    # ---- Wave-pipelined stacked LSTM + fused FC head ----
    # At wave t, layer l runs its step q = t - l.  Layers are visited in
    # decreasing order so layer l reads h[l-1] from the previous wave (= step q).
    for t in range(Q + num_layers - 1):
        for l in range(num_layers - 1, -1, -1):
            q = t - l
            if q < 0 or q >= Q:
                continue
            if l == 0:
                g = gx0[q * P:(q + 1) * P, :]
            else:
                g = (jnp.dot(h[l - 1], w_ih[l],
                             preferred_element_type=jnp.float32) + bias[l])
            g = g + jnp.dot(h[l], w_hh[l], preferred_element_type=jnp.float32)
            h[l], c[l] = cell(g, c[l])
            if l == num_layers - 1:
                # Fused Linear head, lane-dense (128-wide) per-step store.
                y = jnp.dot(h[l], w_fc, preferred_element_type=jnp.float32) + b_fc
                out_ref[q * P:(q + 1) * P, :] = y.astype(out_ref.dtype)


def cnn_lstm_forward(x, params, hidden_size=16, num_layers=2):
    """x: (P, Q, D) exactly like the PyTorch module input (s0, s1, num_country+1)."""
    P, Q, D = x.shape
    H = hidden_size
    O = int(params["out_dim"])
    O_pad = params["w_fc_T_pad"].shape[1]
    C = params["w_cnn_cat"].shape[1]
    QP = Q * P

    # Time-major layout: row q*P + p == (timestep q, batch element p).
    x3 = jnp.transpose(x, (1, 0, 2))                           # (Q, P, D)
    # Zero-padded p-1 / p+1 neighbour slabs for the k=3, padding=1 conv over p.
    x_prev = jnp.pad(x3, ((0, 0), (1, 0), (0, 0)))[:, :P, :]
    x_next = jnp.pad(x3, ((0, 0), (0, 1), (0, 0)))[:, 1:, :]
    x_cat = jnp.concatenate([x_prev, x3, x_next], axis=-1).reshape(QP, 3 * D)

    flat = [x_cat, params["w_cnn_cat"], params["b_cnn"]]
    for l in range(num_layers):
        flat += [params[f"w_ih_T_{l}"], params[f"w_hh_T_{l}"], params[f"bias_{l}"]]
    flat += [params["w_fc_T_pad"], params["b_fc_pad"]]

    # Advisory cost estimate for the XLA scheduler.
    flops = (2 * QP * (3 * D * C + C * 4 * H + H * O_pad)
             + 2 * QP * num_layers * H * 4 * H
             + 2 * QP * (num_layers - 1) * H * 4 * H)
    transcendentals = 5 * H * QP * num_layers
    bytes_accessed = (sum(int(np.prod(a.shape)) for a in flat) + QP * O_pad) * 4

    kernel = functools.partial(_cnn_lstm_kernel, num_layers, H, P, Q)
    y2d = pl.pallas_call(
        kernel,
        out_shape=jax.ShapeDtypeStruct((QP, O_pad), x.dtype),
        # Tiny problem: whole arrays resident in VMEM, single invocation, no grid.
        # (If P ever grows, add a grid over P-blocks with
        #  dimension_semantics=("parallel",) to use v7x's second TensorCore.)
        in_specs=[pl.BlockSpec(memory_space=pltpu.MemorySpace.VMEM)] * len(flat),
        out_specs=pl.BlockSpec(memory_space=pltpu.MemorySpace.VMEM),
        cost_estimate=pl.CostEstimate(flops=int(flops),
                                      transcendentals=int(transcendentals),
                                      bytes_accessed=int(bytes_accessed)),
    )(*flat)

    # (QP, 128) -> slice real columns -> (Q, P, O) -> (P, Q, O) like the module.
    return jnp.transpose(y2d[:, :O].reshape(Q, P, O), (1, 0, 2))


# ----------------------------- parameters -----------------------------------

def init_pt_params(key, num_country, hidden_size=16, num_layers=2, cnn_channels=64):
    """PyTorch-layout parameters (uniform init, deterministic)."""
    D = num_country + 1
    H = hidden_size
    p = {}
    key, k1, k2 = jax.random.split(key, 3)
    cb = 1.0 / (D * 3) ** 0.5
    p["w_cnn"] = jax.random.uniform(k1, (cnn_channels, D, 3), jnp.float32, -cb, cb)
    p["b_cnn"] = jax.random.uniform(k2, (cnn_channels,), jnp.float32, -cb, cb)
    hb = 1.0 / H ** 0.5
    for l in range(num_layers):
        in_dim = cnn_channels if l == 0 else H
        key, k1, k2, k3, k4 = jax.random.split(key, 5)
        p[f"w_ih_{l}"] = jax.random.uniform(k1, (4 * H, in_dim), jnp.float32, -hb, hb)
        p[f"w_hh_{l}"] = jax.random.uniform(k2, (4 * H, H), jnp.float32, -hb, hb)
        p[f"b_ih_{l}"] = jax.random.uniform(k3, (4 * H,), jnp.float32, -hb, hb)
        p[f"b_hh_{l}"] = jax.random.uniform(k4, (4 * H,), jnp.float32, -hb, hb)
    key, k1, k2 = jax.random.split(key, 3)
    p["w_fc"] = jax.random.uniform(k1, (D, H), jnp.float32, -hb, hb)
    p["b_fc"] = jax.random.uniform(k2, (D,), jnp.float32, -hb, hb)
    return p


def prepare_params(pt, hidden_size=16, num_layers=2, lane_pad=128):
    """PyTorch layout -> kernel layout: conv taps fused to one (3D, C) weight,
    LSTM weights transposed + gate reorder (i,f,g,o)->(i,f,o,g) + bias fold,
    FC head zero-padded to 128 lane-dense output columns."""
    H = hidden_size
    perm = np.concatenate([np.arange(0, 2 * H),
                           np.arange(3 * H, 4 * H),
                           np.arange(2 * H, 3 * H)])
    kp = {}
    kp["w_cnn_cat"] = jnp.concatenate(
        [jnp.transpose(pt["w_cnn"][:, :, k]) for k in range(3)], axis=0)   # (3D, C)
    kp["b_cnn"] = pt["b_cnn"][None, :]                                     # (1, C)
    for l in range(num_layers):
        kp[f"w_ih_T_{l}"] = jnp.transpose(pt[f"w_ih_{l}"])[:, perm]        # (D_l, 4H)
        kp[f"w_hh_T_{l}"] = jnp.transpose(pt[f"w_hh_{l}"])[:, perm]        # (H, 4H)
        kp[f"bias_{l}"] = (pt[f"b_ih_{l}"] + pt[f"b_hh_{l}"])[perm][None, :]
    O = pt["w_fc"].shape[0]
    w_fc_T = jnp.transpose(pt["w_fc"])                                     # (H, O)
    kp["w_fc_T_pad"] = jnp.pad(w_fc_T, ((0, 0), (0, lane_pad - O)))        # (H, 128)
    kp["b_fc_pad"] = jnp.pad(pt["b_fc"], (0, lane_pad - O))[None, :]       # (1, 128)
    kp["out_dim"] = O
    return kp


# ----------------------------- pure-JAX reference ----------------------------

def reference_forward(x, pt, hidden_size=16, num_layers=2):
    """Mirrors the PyTorch CNNLSTMModel.forward exactly (PyTorch-layout weights)."""
    P, Q, D = x.shape
    H = hidden_size
    hp = jax.lax.Precision.HIGHEST

    xc = jnp.transpose(x, (1, 2, 0))                       # permute(1,2,0): (Q, D, P)
    xpad = jnp.pad(xc, ((0, 0), (0, 0), (1, 1)))
    conv = pt["b_cnn"][None, :, None]
    for k in range(3):
        conv = conv + jnp.einsum("ncp,oc->nop", xpad[:, :, k:k + P],
                                 pt["w_cnn"][:, :, k], precision=hp)
    conv = jnp.maximum(conv, 0.0)                          # ReLU; MaxPool1d(1) = id

    seq = jnp.transpose(conv, (2, 0, 1))                   # permute(2,0,1): (P, Q, 64)
    for l in range(num_layers):
        w_ih, w_hh = pt[f"w_ih_{l}"], pt[f"w_hh_{l}"]
        b = pt[f"b_ih_{l}"] + pt[f"b_hh_{l}"]
        h = jnp.zeros((P, H), jnp.float32)
        c = jnp.zeros((P, H), jnp.float32)
        outs = []
        for t in range(Q):
            gates = (jnp.dot(seq[:, t, :], w_ih.T, precision=hp)
                     + jnp.dot(h, w_hh.T, precision=hp) + b)
            i = jax.nn.sigmoid(gates[:, 0:H])
            f = jax.nn.sigmoid(gates[:, H:2 * H])
            g = jnp.tanh(gates[:, 2 * H:3 * H])
            o = jax.nn.sigmoid(gates[:, 3 * H:4 * H])
            c = f * c + i * g
            h = o * jnp.tanh(c)
            outs.append(h)
        seq = jnp.stack(outs, axis=1)                      # (P, Q, H)

    return jnp.einsum("pqh,oh->pqo", seq, pt["w_fc"], precision=hp) + pt["b_fc"]


if __name__ == "__main__":
    # Small shapes consistent with the module: num_country=3 -> feature dim 4.
    num_country = 3
    hidden_size = 16
    num_layers = 2
    P, Q = 8, 8          # P: conv length / LSTM batch ; Q: conv batch / LSTM seq

    key = jax.random.PRNGKey(0)
    key, xk, pk = jax.random.split(key, 3)
    x = jax.random.normal(xk, (P, Q, num_country + 1), jnp.float32)

    pt_params = init_pt_params(pk, num_country, hidden_size, num_layers)
    k_params = prepare_params(pt_params, hidden_size, num_layers)

    out = cnn_lstm_forward(x, k_params, hidden_size, num_layers)
    out = jax.block_until_ready(out)

    ref = reference_forward(x, pt_params, hidden_size, num_layers)
    assert out.shape == (P, Q, num_country + 1), out.shape
    max_err = float(jnp.max(jnp.abs(out - ref)))
    assert max_err < 1e-4, max_err
    print("KERNEL_OK")
</pallas_src>

<mosaic_0001>
module attributes {stable_mosaic.version = 11 : i64} {
  func.func @_cnn_lstm_kernel(%arg0: memref<64x12xf32, #tpu.memory_space<vmem>>, %arg1: memref<12x64xf32, #tpu.memory_space<vmem>>, %arg2: memref<1x64xf32, #tpu.memory_space<vmem>>, %arg3: memref<64x64xf32, #tpu.memory_space<vmem>>, %arg4: memref<16x64xf32, #tpu.memory_space<vmem>>, %arg5: memref<1x64xf32, #tpu.memory_space<vmem>>, %arg6: memref<16x64xf32, #tpu.memory_space<vmem>>, %arg7: memref<16x64xf32, #tpu.memory_space<vmem>>, %arg8: memref<1x64xf32, #tpu.memory_space<vmem>>, %arg9: memref<16x128xf32, #tpu.memory_space<vmem>>, %arg10: memref<1x128xf32, #tpu.memory_space<vmem>>, %arg11: memref<64x128xf32, #tpu.memory_space<vmem>>) attributes {dimension_semantics = [], scalar_prefetch = 0 : i64, scratch_operands = 0 : i64, tpu.core_type = #tpu.core_type<tc>} {
    %c0 = arith.constant 0 : index
    %c0_0 = arith.constant 0 : index
    %0 = vector.load %arg0[%c0, %c0_0] : memref<64x12xf32, #tpu.memory_space<vmem>>, vector<64x12xf32>
    %c0_1 = arith.constant 0 : index
    %c0_2 = arith.constant 0 : index
    %1 = vector.load %arg1[%c0_1, %c0_2] : memref<12x64xf32, #tpu.memory_space<vmem>>, vector<12x64xf32>
    %cst = arith.constant dense<0.000000e+00> : vector<64x64xf32>
    %2 = tpu.matmul %0, %1, %cst {dimension_numbers = #tpu.dot_dimension_numbers<[1], [0], [0], [1], [0, 0, 1, 1], [], []>} : vector<64x12xf32>, vector<12x64xf32>, vector<64x64xf32> -> vector<64x64xf32>
    %c0_3 = arith.constant 0 : index
    %c0_4 = arith.constant 0 : index
    %3 = vector.load %arg2[%c0_3, %c0_4] : memref<1x64xf32, #tpu.memory_space<vmem>>, vector<1x64xf32>
    %4 = vector.broadcast %3 : vector<1x64xf32> to vector<64x64xf32>
    %5 = arith.addf %2, %4 : vector<64x64xf32>
    %cst_5 = arith.constant 0.000000e+00 : f32
    %6 = vector.broadcast %cst_5 : f32 to vector<64x64xf32>
    %7 = arith.maximumf %5, %6 : vector<64x64xf32>
    %c0_6 = arith.constant 0 : index
    %c0_7 = arith.constant 0 : index
    %8 = vector.load %arg3[%c0_6, %c0_7] : memref<64x64xf32, #tpu.memory_space<vmem>>, vector<64x64xf32>
    %c0_8 = arith.constant 0 : index
    %c0_9 = arith.constant 0 : index
    %9 = vector.load %arg6[%c0_8, %c0_9] : memref<16x64xf32, #tpu.memory_space<vmem>>, vector<16x64xf32>
    %c0_10 = arith.constant 0 : index
    %c0_11 = arith.constant 0 : index
    %10 = vector.load %arg4[%c0_10, %c0_11] : memref<16x64xf32, #tpu.memory_space<vmem>>, vector<16x64xf32>
    %c0_12 = arith.constant 0 : index
    %c0_13 = arith.constant 0 : index
    %11 = vector.load %arg7[%c0_12, %c0_13] : memref<16x64xf32, #tpu.memory_space<vmem>>, vector<16x64xf32>
    %c0_14 = arith.constant 0 : index
    %c0_15 = arith.constant 0 : index
    %12 = vector.load %arg5[%c0_14, %c0_15] : memref<1x64xf32, #tpu.memory_space<vmem>>, vector<1x64xf32>
    %c0_16 = arith.constant 0 : index
    %c0_17 = arith.constant 0 : index
    %13 = vector.load %arg8[%c0_16, %c0_17] : memref<1x64xf32, #tpu.memory_space<vmem>>, vector<1x64xf32>
    %c0_18 = arith.constant 0 : index
    %c0_19 = arith.constant 0 : index
    %14 = vector.load %arg9[%c0_18, %c0_19] : memref<16x128xf32, #tpu.memory_space<vmem>>, vector<16x128xf32>
    %c0_20 = arith.constant 0 : index
    %c0_21 = arith.constant 0 : index
    %15 = vector.load %arg10[%c0_20, %c0_21] : memref<1x128xf32, #tpu.memory_space<vmem>>, vector<1x128xf32>
    %cst_22 = arith.constant dense<0.000000e+00> : vector<64x64xf32>
    %16 = tpu.matmul %7, %8, %cst_22 {dimension_numbers = #tpu.dot_dimension_numbers<[1], [0], [0], [1], [0, 0, 1, 1], [], []>} : vector<64x64xf32>, vector<64x64xf32>, vector<64x64xf32> -> vector<64x64xf32>
    %17 = vector.broadcast %12 : vector<1x64xf32> to vector<64x64xf32>
    %18 = arith.addf %16, %17 : vector<64x64xf32>
    %cst_23 = arith.constant 0.000000e+00 : f32
    %19 = vector.broadcast %cst_23 : f32 to vector<8x16xf32>
    %20 = vector.extract_strided_slice %18 {offsets = [0, 0], sizes = [8, 64], strides = [1, 1]} : vector<64x64xf32> to vector<8x64xf32>
    %cst_24 = arith.constant dense<0.000000e+00> : vector<8x64xf32>
    %21 = tpu.matmul %19, %10, %cst_24 {dimension_numbers = #tpu.dot_dimension_numbers<[1], [0], [0], [1], [0, 0, 1, 1], [], []>} : vector<8x16xf32>, vector<16x64xf32>, vector<8x64xf32> -> vector<8x64xf32>
    %22 = arith.addf %20, %21 : vector<8x64xf32>
    %23 = vector.extract_strided_slice %22 {offsets = [0, 0], sizes = [8, 48], strides = [1, 1]} : vector<8x64xf32> to vector<8x48xf32>
    %24 = arith.negf %23 : vector<8x48xf32>
    %25 = math.exp %24 : vector<8x48xf32>
    %cst_25 = arith.constant 1.000000e+00 : f32
    %26 = vector.broadcast %cst_25 : f32 to vector<8x48xf32>
    %27 = arith.addf %26, %25 : vector<8x48xf32>
    %28 = arith.divf %26, %27 : vector<8x48xf32>
    %29 = vector.extract_strided_slice %28 {offsets = [0, 0], sizes = [8, 16], strides = [1, 1]} : vector<8x48xf32> to vector<8x16xf32>
    %30 = vector.extract_strided_slice %28 {offsets = [0, 16], sizes = [8, 16], strides = [1, 1]} : vector<8x48xf32> to vector<8x16xf32>
    %31 = vector.extract_strided_slice %28 {offsets = [0, 32], sizes = [8, 16], strides = [1, 1]} : vector<8x48xf32> to vector<8x16xf32>
    %32 = arith.mulf %30, %19 : vector<8x16xf32>
    %33 = vector.extract_strided_slice %22 {offsets = [0, 48], sizes = [8, 16], strides = [1, 1]} : vector<8x64xf32> to vector<8x16xf32>
    %34 = math.tanh %33 : vector<8x16xf32>
    %35 = arith.mulf %29, %34 : vector<8x16xf32>
    %36 = arith.addf %32, %35 : vector<8x16xf32>
    %37 = math.tanh %36 : vector<8x16xf32>
    %38 = arith.mulf %31, %37 : vector<8x16xf32>
    %cst_26 = arith.constant dense<0.000000e+00> : vector<8x64xf32>
    %39 = tpu.matmul %38, %9, %cst_26 {dimension_numbers = #tpu.dot_dimension_numbers<[1], [0], [0], [1], [0, 0, 1, 1], [], []>} : vector<8x16xf32>, vector<16x64xf32>, vector<8x64xf32> -> vector<8x64xf32>
    %40 = vector.broadcast %13 : vector<1x64xf32> to vector<8x64xf32>
    %41 = arith.addf %39, %40 : vector<8x64xf32>
    %cst_27 = arith.constant dense<0.000000e+00> : vector<8x64xf32>
    %42 = tpu.matmul %19, %11, %cst_27 {dimension_numbers = #tpu.dot_dimension_numbers<[1], [0], [0], [1], [0, 0, 1, 1], [], []>} : vector<8x16xf32>, vector<16x64xf32>, vector<8x64xf32> -> vector<8x64xf32>
    %43 = arith.addf %41, %42 : vector<8x64xf32>
    %44 = vector.extract_strided_slice %43 {offsets = [0, 0], sizes = [8, 48], strides = [1, 1]} : vector<8x64xf32> to vector<8x48xf32>
    %45 = arith.negf %44 : vector<8x48xf32>
    %46 = math.exp %45 : vector<8x48xf32>
    %cst_28 = arith.constant 1.000000e+00 : f32
    %47 = vector.broadcast %cst_28 : f32 to vector<8x48xf32>
    %48 = arith.addf %47, %46 : vector<8x48xf32>
    %49 = arith.divf %47, %48 : vector<8x48xf32>
    %50 = vector.extract_strided_slice %49 {offsets = [0, 0], sizes = [8, 16], strides = [1, 1]} : vector<8x48xf32> to vector<8x16xf32>
    %51 = vector.extract_strided_slice %49 {offsets = [0, 16], sizes = [8, 16], strides = [1, 1]} : vector<8x48xf32> to vector<8x16xf32>
    %52 = vector.extract_strided_slice %49 {offsets = [0, 32], sizes = [8, 16], strides = [1, 1]} : vector<8x48xf32> to vector<8x16xf32>
    %53 = arith.mulf %51, %19 : vector<8x16xf32>
    %54 = vector.extract_strided_slice %43 {offsets = [0, 48], sizes = [8, 16], strides = [1, 1]} : vector<8x64xf32> to vector<8x16xf32>
    %55 = math.tanh %54 : vector<8x16xf32>
    %56 = arith.mulf %50, %55 : vector<8x16xf32>
    %57 = arith.addf %53, %56 : vector<8x16xf32>
    %58 = math.tanh %57 : vector<8x16xf32>
    %59 = arith.mulf %52, %58 : vector<8x16xf32>
    %cst_29 = arith.constant dense<0.000000e+00> : vector<8x128xf32>
    %60 = tpu.matmul %59, %14, %cst_29 {dimension_numbers = #tpu.dot_dimension_numbers<[1], [0], [0], [1], [0, 0, 1, 1], [], []>} : vector<8x16xf32>, vector<16x128xf32>, vector<8x128xf32> -> vector<8x128xf32>
    %61 = vector.broadcast %15 : vector<1x128xf32> to vector<8x128xf32>
    %62 = arith.addf %60, %61 : vector<8x128xf32>
    %c0_30 = arith.constant 0 : index
    %c0_31 = arith.constant 0 : index
    %63 = vector.load %arg11[%c0_30, %c0_31] : memref<64x128xf32, #tpu.memory_space<vmem>>, vector<8x128xf32>
    tpu.vector_store %arg11[%c0_30, %c0_31], %62 {strides = array<i32>} : memref<64x128xf32, #tpu.memory_space<vmem>>, vector<8x128xf32>,
    %64 = vector.extract_strided_slice %18 {offsets = [8, 0], sizes = [8, 64], strides = [1, 1]} : vector<64x64xf32> to vector<8x64xf32>
    %cst_32 = arith.constant dense<0.000000e+00> : vector<8x64xf32>
    %65 = tpu.matmul %38, %10, %cst_32 {dimension_numbers = #tpu.dot_dimension_numbers<[1], [0], [0], [1], [0, 0, 1, 1], [], []>} : vector<8x16xf32>, vector<16x64xf32>, vector<8x64xf32> -> vector<8x64xf32>
    %66 = arith.addf %64, %65 : vector<8x64xf32>
    %67 = vector.extract_strided_slice %66 {offsets = [0, 0], sizes = [8, 48], strides = [1, 1]} : vector<8x64xf32> to vector<8x48xf32>
    %68 = arith.negf %67 : vector<8x48xf32>
    %69 = math.exp %68 : vector<8x48xf32>
    %cst_33 = arith.constant 1.000000e+00 : f32
    %70 = vector.broadcast %cst_33 : f32 to vector<8x48xf32>
    %71 = arith.addf %70, %69 : vector<8x48xf32>
    %72 = arith.divf %70, %71 : vector<8x48xf32>
    %73 = vector.extract_strided_slice %72 {offsets = [0, 0], sizes = [8, 16], strides = [1, 1]} : vector<8x48xf32> to vector<8x16xf32>
    %74 = vector.extract_strided_slice %72 {offsets = [0, 16], sizes = [8, 16], strides = [1, 1]} : vector<8x48xf32> to vector<8x16xf32>
    %75 = vector.extract_strided_slice %72 {offsets = [0, 32], sizes = [8, 16], strides = [1, 1]} : vector<8x48xf32> to vector<8x16xf32>
    %76 = arith.mulf %74, %36 : vector<8x16xf32>
    %77 = vector.extract_strided_slice %66 {offsets = [0, 48], sizes = [8, 16], strides = [1, 1]} : vector<8x64xf32> to vector<8x16xf32>
    %78 = math.tanh %77 : vector<8x16xf32>
    %79 = arith.mulf %73, %78 : vector<8x16xf32>
    %80 = arith.addf %76, %79 : vector<8x16xf32>
    %81 = math.tanh %80 : vector<8x16xf32>
    %82 = arith.mulf %75, %81 : vector<8x16xf32>
    %cst_34 = arith.constant dense<0.000000e+00> : vector<8x64xf32>
    %83 = tpu.matmul %82, %9, %cst_34 {dimension_numbers = #tpu.dot_dimension_numbers<[1], [0], [0], [1], [0, 0, 1, 1], [], []>} : vector<8x16xf32>, vector<16x64xf32>, vector<8x64xf32> -> vector<8x64xf32>
    %84 = vector.broadcast %13 : vector<1x64xf32> to vector<8x64xf32>
    %85 = arith.addf %83, %84 : vector<8x64xf32>
    %cst_35 = arith.constant dense<0.000000e+00> : vector<8x64xf32>
    %86 = tpu.matmul %59, %11, %cst_35 {dimension_numbers = #tpu.dot_dimension_numbers<[1], [0], [0], [1], [0, 0, 1, 1], [], []>} : vector<8x16xf32>, vector<16x64xf32>, vector<8x64xf32> -> vector<8x64xf32>
    %87 = arith.addf %85, %86 : vector<8x64xf32>
    %88 = vector.extract_strided_slice %87 {offsets = [0, 0], sizes = [8, 48], strides = [1, 1]} : vector<8x64xf32> to vector<8x48xf32>
    %89 = arith.negf %88 : vector<8x48xf32>
    %90 = math.exp %89 : vector<8x48xf32>
    %cst_36 = arith.constant 1.000000e+00 : f32
    %91 = vector.broadcast %cst_36 : f32 to vector<8x48xf32>
    %92 = arith.addf %91, %90 : vector<8x48xf32>
    %93 = arith.divf %91, %92 : vector<8x48xf32>
    %94 = vector.extract_strided_slice %93 {offsets = [0, 0], sizes = [8, 16], strides = [1, 1]} : vector<8x48xf32> to vector<8x16xf32>
    %95 = vector.extract_strided_slice %93 {offsets = [0, 16], sizes = [8, 16], strides = [1, 1]} : vector<8x48xf32> to vector<8x16xf32>
    %96 = vector.extract_strided_slice %93 {offsets = [0, 32], sizes = [8, 16], strides = [1, 1]} : vector<8x48xf32> to vector<8x16xf32>
    %97 = arith.mulf %95, %57 : vector<8x16xf32>
    %98 = vector.extract_strided_slice %87 {offsets = [0, 48], sizes = [8, 16], strides = [1, 1]} : vector<8x64xf32> to vector<8x16xf32>
    %99 = math.tanh %98 : vector<8x16xf32>
    %100 = arith.mulf %94, %99 : vector<8x16xf32>
    %101 = arith.addf %97, %100 : vector<8x16xf32>
    %102 = math.tanh %101 : vector<8x16xf32>
    %103 = arith.mulf %96, %102 : vector<8x16xf32>
    %cst_37 = arith.constant dense<0.000000e+00> : vector<8x128xf32>
    %104 = tpu.matmul %103, %14, %cst_37 {dimension_numbers = #tpu.dot_dimension_numbers<[1], [0], [0], [1], [0, 0, 1, 1], [], []>} : vector<8x16xf32>, vector<16x128xf32>, vector<8x128xf32> -> vector<8x128xf32>
    %105 = vector.broadcast %15 : vector<1x128xf32> to vector<8x128xf32>
    %106 = arith.addf %104, %105 : vector<8x128xf32>
    %c8 = arith.constant 8 : index
    %c0_38 = arith.constant 0 : index
    %107 = vector.load %arg11[%c8, %c0_38] : memref<64x128xf32, #tpu.memory_space<vmem>>, vector<8x128xf32>
    tpu.vector_store %arg11[%c8, %c0_38], %106 {strides = array<i32>} : memref<64x128xf32, #tpu.memory_space<vmem>>, vector<8x128xf32>,
    %108 = vector.extract_strided_slice %18 {offsets = [16, 0], sizes = [8, 64], strides = [1, 1]} : vector<64x64xf32> to vector<8x64xf32>
    %cst_39 = arith.constant dense<0.000000e+00> : vector<8x64xf32>
    %109 = tpu.matmul %82, %10, %cst_39 {dimension_numbers = #tpu.dot_dimension_numbers<[1], [0], [0], [1], [0, 0, 1, 1], [], []>} : vector<8x16xf32>, vector<16x64xf32>, vector<8x64xf32> -> vector<8x64xf32>
    %110 = arith.addf %108, %109 : vector<8x64xf32>
    %111 = vector.extract_strided_slice %110 {offsets = [0, 0], sizes = [8, 48], strides = [1, 1]} : vector<8x64xf32> to vector<8x48xf32>
    %112 = arith.negf %111 : vector<8x48xf32>
    %113 = math.exp %112 : vector<8x48xf32>
    %cst_40 = arith.constant 1.000000e+00 : f32
    %114 = vector.broadcast %cst_40 : f32 to vector<8x48xf32>
    %115 = arith.addf %114, %113 : vector<8x48xf32>
    %116 = arith.divf %114, %115 : vector<8x48xf32>
    %117 = vector.extract_strided_slice %116 {offsets = [0, 0], sizes = [8, 16], strides = [1, 1]} : vector<8x48xf32> to vector<8x16xf32>
    %118 = vector.extract_strided_slice %116 {offsets = [0, 16], sizes = [8, 16], strides = [1, 1]} : vector<8x48xf32> to vector<8x16xf32>
    %119 = vector.extract_strided_slice %116 {offsets = [0, 32], sizes = [8, 16], strides = [1, 1]} : vector<8x48xf32> to vector<8x16xf32>
    %120 = arith.mulf %118, %80 : vector<8x16xf32>
    %121 = vector.extract_strided_slice %110 {offsets = [0, 48], sizes = [8, 16], strides = [1, 1]} : vector<8x64xf32> to vector<8x16xf32>
    %122 = math.tanh %121 : vector<8x16xf32>
    %123 = arith.mulf %117, %122 : vector<8x16xf32>
    %124 = arith.addf %120, %123 : vector<8x16xf32>
    %125 = math.tanh %124 : vector<8x16xf32>
    %126 = arith.mulf %119, %125 : vector<8x16xf32>
    %cst_41 = arith.constant dense<0.000000e+00> : vector<8x64xf32>
    %127 = tpu.matmul %126, %9, %cst_41 {dimension_numbers = #tpu.dot_dimension_numbers<[1], [0], [0], [1], [0, 0, 1, 1], [], []>} : vector<8x16xf32>, vector<16x64xf32>, vector<8x64xf32> -> vector<8x64xf32>
    %128 = vector.broadcast %13 : vector<1x64xf32> to vector<8x64xf32>
    %129 = arith.addf %127, %128 : vector<8x64xf32>
    %cst_42 = arith.constant dense<0.000000e+00> : vector<8x64xf32>
    %130 = tpu.matmul %103, %11, %cst_42 {dimension_numbers = #tpu.dot_dimension_numbers<[1], [0], [0], [1], [0, 0, 1, 1], [], []>} : vector<8x16xf32>, vector<16x64xf32>, vector<8x64xf32> -> vector<8x64xf32>
    %131 = arith.addf %129, %130 : vector<8x64xf32>
    %132 = vector.extract_strided_slice %131 {offsets = [0, 0], sizes = [8, 48], strides = [1, 1]} : vector<8x64xf32> to vector<8x48xf32>
    %133 = arith.negf %132 : vector<8x48xf32>
    %134 = math.exp %133 : vector<8x48xf32>
    %cst_43 = arith.constant 1.000000e+00 : f32
    %135 = vector.broadcast %cst_43 : f32 to vector<8x48xf32>
    %136 = arith.addf %135, %134 : vector<8x48xf32>
    %137 = arith.divf %135, %136 : vector<8x48xf32>
    %138 = vector.extract_strided_slice %137 {offsets = [0, 0], sizes = [8, 16], strides = [1, 1]} : vector<8x48xf32> to vector<8x16xf32>
    %139 = vector.extract_strided_slice %137 {offsets = [0, 16], sizes = [8, 16], strides = [1, 1]} : vector<8x48xf32> to vector<8x16xf32>
    %140 = vector.extract_strided_slice %137 {offsets = [0, 32], sizes = [8, 16], strides = [1, 1]} : vector<8x48xf32> to vector<8x16xf32>
    %141 = arith.mulf %139, %101 : vector<8x16xf32>
    %142 = vector.extract_strided_slice %131 {offsets = [0, 48], sizes = [8, 16], strides = [1, 1]} : vector<8x64xf32> to vector<8x16xf32>
    %143 = math.tanh %142 : vector<8x16xf32>
    %144 = arith.mulf %138, %143 : vector<8x16xf32>
    %145 = arith.addf %141, %144 : vector<8x16xf32>
    %146 = math.tanh %145 : vector<8x16xf32>
    %147 = arith.mulf %140, %146 : vector<8x16xf32>
    %cst_44 = arith.constant dense<0.000000e+00> : vector<8x128xf32>
    %148 = tpu.matmul %147, %14, %cst_44 {dimension_numbers = #tpu.dot_dimension_numbers<[1], [0], [0], [1], [0, 0, 1, 1], [], []>} : vector<8x16xf32>, vector<16x128xf32>, vector<8x128xf32> -> vector<8x128xf32>
    %149 = vector.broadcast %15 : vector<1x128xf32> to vector<8x128xf32>
    %150 = arith.addf %148, %149 : vector<8x128xf32>
    %c16 = arith.constant 16 : index
    %c0_45 = arith.constant 0 : index
    %151 = vector.load %arg11[%c16, %c0_45] : memref<64x128xf32, #tpu.memory_space<vmem>>, vector<8x128xf32>
    tpu.vector_store %arg11[%c16, %c0_45], %150 {strides = array<i32>} : memref<64x128xf32, #tpu.memory_space<vmem>>, vector<8x128xf32>,
    %152 = vector.extract_strided_slice %18 {offsets = [24, 0], sizes = [8, 64], strides = [1, 1]} : vector<64x64xf32> to vector<8x64xf32>
    %cst_46 = arith.constant dense<0.000000e+00> : vector<8x64xf32>
    %153 = tpu.matmul %126, %10, %cst_46 {dimension_numbers = #tpu.dot_dimension_numbers<[1], [0], [0], [1], [0, 0, 1, 1], [], []>} : vector<8x16xf32>, vector<16x64xf32>, vector<8x64xf32> -> vector<8x64xf32>
    %154 = arith.addf %152, %153 : vector<8x64xf32>
    %155 = vector.extract_strided_slice %154 {offsets = [0, 0], sizes = [8, 48], strides = [1, 1]} : vector<8x64xf32> to vector<8x48xf32>
    %156 = arith.negf %155 : vector<8x48xf32>
    %157 = math.exp %156 : vector<8x48xf32>
    %cst_47 = arith.constant 1.000000e+00 : f32
    %158 = vector.broadcast %cst_47 : f32 to vector<8x48xf32>
    %159 = arith.addf %158, %157 : vector<8x48xf32>
    %160 = arith.divf %158, %159 : vector<8x48xf32>
    %161 = vector.extract_strided_slice %160 {offsets = [0, 0], sizes = [8, 16], strides = [1, 1]} : vector<8x48xf32> to vector<8x16xf32>
    %162 = vector.extract_strided_slice %160 {offsets = [0, 16], sizes = [8, 16], strides = [1, 1]} : vector<8x48xf32> to vector<8x16xf32>
    %163 = vector.extract_strided_slice %160 {offsets = [0, 32], sizes = [8, 16], strides = [1, 1]} : vector<8x48xf32> to vector<8x16xf32>
    %164 = arith.mulf %162, %124 : vector<8x16xf32>
    %165 = vector.extract_strided_slice %154 {offsets = [0, 48], sizes = [8, 16], strides = [1, 1]} : vector<8x64xf32> to vector<8x16xf32>
    %166 = math.tanh %165 : vector<8x16xf32>
    %167 = arith.mulf %161, %166 : vector<8x16xf32>
    %168 = arith.addf %164, %167 : vector<8x16xf32>
    %169 = math.tanh %168 : vector<8x16xf32>
    %170 = arith.mulf %163, %169 : vector<8x16xf32>
    %cst_48 = arith.constant dense<0.000000e+00> : vector<8x64xf32>
    %171 = tpu.matmul %170, %9, %cst_48 {dimension_numbers = #tpu.dot_dimension_numbers<[1], [0], [0], [1], [0, 0, 1, 1], [], []>} : vector<8x16xf32>, vector<16x64xf32>, vector<8x64xf32> -> vector<8x64xf32>
    %172 = vector.broadcast %13 : vector<1x64xf32> to vector<8x64xf32>
    %173 = arith.addf %171, %172 : vector<8x64xf32>
    %cst_49 = arith.constant dense<0.000000e+00> : vector<8x64xf32>
    %174 = tpu.matmul %147, %11, %cst_49 {dimension_numbers = #tpu.dot_dimension_numbers<[1], [0], [0], [1], [0, 0, 1, 1], [], []>} : vector<8x16xf32>, vector<16x64xf32>, vector<8x64xf32> -> vector<8x64xf32>
    %175 = arith.addf %173, %174 : vector<8x64xf32>
    %176 = vector.extract_strided_slice %175 {offsets = [0, 0], sizes = [8, 48], strides = [1, 1]} : vector<8x64xf32> to vector<8x48xf32>
    %177 = arith.negf %176 : vector<8x48xf32>
    %178 = math.exp %177 : vector<8x48xf32>
    %cst_50 = arith.constant 1.000000e+00 : f32
    %179 = vector.broadcast %cst_50 : f32 to vector<8x48xf32>
    %180 = arith.addf %179, %178 : vector<8x48xf32>
    %181 = arith.divf %179, %180 : vector<8x48xf32>
    %182 = vector.extract_strided_slice %181 {offsets = [0, 0], sizes = [8, 16], strides = [1, 1]} : vector<8x48xf32> to vector<8x16xf32>
    %183 = vector.extract_strided_slice %181 {offsets = [0, 16], sizes = [8, 16], strides = [1, 1]} : vector<8x48xf32> to vector<8x16xf32>
    %184 = vector.extract_strided_slice %181 {offsets = [0, 32], sizes = [8, 16], strides = [1, 1]} : vector<8x48xf32> to vector<8x16xf32>
    %185 = arith.mulf %183, %145 : vector<8x16xf32>
    %186 = vector.extract_strided_slice %175 {offsets = [0, 48], sizes = [8, 16], strides = [1, 1]} : vector<8x64xf32> to vector<8x16xf32>
    %187 = math.tanh %186 : vector<8x16xf32>
    %188 = arith.mulf %182, %187 : vector<8x16xf32>
    %189 = arith.addf %185, %188 : vector<8x16xf32>
    %190 = math.tanh %189 : vector<8x16xf32>
    %191 = arith.mulf %184, %190 : vector<8x16xf32>
    %cst_51 = arith.constant dense<0.000000e+00> : vector<8x128xf32>
    %192 = tpu.matmul %191, %14, %cst_51 {dimension_numbers = #tpu.dot_dimension_numbers<[1], [0], [0], [1], [0, 0, 1, 1], [], []>} : vector<8x16xf32>, vector<16x128xf32>, vector<8x128xf32> -> vector<8x128xf32>
    %193 = vector.broadcast %15 : vector<1x128xf32> to vector<8x128xf32>
    %194 = arith.addf %192, %193 : vector<8x128xf32>
    %c24 = arith.constant 24 : index
    %c0_52 = arith.constant 0 : index
    %195 = vector.load %arg11[%c24, %c0_52] : memref<64x128xf32, #tpu.memory_space<vmem>>, vector<8x128xf32>
    tpu.vector_store %arg11[%c24, %c0_52], %194 {strides = array<i32>} : memref<64x128xf32, #tpu.memory_space<vmem>>, vector<8x128xf32>,
    %196 = vector.extract_strided_slice %18 {offsets = [32, 0], sizes = [8, 64], strides = [1, 1]} : vector<64x64xf32> to vector<8x64xf32>
    %cst_53 = arith.constant dense<0.000000e+00> : vector<8x64xf32>
    %197 = tpu.matmul %170, %10, %cst_53 {dimension_numbers = #tpu.dot_dimension_numbers<[1], [0], [0], [1], [0, 0, 1, 1], [], []>} : vector<8x16xf32>, vector<16x64xf32>, vector<8x64xf32> -> vector<8x64xf32>
    %198 = arith.addf %196, %197 : vector<8x64xf32>
    %199 = vector.extract_strided_slice %198 {offsets = [0, 0], sizes = [8, 48], strides = [1, 1]} : vector<8x64xf32> to vector<8x48xf32>
    %200 = arith.negf %199 : vector<8x48xf32>
    %201 = math.exp %200 : vector<8x48xf32>
    %cst_54 = arith.constant 1.000000e+00 : f32
    %202 = vector.broadcast %cst_54 : f32 to vector<8x48xf32>
    %203 = arith.addf %202, %201 : vector<8x48xf32>
    %204 = arith.divf %202, %203 : vector<8x48xf32>
    %205 = vector.extract_strided_slice %204 {offsets = [0, 0], sizes = [8, 16], strides = [1, 1]} : vector<8x48xf32> to vector<8x16xf32>
    %206 = vector.extract_strided_slice %204 {offsets = [0, 16], sizes = [8, 16], strides = [1, 1]} : vector<8x48xf32> to vector<8x16xf32>
    %207 = vector.extract_strided_slice %204 {offsets = [0, 32], sizes = [8, 16], strides = [1, 1]} : vector<8x48xf32> to vector<8x16xf32>
    %208 = arith.mulf %206, %168 : vector<8x16xf32>
    %209 = vector.extract_strided_slice %198 {offsets = [0, 48], sizes = [8, 16], strides = [1, 1]} : vector<8x64xf32> to vector<8x16xf32>
    %210 = math.tanh %209 : vector<8x16xf32>
    %211 = arith.mulf %205, %210 : vector<8x16xf32>
    %212 = arith.addf %208, %211 : vector<8x16xf32>
    %213 = math.tanh %212 : vector<8x16xf32>
    %214 = arith.mulf %207, %213 : vector<8x16xf32>
    %cst_55 = arith.constant dense<0.000000e+00> : vector<8x64xf32>
    %215 = tpu.matmul %214, %9, %cst_55 {dimension_numbers = #tpu.dot_dimension_numbers<[1], [0], [0], [1], [0, 0, 1, 1], [], []>} : vector<8x16xf32>, vector<16x64xf32>, vector<8x64xf32> -> vector<8x64xf32>
    %216 = vector.broadcast %13 : vector<1x64xf32> to vector<8x64xf32>
    %217 = arith.addf %215, %216 : vector<8x64xf32>
    %cst_56 = arith.constant dense<0.000000e+00> : vector<8x64xf32>
    %218 = tpu.matmul %191, %11, %cst_56 {dimension_numbers = #tpu.dot_dimension_numbers<[1], [0], [0], [1], [0, 0, 1, 1], [], []>} : vector<8x16xf32>, vector<16x64xf32>, vector<8x64xf32> -> vector<8x64xf32>
    %219 = arith.addf %217, %218 : vector<8x64xf32>
    %220 = vector.extract_strided_slice %219 {offsets = [0, 0], sizes = [8, 48], strides = [1, 1]} : vector<8x64xf32> to vector<8x48xf32>
    %221 = arith.negf %220 : vector<8x48xf32>
    %222 = math.exp %221 : vector<8x48xf32>
    %cst_57 = arith.constant 1.000000e+00 : f32
    %223 = vector.broadcast %cst_57 : f32 to vector<8x48xf32>
    %224 = arith.addf %223, %222 : vector<8x48xf32>
    %225 = arith.divf %223, %224 : vector<8x48xf32>
    %226 = vector.extract_strided_slice %225 {offsets = [0, 0], sizes = [8, 16], strides = [1, 1]} : vector<8x48xf32> to vector<8x16xf32>
    %227 = vector.extract_strided_slice %225 {offsets = [0, 16], sizes = [8, 16], strides = [1, 1]} : vector<8x48xf32> to vector<8x16xf32>
    %228 = vector.extract_strided_slice %225 {offsets = [0, 32], sizes = [8, 16], strides = [1, 1]} : vector<8x48xf32> to vector<8x16xf32>
    %229 = arith.mulf %227, %189 : vector<8x16xf32>
    %230 = vector.extract_strided_slice %219 {offsets = [0, 48], sizes = [8, 16], strides = [1, 1]} : vector<8x64xf32> to vector<8x16xf32>
    %231 = math.tanh %230 : vector<8x16xf32>
    %232 = arith.mulf %226, %231 : vector<8x16xf32>
    %233 = arith.addf %229, %232 : vector<8x16xf32>
    %234 = math.tanh %233 : vector<8x16xf32>
    %235 = arith.mulf %228, %234 : vector<8x16xf32>
    %cst_58 = arith.constant dense<0.000000e+00> : vector<8x128xf32>
    %236 = tpu.matmul %235, %14, %cst_58 {dimension_numbers = #tpu.dot_dimension_numbers<[1], [0], [0], [1], [0, 0, 1, 1], [], []>} : vector<8x16xf32>, vector<16x128xf32>, vector<8x128xf32> -> vector<8x128xf32>
    %237 = vector.broadcast %15 : vector<1x128xf32> to vector<8x128xf32>
    %238 = arith.addf %236, %237 : vector<8x128xf32>
    %c32 = arith.constant 32 : index
    %c0_59 = arith.constant 0 : index
    %239 = vector.load %arg11[%c32, %c0_59] : memref<64x128xf32, #tpu.memory_space<vmem>>, vector<8x128xf32>
    tpu.vector_store %arg11[%c32, %c0_59], %238 {strides = array<i32>} : memref<64x128xf32, #tpu.memory_space<vmem>>, vector<8x128xf32>,
    %240 = vector.extract_strided_slice %18 {offsets = [40, 0], sizes = [8, 64], strides = [1, 1]} : vector<64x64xf32> to vector<8x64xf32>
    %cst_60 = arith.constant dense<0.000000e+00> : vector<8x64xf32>
    %241 = tpu.matmul %214, %10, %cst_60 {dimension_numbers = #tpu.dot_dimension_numbers<[1], [0], [0], [1], [0, 0, 1, 1], [], []>} : vector<8x16xf32>, vector<16x64xf32>, vector<8x64xf32> -> vector<8x64xf32>
    %242 = arith.addf %240, %241 : vector<8x64xf32>
    %243 = vector.extract_strided_slice %242 {offsets = [0, 0], sizes = [8, 48], strides = [1, 1]} : vector<8x64xf32> to vector<8x48xf32>
    %244 = arith.negf %243 : vector<8x48xf32>
    %245 = math.exp %244 : vector<8x48xf32>
    %cst_61 = arith.constant 1.000000e+00 : f32
    %246 = vector.broadcast %cst_61 : f32 to vector<8x48xf32>
    %247 = arith.addf %246, %245 : vector<8x48xf32>
    %248 = arith.divf %246, %247 : vector<8x48xf32>
    %249 = vector.extract_strided_slice %248 {offsets = [0, 0], sizes = [8, 16], strides = [1, 1]} : vector<8x48xf32> to vector<8x16xf32>
    %250 = vector.extract_strided_slice %248 {offsets = [0, 16], sizes = [8, 16], strides = [1, 1]} : vector<8x48xf32> to vector<8x16xf32>
    %251 = vector.extract_strided_slice %248 {offsets = [0, 32], sizes = [8, 16], strides = [1, 1]} : vector<8x48xf32> to vector<8x16xf32>
    %252 = arith.mulf %250, %212 : vector<8x16xf32>
    %253 = vector.extract_strided_slice %242 {offsets = [0, 48], sizes = [8, 16], strides = [1, 1]} : vector<8x64xf32> to vector<8x16xf32>
    %254 = math.tanh %253 : vector<8x16xf32>
    %255 = arith.mulf %249, %254 : vector<8x16xf32>
    %256 = arith.addf %252, %255 : vector<8x16xf32>
    %257 = math.tanh %256 : vector<8x16xf32>
    %258 = arith.mulf %251, %257 : vector<8x16xf32>
    %cst_62 = arith.constant dense<0.000000e+00> : vector<8x64xf32>
    %259 = tpu.matmul %258, %9, %cst_62 {dimension_numbers = #tpu.dot_dimension_numbers<[1], [0], [0], [1], [0, 0, 1, 1], [], []>} : vector<8x16xf32>, vector<16x64xf32>, vector<8x64xf32> -> vector<8x64xf32>
    %260 = vector.broadcast %13 : vector<1x64xf32> to vector<8x64xf32>
    %261 = arith.addf %259, %260 : vector<8x64xf32>
    %cst_63 = arith.constant dense<0.000000e+00> : vector<8x64xf32>
    %262 = tpu.matmul %235, %11, %cst_63 {dimension_numbers = #tpu.dot_dimension_numbers<[1], [0], [0], [1], [0, 0, 1, 1], [], []>} : vector<8x16xf32>, vector<16x64xf32>, vector<8x64xf32> -> vector<8x64xf32>
    %263 = arith.addf %261, %262 : vector<8x64xf32>
    %264 = vector.extract_strided_slice %263 {offsets = [0, 0], sizes = [8, 48], strides = [1, 1]} : vector<8x64xf32> to vector<8x48xf32>
    %265 = arith.negf %264 : vector<8x48xf32>
    %266 = math.exp %265 : vector<8x48xf32>
    %cst_64 = arith.constant 1.000000e+00 : f32
    %267 = vector.broadcast %cst_64 : f32 to vector<8x48xf32>
    %268 = arith.addf %267, %266 : vector<8x48xf32>
    %269 = arith.divf %267, %268 : vector<8x48xf32>
    %270 = vector.extract_strided_slice %269 {offsets = [0, 0], sizes = [8, 16], strides = [1, 1]} : vector<8x48xf32> to vector<8x16xf32>
    %271 = vector.extract_strided_slice %269 {offsets = [0, 16], sizes = [8, 16], strides = [1, 1]} : vector<8x48xf32> to vector<8x16xf32>
    %272 = vector.extract_strided_slice %269 {offsets = [0, 32], sizes = [8, 16], strides = [1, 1]} : vector<8x48xf32> to vector<8x16xf32>
    %273 = arith.mulf %271, %233 : vector<8x16xf32>
    %274 = vector.extract_strided_slice %263 {offsets = [0, 48], sizes = [8, 16], strides = [1, 1]} : vector<8x64xf32> to vector<8x16xf32>
    %275 = math.tanh %274 : vector<8x16xf32>
    %276 = arith.mulf %270, %275 : vector<8x16xf32>
    %277 = arith.addf %273, %276 : vector<8x16xf32>
    %278 = math.tanh %277 : vector<8x16xf32>
    %279 = arith.mulf %272, %278 : vector<8x16xf32>
    %cst_65 = arith.constant dense<0.000000e+00> : vector<8x128xf32>
    %280 = tpu.matmul %279, %14, %cst_65 {dimension_numbers = #tpu.dot_dimension_numbers<[1], [0], [0], [1], [0, 0, 1, 1], [], []>} : vector<8x16xf32>, vector<16x128xf32>, vector<8x128xf32> -> vector<8x128xf32>
    %281 = vector.broadcast %15 : vector<1x128xf32> to vector<8x128xf32>
    %282 = arith.addf %280, %281 : vector<8x128xf32>
    %c40 = arith.constant 40 : index
    %c0_66 = arith.constant 0 : index
    %283 = vector.load %arg11[%c40, %c0_66] : memref<64x128xf32, #tpu.memory_space<vmem>>, vector<8x128xf32>
    tpu.vector_store %arg11[%c40, %c0_66], %282 {strides = array<i32>} : memref<64x128xf32, #tpu.memory_space<vmem>>, vector<8x128xf32>,
    %284 = vector.extract_strided_slice %18 {offsets = [48, 0], sizes = [8, 64], strides = [1, 1]} : vector<64x64xf32> to vector<8x64xf32>
    %cst_67 = arith.constant dense<0.000000e+00> : vector<8x64xf32>
    %285 = tpu.matmul %258, %10, %cst_67 {dimension_numbers = #tpu.dot_dimension_numbers<[1], [0], [0], [1], [0, 0, 1, 1], [], []>} : vector<8x16xf32>, vector<16x64xf32>, vector<8x64xf32> -> vector<8x64xf32>
    %286 = arith.addf %284, %285 : vector<8x64xf32>
    %287 = vector.extract_strided_slice %286 {offsets = [0, 0], sizes = [8, 48], strides = [1, 1]} : vector<8x64xf32> to vector<8x48xf32>
    %288 = arith.negf %287 : vector<8x48xf32>
    %289 = math.exp %288 : vector<8x48xf32>
    %cst_68 = arith.constant 1.000000e+00 : f32
    %290 = vector.broadcast %cst_68 : f32 to vector<8x48xf32>
    %291 = arith.addf %290, %289 : vector<8x48xf32>
    %292 = arith.divf %290, %291 : vector<8x48xf32>
    %293 = vector.extract_strided_slice %292 {offsets = [0, 0], sizes = [8, 16], strides = [1, 1]} : vector<8x48xf32> to vector<8x16xf32>
    %294 = vector.extract_strided_slice %292 {offsets = [0, 16], sizes = [8, 16], strides = [1, 1]} : vector<8x48xf32> to vector<8x16xf32>
    %295 = vector.extract_strided_slice %292 {offsets = [0, 32], sizes = [8, 16], strides = [1, 1]} : vector<8x48xf32> to vector<8x16xf32>
    %296 = arith.mulf %294, %256 : vector<8x16xf32>
    %297 = vector.extract_strided_slice %286 {offsets = [0, 48], sizes = [8, 16], strides = [1, 1]} : vector<8x64xf32> to vector<8x16xf32>
    %298 = math.tanh %297 : vector<8x16xf32>
    %299 = arith.mulf %293, %298 : vector<8x16xf32>
    %300 = arith.addf %296, %299 : vector<8x16xf32>
    %301 = math.tanh %300 : vector<8x16xf32>
    %302 = arith.mulf %295, %301 : vector<8x16xf32>
    %cst_69 = arith.constant dense<0.000000e+00> : vector<8x64xf32>
    %303 = tpu.matmul %302, %9, %cst_69 {dimension_numbers = #tpu.dot_dimension_numbers<[1], [0], [0], [1], [0, 0, 1, 1], [], []>} : vector<8x16xf32>, vector<16x64xf32>, vector<8x64xf32> -> vector<8x64xf32>
    %304 = vector.broadcast %13 : vector<1x64xf32> to vector<8x64xf32>
    %305 = arith.addf %303, %304 : vector<8x64xf32>
    %cst_70 = arith.constant dense<0.000000e+00> : vector<8x64xf32>
    %306 = tpu.matmul %279, %11, %cst_70 {dimension_numbers = #tpu.dot_dimension_numbers<[1], [0], [0], [1], [0, 0, 1, 1], [], []>} : vector<8x16xf32>, vector<16x64xf32>, vector<8x64xf32> -> vector<8x64xf32>
    %307 = arith.addf %305, %306 : vector<8x64xf32>
    %308 = vector.extract_strided_slice %307 {offsets = [0, 0], sizes = [8, 48], strides = [1, 1]} : vector<8x64xf32> to vector<8x48xf32>
    %309 = arith.negf %308 : vector<8x48xf32>
    %310 = math.exp %309 : vector<8x48xf32>
    %cst_71 = arith.constant 1.000000e+00 : f32
    %311 = vector.broadcast %cst_71 : f32 to vector<8x48xf32>
    %312 = arith.addf %311, %310 : vector<8x48xf32>
    %313 = arith.divf %311, %312 : vector<8x48xf32>
    %314 = vector.extract_strided_slice %313 {offsets = [0, 0], sizes = [8, 16], strides = [1, 1]} : vector<8x48xf32> to vector<8x16xf32>
    %315 = vector.extract_strided_slice %313 {offsets = [0, 16], sizes = [8, 16], strides = [1, 1]} : vector<8x48xf32> to vector<8x16xf32>
    %316 = vector.extract_strided_slice %313 {offsets = [0, 32], sizes = [8, 16], strides = [1, 1]} : vector<8x48xf32> to vector<8x16xf32>
    %317 = arith.mulf %315, %277 : vector<8x16xf32>
    %318 = vector.extract_strided_slice %307 {offsets = [0, 48], sizes = [8, 16], strides = [1, 1]} : vector<8x64xf32> to vector<8x16xf32>
    %319 = math.tanh %318 : vector<8x16xf32>
    %320 = arith.mulf %314, %319 : vector<8x16xf32>
    %321 = arith.addf %317, %320 : vector<8x16xf32>
    %322 = math.tanh %321 : vector<8x16xf32>
    %323 = arith.mulf %316, %322 : vector<8x16xf32>
    %cst_72 = arith.constant dense<0.000000e+00> : vector<8x128xf32>
    %324 = tpu.matmul %323, %14, %cst_72 {dimension_numbers = #tpu.dot_dimension_numbers<[1], [0], [0], [1], [0, 0, 1, 1], [], []>} : vector<8x16xf32>, vector<16x128xf32>, vector<8x128xf32> -> vector<8x128xf32>
    %325 = vector.broadcast %15 : vector<1x128xf32> to vector<8x128xf32>
    %326 = arith.addf %324, %325 : vector<8x128xf32>
    %c48 = arith.constant 48 : index
    %c0_73 = arith.constant 0 : index
    %327 = vector.load %arg11[%c48, %c0_73] : memref<64x128xf32, #tpu.memory_space<vmem>>, vector<8x128xf32>
    tpu.vector_store %arg11[%c48, %c0_73], %326 {strides = array<i32>} : memref<64x128xf32, #tpu.memory_space<vmem>>, vector<8x128xf32>,
    %328 = vector.extract_strided_slice %18 {offsets = [56, 0], sizes = [8, 64], strides = [1, 1]} : vector<64x64xf32> to vector<8x64xf32>
    %cst_74 = arith.constant dense<0.000000e+00> : vector<8x64xf32>
    %329 = tpu.matmul %302, %10, %cst_74 {dimension_numbers = #tpu.dot_dimension_numbers<[1], [0], [0], [1], [0, 0, 1, 1], [], []>} : vector<8x16xf32>, vector<16x64xf32>, vector<8x64xf32> -> vector<8x64xf32>
    %330 = arith.addf %328, %329 : vector<8x64xf32>
    %331 = vector.extract_strided_slice %330 {offsets = [0, 0], sizes = [8, 48], strides = [1, 1]} : vector<8x64xf32> to vector<8x48xf32>
    %332 = arith.negf %331 : vector<8x48xf32>
    %333 = math.exp %332 : vector<8x48xf32>
    %cst_75 = arith.constant 1.000000e+00 : f32
    %334 = vector.broadcast %cst_75 : f32 to vector<8x48xf32>
    %335 = arith.addf %334, %333 : vector<8x48xf32>
    %336 = arith.divf %334, %335 : vector<8x48xf32>
    %337 = vector.extract_strided_slice %336 {offsets = [0, 0], sizes = [8, 16], strides = [1, 1]} : vector<8x48xf32> to vector<8x16xf32>
    %338 = vector.extract_strided_slice %336 {offsets = [0, 16], sizes = [8, 16], strides = [1, 1]} : vector<8x48xf32> to vector<8x16xf32>
    %339 = vector.extract_strided_slice %336 {offsets = [0, 32], sizes = [8, 16], strides = [1, 1]} : vector<8x48xf32> to vector<8x16xf32>
    %340 = arith.mulf %338, %300 : vector<8x16xf32>
    %341 = vector.extract_strided_slice %330 {offsets = [0, 48], sizes = [8, 16], strides = [1, 1]} : vector<8x64xf32> to vector<8x16xf32>
    %342 = math.tanh %341 : vector<8x16xf32>
    %343 = arith.mulf %337, %342 : vector<8x16xf32>
    %344 = arith.addf %340, %343 : vector<8x16xf32>
    %345 = math.tanh %344 : vector<8x16xf32>
    %346 = arith.mulf %339, %345 : vector<8x16xf32>
    %cst_76 = arith.constant dense<0.000000e+00> : vector<8x64xf32>
    %347 = tpu.matmul %346, %9, %cst_76 {dimension_numbers = #tpu.dot_dimension_numbers<[1], [0], [0], [1], [0, 0, 1, 1], [], []>} : vector<8x16xf32>, vector<16x64xf32>, vector<8x64xf32> -> vector<8x64xf32>
    %348 = vector.broadcast %13 : vector<1x64xf32> to vector<8x64xf32>
    %349 = arith.addf %347, %348 : vector<8x64xf32>
    %cst_77 = arith.constant dense<0.000000e+00> : vector<8x64xf32>
    %350 = tpu.matmul %323, %11, %cst_77 {dimension_numbers = #tpu.dot_dimension_numbers<[1], [0], [0], [1], [0, 0, 1, 1], [], []>} : vector<8x16xf32>, vector<16x64xf32>, vector<8x64xf32> -> vector<8x64xf32>
    %351 = arith.addf %349, %350 : vector<8x64xf32>
    %352 = vector.extract_strided_slice %351 {offsets = [0, 0], sizes = [8, 48], strides = [1, 1]} : vector<8x64xf32> to vector<8x48xf32>
    %353 = arith.negf %352 : vector<8x48xf32>
    %354 = math.exp %353 : vector<8x48xf32>
    %cst_78 = arith.constant 1.000000e+00 : f32
    %355 = vector.broadcast %cst_78 : f32 to vector<8x48xf32>
    %356 = arith.addf %355, %354 : vector<8x48xf32>
    %357 = arith.divf %355, %356 : vector<8x48xf32>
    %358 = vector.extract_strided_slice %357 {offsets = [0, 0], sizes = [8, 16], strides = [1, 1]} : vector<8x48xf32> to vector<8x16xf32>
    %359 = vector.extract_strided_slice %357 {offsets = [0, 16], sizes = [8, 16], strides = [1, 1]} : vector<8x48xf32> to vector<8x16xf32>
    %360 = vector.extract_strided_slice %357 {offsets = [0, 32], sizes = [8, 16], strides = [1, 1]} : vector<8x48xf32> to vector<8x16xf32>
    %361 = arith.mulf %359, %321 : vector<8x16xf32>
    %362 = vector.extract_strided_slice %351 {offsets = [0, 48], sizes = [8, 16], strides = [1, 1]} : vector<8x64xf32> to vector<8x16xf32>
    %363 = math.tanh %362 : vector<8x16xf32>
    %364 = arith.mulf %358, %363 : vector<8x16xf32>
    %365 = arith.addf %361, %364 : vector<8x16xf32>
    %366 = math.tanh %365 : vector<8x16xf32>
    %367 = arith.mulf %360, %366 : vector<8x16xf32>
    %cst_79 = arith.constant dense<0.000000e+00> : vector<8x128xf32>
    %368 = tpu.matmul %367, %14, %cst_79 {dimension_numbers = #tpu.dot_dimension_numbers<[1], [0], [0], [1], [0, 0, 1, 1], [], []>} : vector<8x16xf32>, vector<16x128xf32>, vector<8x128xf32> -> vector<8x128xf32>
    %369 = vector.broadcast %15 : vector<1x128xf32> to vector<8x128xf32>
    %370 = arith.addf %368, %369 : vector<8x128xf32>
    %c56 = arith.constant 56 : index
    %c0_80 = arith.constant 0 : index
    %371 = vector.load %arg11[%c56, %c0_80] : memref<64x128xf32, #tpu.memory_space<vmem>>, vector<8x128xf32>
    tpu.vector_store %arg11[%c56, %c0_80], %370 {strides = array<i32>} : memref<64x128xf32, #tpu.memory_space<vmem>>, vector<8x128xf32>,
    return
  }
}

</mosaic_0001>

<llo_original>
// kernel: tpu_custom_call.1
$region0: #{tpu_custom_call.1}
  #allocation0 [shape = 'u32[]', space=smem, size = 0x4, offset = 0x4, fixed_abs, tag = 'smem constant byte address 0x4 - core index']
  #allocation1 [shape = 'u32[144,128]{1,0:T(1,128)}', space=vmem, size = 0x12000, scoped, tag = 'internal scratch']
  %s0 = inlined_call_operand.vmem [shape: f32[64,12], index: 0, kind: input, shape index: {}]
  %s1 = inlined_call_operand.vmem [shape: f32[12,64], index: 1, kind: input, shape index: {}]
  %s2 = inlined_call_operand.vmem [shape: f32[1,64], index: 2, kind: input, shape index: {}]
  %s3 = inlined_call_operand.vmem [shape: f32[64,64], index: 3, kind: input, shape index: {}]
  %s4 = inlined_call_operand.hbm [shape: f32[16,64], index: 4, kind: input, shape index: {}]
  %s5 = inlined_call_operand.vmem [shape: f32[1,64], index: 5, kind: input, shape index: {}]
  %s6 = inlined_call_operand.vmem [shape: f32[16,64], index: 6, kind: input, shape index: {}]
  %s7 = inlined_call_operand.hbm [shape: f32[16,64], index: 7, kind: input, shape index: {}]
  %s8 = inlined_call_operand.hbm [shape: f32[1,64], index: 8, kind: input, shape index: {}]
  %s9 = inlined_call_operand.vmem [shape: f32[16,128], index: 9, kind: input, shape index: {}]
  %s10 = inlined_call_operand.vmem [shape: f32[1,128], index: 10, kind: input, shape index: {}]
  %s11 = inlined_call_operand.hbm [shape: f32[64,128], index: 11, kind: output, shape index: {}]
  %s12 = sld [smem:[#allocation0]]
  $region66: #{tpu_custom_call.1} parent=0
    _
  %s14 = ssub.s32 1, %s12
  %s15 = scalar_select 0, %s14, %s12
  $region1: #{tpu_custom_call.1} parent=0
    #allocation2 [shape = 'u8[8192]{0}', space=vmem, size = 0x2000, scoped, tag = 'input window, operand 4, single buffered']
    #allocation3 [shape = 's32[1]{0}', space=sflag, size = 0x4, scoped, tag = 'scoped memory for tpu_custom_call.1']
    #allocation4 [shape = 's32[1]{0}', space=sflag, size = 0x4, scoped, tag = 'scoped memory for tpu_custom_call.1']
    #allocation5 [shape = 'u8[8192]{0}', space=vmem, size = 0x2000, scoped, tag = 'input window, operand 7, single buffered']
    #allocation6 [shape = 's32[1]{0}', space=sflag, size = 0x4, scoped, tag = 'scoped memory for tpu_custom_call.1']
    #allocation7 [shape = 'u8[512]{0}', space=vmem, size = 0x400, scoped, tag = 'input window, operand 8, single buffered']
    #allocation8 [shape = 'u8[32768]{0}', space=vmem, size = 0x8000, scoped, tag = 'output window, operand 0, single buffered']
    %16 = vsyncpa [#allocation3], 0
    %17 = vsyncpa [#allocation6], 0
    %18 = vsyncpa [#allocation4], 0
    // Predicated region
    $region2: #{tpu_custom_call.1} parent=1 // pred_check
      _
    $region3: #{tpu_custom_call.1} parent=1 // pred_check_branch
      %20 = sbr.rel (0) target = $region5
    $region4: #{tpu_custom_call.1} parent=1 // pred_region
      _
    $region5: #{tpu_custom_call.1} parent=1 // pred_fallthru
      _
    // Predicated region
    $region6: #{tpu_custom_call.1} parent=1 // pred_check
      _
    $region7: #{tpu_custom_call.1} parent=1 // pred_check_branch
      %22 = sbr.rel (0) target = $region9
    $region8: #{tpu_custom_call.1} parent=1 // pred_region
      _
    $region9: #{tpu_custom_call.1} parent=1 // pred_fallthru
      _
    // Predicated region
    $region10: #{tpu_custom_call.1} parent=1 // pred_check
      _
    $region11: #{tpu_custom_call.1} parent=1 // pred_check_branch
      %24 = sbr.rel (0) target = $region13
    $region12: #{tpu_custom_call.1} parent=1 // pred_region
      _
    $region13: #{tpu_custom_call.1} parent=1 // pred_fallthru
      _
    // Predicated region
    $region14: #{tpu_custom_call.1} parent=1 // pred_check
      _
    $region15: #{tpu_custom_call.1} parent=1 // pred_check_branch
      %26 = sbr.rel (0) target = $region17
    $region16: #{tpu_custom_call.1} parent=1 // pred_region
      _
    $region17: #{tpu_custom_call.1} parent=1 // pred_fallthru
      _
    // Predicated region
    $region18: #{tpu_custom_call.1} parent=1 // pred_check
      _
    $region19: #{tpu_custom_call.1} parent=1 // pred_check_branch
      %28 = sbr.rel (0) target = $region21
    $region20: #{tpu_custom_call.1} parent=1 // pred_region
      %s30 = ssub.s32 256, 256
      %31 = vsyncadd [#allocation3], %s30
      %s32 = sshll.u32 [#allocation2], 4
      %s33 = int_to_ptr.vmem [resolvable:$true] %s32
      %38 = dma.hbm_to_vmem [thread:$0]  %s4, 256, %s33, [#allocation3], 128, 128, 8
    $region21: #{tpu_custom_call.1} parent=1 // pred_fallthru
      _
    // Predicated region
    $region22: #{tpu_custom_call.1} parent=1 // pred_check
      _
    $region23: #{tpu_custom_call.1} parent=1 // pred_check_branch
      %40 = sbr.rel (0) target = $region25
    $region24: #{tpu_custom_call.1} parent=1 // pred_region
      _
    $region25: #{tpu_custom_call.1} parent=1 // pred_fallthru
      _
    // Predicated region
    $region26: #{tpu_custom_call.1} parent=1 // pred_check
      _
    $region27: #{tpu_custom_call.1} parent=1 // pred_check_branch
      %42 = sbr.rel (0) target = $region29
    $region28: #{tpu_custom_call.1} parent=1 // pred_region
      _
    $region29: #{tpu_custom_call.1} parent=1 // pred_fallthru
      _
    // Predicated region
    $region30: #{tpu_custom_call.1} parent=1 // pred_check
      _
    $region31: #{tpu_custom_call.1} parent=1 // pred_check_branch
      %44 = sbr.rel (0) target = $region33
    $region32: #{tpu_custom_call.1} parent=1 // pred_region
      %s46 = ssub.s32 256, 256
      %47 = vsyncadd [#allocation6], %s46
      %s48 = sshll.u32 [#allocation5], 4
      %s49 = int_to_ptr.vmem [resolvable:$true] %s48
      %54 = dma.hbm_to_vmem [thread:$0]  %s7, 256, %s49, [#allocation6], 128, 128, 8
    $region33: #{tpu_custom_call.1} parent=1 // pred_fallthru
      _
    // Predicated region
    $region34: #{tpu_custom_call.1} parent=1 // pred_check
      _
    $region35: #{tpu_custom_call.1} parent=1 // pred_check_branch
      %56 = sbr.rel (0) target = $region37
    $region36: #{tpu_custom_call.1} parent=1 // pred_region
      %s58 = ssub.s32 16, 16
      %59 = vsyncadd [#allocation6], %s58
      %s61 = sshll.u32 [#allocation7], 4
      %s62 = int_to_ptr.vmem [resolvable:$true] %s61
      %64 = dma.hbm_to_vmem [thread:$0]  %s8, 16, %s62, [#allocation6]
    $region37: #{tpu_custom_call.1} parent=1 // pred_fallthru
      _
    // Predicated region
    $region38: #{tpu_custom_call.1} parent=1 // pred_check
      _
    $region39: #{tpu_custom_call.1} parent=1 // pred_check_branch
      %66 = sbr.rel (0) target = $region41
    $region40: #{tpu_custom_call.1} parent=1 // pred_region
      _
    $region41: #{tpu_custom_call.1} parent=1 // pred_fallthru
      _
    // Predicated region
    $region42: #{tpu_custom_call.1} parent=1 // pred_check
      _
    $region43: #{tpu_custom_call.1} parent=1 // pred_check_branch
      %68 = sbr.rel (0) target = $region45
    $region44: #{tpu_custom_call.1} parent=1 // pred_region
      _
    $region45: #{tpu_custom_call.1} parent=1 // pred_fallthru
      _
    // Predicated region
    $region46: #{tpu_custom_call.1} parent=1 // pred_check
      _
    $region47: #{tpu_custom_call.1} parent=1 // pred_check_branch
      %70 = sbr.rel (0) target = $region49
    $region48: #{tpu_custom_call.1} parent=1 // pred_region
      %71 = dma.done [#allocation3], 256
    $region49: #{tpu_custom_call.1} parent=1 // pred_fallthru
      _
    // Predicated region
    $region50: #{tpu_custom_call.1} parent=1 // pred_check
      _
    $region51: #{tpu_custom_call.1} parent=1 // pred_check_branch
      %73 = sbr.rel (0) target = $region53
    $region52: #{tpu_custom_call.1} parent=1 // pred_region
      %74 = dma.done [#allocation6], 256
    $region53: #{tpu_custom_call.1} parent=1 // pred_fallthru
      _
    // Predicated region
    $region54: #{tpu_custom_call.1} parent=1 // pred_check
      _
    $region55: #{tpu_custom_call.1} parent=1 // pred_check_branch
      %76 = sbr.rel (0) target = $region57
    $region56: #{tpu_custom_call.1} parent=1 // pred_region
      %77 = dma.done [#allocation6], 16
    $region57: #{tpu_custom_call.1} parent=1 // pred_fallthru
      _
    %v78 = vld [vmem:[%s0] sm:$0xff]
    %v79 = vld [vmem:[%s0 + $0x8] sm:$0xff]
    %v80 = vld [vmem:[%s0 + $0x10] sm:$0xff]
    %v81 = vld [vmem:[%s0 + $0x18] sm:$0xff]
    %v82 = vld [vmem:[%s0 + $0x20] sm:$0xff]
    %v83 = vld [vmem:[%s0 + $0x28] sm:$0xff]
    %v84 = vld [vmem:[%s0 + $0x30] sm:$0xff]
    %v85 = vld [vmem:[%s0 + $0x38] sm:$0xff]
    %v86 = vld [vmem:[%s1] sm:$0xff]
    %v87 = vld [vmem:[%s1 + $0x8] sm:$0xf]
    %v88 = vld [vmem:[%s2] sm:$0x1]
    %v90 = vlaneseq
    %v91 = vshrl.u32 %v90, 7
    %v92 = vsub.s32 0, %v91
    %v93 = vrot.slane %v88, %v92
    %vm95 = vcmask 97280
    %v97 = vsel %vm95, %v78, 0
    %v100 = vsel %vm95, %v79, 0
    %v103 = vsel %vm95, %v80, 0
    %v106 = vsel %vm95, %v81, 0
    %v109 = vsel %vm95, %v82, 0
    %v112 = vsel %vm95, %v83, 0
    %v115 = vsel %vm95, %v84, 0
    %v118 = vsel %vm95, %v85, 0
    %vm120 = vcmask 1043456
    %v122 = vsel %vm120, %v87, 0
    %124 = vmatprep.subr.mxu0 0.0
    %125 = vmatpush1.msra.mxu0 %v86
    %126 = vmatprep.subr.mxu0 0.0
    %127 = vmatpush1.msra.mxu0 %v122
    %128 = vmatprep.subr.mxu0 0.0
    %129 = vmatpush1.msra.mxu0 0.0
    %130 = vmatprep.subr.mxu0 0.0
    %131 = vmatpush1.msra.mxu0 0.0
    %132 = vmatprep.subr.mxu0 0.0
    %133 = vmatpush1.msra.mxu0 0.0
    %134 = vmatprep.subr.mxu0 0.0
    %135 = vmatpush1.msra.mxu0 0.0
    %136 = vmatprep.subr.mxu0 0.0
    %137 = vmatpush1.msra.mxu0 0.0
    %138 = vmatprep.subr.mxu0 0.0
    %139 = vmatpush1.msra.mxu0 0.0
    %140 = vmatprep.subr.mxu0 0.0
    %141 = vmatpush1.msra.mxu0 0.0
    %142 = vmatprep.subr.mxu0 0.0
    %143 = vmatpush1.msra.mxu0 0.0
    %144 = vmatprep.subr.mxu0 0.0
    %145 = vmatpush1.msra.mxu0 0.0
    %146 = vmatprep.subr.mxu0 0.0
    %147 = vmatpush1.msra.mxu0 0.0
    %148 = vmatprep.subr.mxu0 0.0
    %149 = vmatpush1.msra.mxu0 0.0
    %150 = vmatprep.subr.mxu0 0.0
    %151 = vmatpush1.msra.mxu0 0.0
    %152 = vmatprep.subr.mxu0 0.0
    %153 = vmatpush1.msra.mxu0 0.0
    %154 = vmatprep.subr.mxu0 0.0
    %155 = vmatpush1.msra.mxu0 0.0
    %156 = vmatprep.subr.mxu0 0.0
    %157 = vmatpush1.msra.mxu0 0.0
    %158 = vmatprep.subr.mxu0 0.0
    %159 = vmatpush1.msra.mxu0 0.0
    %160 = vmatprep.subr.mxu0 0.0
    %161 = vmatpush1.msra.mxu0 0.0
    %162 = vmatprep.subr.mxu0 0.0
    %163 = vmatpush1.msra.mxu0 0.0
    %164 = vmatprep.subr.mxu0 0.0
    %165 = vmatpush1.msra.mxu0 0.0
    %166 = vmatprep.subr.mxu0 0.0
    %167 = vmatpush1.msra.mxu0 0.0
    %168 = vmatprep.subr.mxu0 0.0
    %169 = vmatpush1.msra.mxu0 0.0
    %170 = vmatprep.subr.mxu0 0.0
    %171 = vmatpush1.msra.mxu0 0.0
    %172 = vmatprep.subr.mxu0 0.0
    %173 = vmatpush1.msra.mxu0 0.0
    %174 = vmatprep.subr.mxu0 0.0
    %175 = vmatpush1.msra.mxu0 0.0
    %176 = vmatprep.subr.mxu0 0.0
    %177 = vmatpush1.msra.mxu0 0.0
    %178 = vmatprep.subr.mxu0 0.0
    %179 = vmatpush1.msra.mxu0 0.0
    %180 = vmatprep.subr.mxu0 0.0
    %181 = vmatpush1.msra.mxu0 0.0
    %182 = vmatprep.subr.mxu0 0.0
    %183 = vmatpush1.msra.mxu0 0.0
    %184 = vmatprep.subr.mxu0 0.0
    %185 = vmatpush1.msra.mxu0 0.0
    %186 = vmatprep.subr.mxu0 0.0
    %187 = vmatpush1.msra.mxu0 0.0
    %188 = vmatprep.mubr.f32.mxu0 0.0
    %189 = vmatmul.mubr.f32.gmra.mrb[0].mxu0 %v97
    %v190 = vpop.f32.mrb[0].mxu0
    %v191 = vadd.f32 %v93, %v190
    %v192 = vpop.f32.mrb[0].mxu0
    %193 = vmatprep.mubr.f32.mxu0 0.0
    %194 = vmatmul.mubr.f32.gmra.mrb[0].mxu0 %v100
    %v195 = vpop.f32.mrb[0].mxu0
    %v196 = vadd.f32 %v93, %v195
    %v197 = vpop.f32.mrb[0].mxu0
    %198 = vmatprep.mubr.f32.mxu0 0.0
    %199 = vmatmul.mubr.f32.gmra.mrb[0].mxu0 %v103
    %v200 = vpop.f32.mrb[0].mxu0
    %v201 = vadd.f32 %v93, %v200
    %v202 = vpop.f32.mrb[0].mxu0
    %203 = vmatprep.mubr.f32.mxu0 0.0
    %204 = vmatmul.mubr.f32.gmra.mrb[0].mxu0 %v106
    %v205 = vpop.f32.mrb[0].mxu0
    %v206 = vadd.f32 %v93, %v205
    %v207 = vpop.f32.mrb[0].mxu0
    %208 = vmatprep.mubr.f32.mxu0 0.0
    %209 = vmatmul.mubr.f32.gmra.mrb[0].mxu0 %v109
    %v210 = vpop.f32.mrb[0].mxu0
    %v211 = vadd.f32 %v93, %v210
    %v212 = vpop.f32.mrb[0].mxu0
    %213 = vmatprep.mubr.f32.mxu0 0.0
    %214 = vmatmul.mubr.f32.gmra.mrb[0].mxu0 %v112
    %v215 = vpop.f32.mrb[0].mxu0
    %v216 = vadd.f32 %v93, %v215
    %v217 = vpop.f32.mrb[0].mxu0
    %218 = vmatprep.mubr.f32.mxu0 0.0
    %219 = vmatmul.mubr.f32.gmra.mrb[0].mxu0 %v115
    %v220 = vpop.f32.mrb[0].mxu0
    %v221 = vadd.f32 %v93, %v220
    %v222 = vpop.f32.mrb[0].mxu0
    %223 = vmatprep.mubr.f32.mxu0 0.0
    %224 = vmatmul.mubr.f32.gmra.mrb[0].mxu0 %v118
    %v225 = vpop.f32.mrb[0].mxu0
    %v226 = vadd.f32 %v93, %v225
    %v227 = vpop.f32.mrb[0].mxu0
    %228 = vdwg.mxu0
    %v229 = vmax.f32 %v191, 0.0
    %v230 = vmax.f32 %v196, 0.0
    %v231 = vmax.f32 %v201, 0.0
    %v232 = vmax.f32 %v206, 0.0
    %v233 = vmax.f32 %v211, 0.0
    %v234 = vmax.f32 %v216, 0.0
    %v235 = vmax.f32 %v221, 0.0
    %v236 = vmax.f32 %v226, 0.0
    %v237 = vld [vmem:[%s3] sm:$0xff]
    %v238 = vld [vmem:[%s3 + $0x8] sm:$0xff]
    %v239 = vld [vmem:[%s3 + $0x10] sm:$0xff]
    %v240 = vld [vmem:[%s3 + $0x18] sm:$0xff]
    %v241 = vld [vmem:[%s3 + $0x20] sm:$0xff]
    %v242 = vld [vmem:[%s3 + $0x28] sm:$0xff]
    %v243 = vld [vmem:[%s3 + $0x30] sm:$0xff]
    %v244 = vld [vmem:[%s3 + $0x38] sm:$0xff]
    %v245 = vld [vmem:[%s6] sm:$0xff]
    %v246 = vld [vmem:[%s6 + $0x8] sm:$0xff]
    %v247 = vld [vmem:[#allocation2] sm:$0xff]
    %v248 = vld [vmem:[#allocation2 + $0x8] sm:$0xff]
    %v249 = vld [vmem:[#allocation5] sm:$0xff]
    %v250 = vld [vmem:[#allocation5 + $0x8] sm:$0xff]
    %v251 = vld [vmem:[%s5] sm:$0x1]
    %v252 = vld [vmem:[#allocation7] sm:$0x1]
    %v253 = vld [vmem:[%s9] sm:$0xff]
    %v254 = vld [vmem:[%s9 + $0x8] sm:$0xff]
    %v255 = vld [vmem:[%s10] sm:$0x1]
    %v257 = vlaneseq
    %v258 = vshrl.u32 %v257, 7
    %v259 = vsub.s32 0, %v258
    %v260 = vrot.slane %v251, %v259
    %vm262 = vcmask 523264
    %v264 = vsel %vm262, %v229, 0
    %v267 = vsel %vm262, %v230, 0
    %v270 = vsel %vm262, %v231, 0
    %v273 = vsel %vm262, %v232, 0
    %v276 = vsel %vm262, %v233, 0
    %v279 = vsel %vm262, %v234, 0
    %v282 = vsel %vm262, %v235, 0
    %v285 = vsel %vm262, %v236, 0
    %287 = vmatprep.subr.mxu0 0.0
    %288 = vmatpush1.msra.mxu0 %v237
    %289 = vmatprep.subr.mxu0 0.0
    %290 = vmatpush1.msra.mxu0 %v238
    %291 = vmatprep.subr.mxu0 0.0
    %292 = vmatpush1.msra.mxu0 %v239
    %293 = vmatprep.subr.mxu0 0.0
    %294 = vmatpush1.msra.mxu0 %v240
    %295 = vmatprep.subr.mxu0 0.0
    %296 = vmatpush1.msra.mxu0 %v241
    %297 = vmatprep.subr.mxu0 0.0
    %298 = vmatpush1.msra.mxu0 %v242
    %299 = vmatprep.subr.mxu0 0.0
    %300 = vmatpush1.msra.mxu0 %v243
    %301 = vmatprep.subr.mxu0 0.0
    %302 = vmatpush1.msra.mxu0 %v244
    %303 = vmatprep.subr.mxu0 0.0
    %304 = vmatpush1.msra.mxu0 0.0
    %305 = vmatprep.subr.mxu0 0.0
    %306 = vmatpush1.msra.mxu0 0.0
    %307 = vmatprep.subr.mxu0 0.0
    %308 = vmatpush1.msra.mxu0 0.0
    %309 = vmatprep.subr.mxu0 0.0
    %310 = vmatpush1.msra.mxu0 0.0
    %311 = vmatprep.subr.mxu0 0.0
    %312 = vmatpush1.msra.mxu0 0.0
    %313 = vmatprep.subr.mxu0 0.0
    %314 = vmatpush1.msra.mxu0 0.0
    %315 = vmatprep.subr.mxu0 0.0
    %316 = vmatpush1.msra.mxu0 0.0
    %317 = vmatprep.subr.mxu0 0.0
    %318 = vmatpush1.msra.mxu0 0.0
    %319 = vmatprep.subr.mxu0 0.0
    %320 = vmatpush1.msra.mxu0 0.0
    %321 = vmatprep.subr.mxu0 0.0
    %322 = vmatpush1.msra.mxu0 0.0
    %323 = vmatprep.subr.mxu0 0.0
    %324 = vmatpush1.msra.mxu0 0.0
    %325 = vmatprep.subr.mxu0 0.0
    %326 = vmatpush1.msra.mxu0 0.0
    %327 = vmatprep.subr.mxu0 0.0
    %328 = vmatpush1.msra.mxu0 0.0
    %329 = vmatprep.subr.mxu0 0.0
    %330 = vmatpush1.msra.mxu0 0.0
    %331 = vmatprep.subr.mxu0 0.0
    %332 = vmatpush1.msra.mxu0 0.0
    %333 = vmatprep.subr.mxu0 0.0
    %334 = vmatpush1.msra.mxu0 0.0
    %335 = vmatprep.subr.mxu0 0.0
    %336 = vmatpush1.msra.mxu0 0.0
    %337 = vmatprep.subr.mxu0 0.0
    %338 = vmatpush1.msra.mxu0 0.0
    %339 = vmatprep.subr.mxu0 0.0
    %340 = vmatpush1.msra.mxu0 0.0
    %341 = vmatprep.subr.mxu0 0.0
    %342 = vmatpush1.msra.mxu0 0.0
    %343 = vmatprep.subr.mxu0 0.0
    %344 = vmatpush1.msra.mxu0 0.0
    %345 = vmatprep.subr.mxu0 0.0
    %346 = vmatpush1.msra.mxu0 0.0
    %347 = vmatprep.subr.mxu0 0.0
    %348 = vmatpush1.msra.mxu0 0.0
    %349 = vmatprep.subr.mxu0 0.0
    %350 = vmatpush1.msra.mxu0 0.0
    %351 = vmatprep.mubr.f32.mxu0 0.0
    %352 = vmatmul.mubr.f32.gmra.mrb[0].mxu0 %v264
    %v353 = vpop.f32.mrb[0].mxu0
    %v354 = vadd.f32 %v260, %v353
    %v355 = vpop.f32.mrb[0].mxu0
    %356 = vmatprep.mubr.f32.mxu0 0.0
    %357 = vmatmul.mubr.f32.gmra.mrb[0].mxu0 %v267
    %v358 = vpop.f32.mrb[0].mxu0
    %v359 = vadd.f32 %v260, %v358
    %v360 = vpop.f32.mrb[0].mxu0
    %361 = vmatprep.mubr.f32.mxu0 0.0
    %362 = vmatmul.mubr.f32.gmra.mrb[0].mxu0 %v270
    %v363 = vpop.f32.mrb[0].mxu0
    %v364 = vadd.f32 %v260, %v363
    %v365 = vpop.f32.mrb[0].mxu0
    %366 = vmatprep.mubr.f32.mxu0 0.0
    %367 = vmatmul.mubr.f32.gmra.mrb[0].mxu0 %v273
    %v368 = vpop.f32.mrb[0].mxu0
    %v369 = vadd.f32 %v260, %v368
    %v370 = vpop.f32.mrb[0].mxu0
    %371 = vmatprep.mubr.f32.mxu0 0.0
    %372 = vmatmul.mubr.f32.gmra.mrb[0].mxu0 %v276
    %v373 = vpop.f32.mrb[0].mxu0
    %v374 = vadd.f32 %v260, %v373
    %v375 = vpop.f32.mrb[0].mxu0
    %376 = vmatprep.mubr.f32.mxu0 0.0
    %377 = vmatmul.mubr.f32.gmra.mrb[0].mxu0 %v279
    %v378 = vpop.f32.mrb[0].mxu0
    %v379 = vadd.f32 %v260, %v378
    %v380 = vpop.f32.mrb[0].mxu0
    %381 = vmatprep.mubr.f32.mxu0 0.0
    %382 = vmatmul.mubr.f32.gmra.mrb[0].mxu0 %v282
    %v383 = vpop.f32.mrb[0].mxu0
    %v384 = vadd.f32 %v260, %v383
    %v385 = vpop.f32.mrb[0].mxu0
    %386 = vmatprep.mubr.f32.mxu0 0.0
    %387 = vmatmul.mubr.f32.gmra.mrb[0].mxu0 %v285
    %v388 = vpop.f32.mrb[0].mxu0
    %v389 = vadd.f32 %v260, %v388
    %v390 = vpop.f32.mrb[0].mxu0
    %391 = vdwg.mxu0
    %vm392 = vcmask 130048
    %v394 = vsel %vm392, 0.0, 0
    %396 = vmatprep.subr.mxu0 0.0
    %397 = vmatpush1.msra.mxu0 %v247
    %398 = vmatprep.subr.mxu0 0.0
    %399 = vmatpush1.msra.mxu0 %v248
    %400 = vmatprep.subr.mxu0 0.0
    %401 = vmatpush1.msra.mxu0 0.0
    %402 = vmatprep.subr.mxu0 0.0
    %403 = vmatpush1.msra.mxu0 0.0
    %404 = vmatprep.subr.mxu0 0.0
    %405 = vmatpush1.msra.mxu0 0.0
    %406 = vmatprep.subr.mxu0 0.0
    %407 = vmatpush1.msra.mxu0 0.0
    %408 = vmatprep.subr.mxu0 0.0
    %409 = vmatpush1.msra.mxu0 0.0
    %410 = vmatprep.subr.mxu0 0.0
    %411 = vmatpush1.msra.mxu0 0.0
    %412 = vmatprep.subr.mxu0 0.0
    %413 = vmatpush1.msra.mxu0 0.0
    %414 = vmatprep.subr.mxu0 0.0
    %415 = vmatpush1.msra.mxu0 0.0
    %416 = vmatprep.subr.mxu0 0.0
    %417 = vmatpush1.msra.mxu0 0.0
    %418 = vmatprep.subr.mxu0 0.0
    %419 = vmatpush1.msra.mxu0 0.0
    %420 = vmatprep.subr.mxu0 0.0
    %421 = vmatpush1.msra.mxu0 0.0
    %422 = vmatprep.subr.mxu0 0.0
    %423 = vmatpush1.msra.mxu0 0.0
    %424 = vmatprep.subr.mxu0 0.0
    %425 = vmatpush1.msra.mxu0 0.0
    %426 = vmatprep.subr.mxu0 0.0
    %427 = vmatpush1.msra.mxu0 0.0
    %428 = vmatprep.subr.mxu0 0.0
    %429 = vmatpush1.msra.mxu0 0.0
    %430 = vmatprep.subr.mxu0 0.0
    %431 = vmatpush1.msra.mxu0 0.0
    %432 = vmatprep.subr.mxu0 0.0
    %433 = vmatpush1.msra.mxu0 0.0
    %434 = vmatprep.subr.mxu0 0.0
    %435 = vmatpush1.msra.mxu0 0.0
    %436 = vmatprep.subr.mxu0 0.0
    %437 = vmatpush1.msra.mxu0 0.0
    %438 = vmatprep.subr.mxu0 0.0
    %439 = vmatpush1.msra.mxu0 0.0
    %440 = vmatprep.subr.mxu0 0.0
    %441 = vmatpush1.msra.mxu0 0.0
    %442 = vmatprep.subr.mxu0 0.0
    %443 = vmatpush1.msra.mxu0 0.0
    %444 = vmatprep.subr.mxu0 0.0
    %445 = vmatpush1.msra.mxu0 0.0
    %446 = vmatprep.subr.mxu0 0.0
    %447 = vmatpush1.msra.mxu0 0.0
    %448 = vmatprep.subr.mxu0 0.0
    %449 = vmatpush1.msra.mxu0 0.0
    %450 = vmatprep.subr.mxu0 0.0
    %451 = vmatpush1.msra.mxu0 0.0
    %452 = vmatprep.subr.mxu0 0.0
    %453 = vmatpush1.msra.mxu0 0.0
    %454 = vmatprep.subr.mxu0 0.0
    %455 = vmatpush1.msra.mxu0 0.0
    %456 = vmatprep.subr.mxu0 0.0
    %457 = vmatpush1.msra.mxu0 0.0
    %458 = vmatprep.subr.mxu0 0.0
    %459 = vmatpush1.msra.mxu0 0.0
    %460 = vmatprep.mubr.f32.mxu0 0.0
    %461 = vmatmul.mubr.f32.gmra.mrb[0].mxu0 %v394
    %v462 = vpop.f32.mrb[0].mxu0
    %v463 = vadd.f32 0.0, %v462
    %v464 = vpop.f32.mrb[0].mxu0
    %465 = vdwg.mxu0
    %v466 = vadd.f32 %v354, %v463
    %v467 = vxor.u32 %v466, 2147483648
    %v468 = vmul.f32 %v467, 1.442695
    %v469 = vpow.pop %v468
    %v470 = vadd.f32 %v469, 1.0
    %v471 = vrcp.pop %v470
    %v472 = vmul.f32 1.0, %v471
    %v473 = vmul.f32 %v472, 0.0
    %v474 = vtanh.pop %v466
    %476 = vrot.lane.b32.xlu0 %v474, 80
    %v477 = vpop.permute.xlu0 %476
    %v479 = vmul.f32 %v472, %v477
    %481 = vrot.lane.b32.xlu0 %v479, 16
    %v482 = vpop.permute.xlu0 %481
    %v484 = vadd.f32 %v473, %v482
    %v485 = vtanh.pop %v484
    %487 = vrot.lane.b32.xlu0 %v485, 16
    %v488 = vpop.permute.xlu0 %487
    %v490 = vmul.f32 %v472, %v488
    %v492 = vlaneseq
    %v493 = vshrl.u32 %v492, 7
    %v494 = vsub.s32 0, %v493
    %v495 = vrot.slane %v252, %v494
    %498 = vrot.lane.b32.xlu0 %v490, 96
    %v499 = vpop.permute.xlu0 %498
    %v500 = vsel %vm392, %v499, 0
    %502 = vmatprep.subr.mxu0 0.0
    %503 = vmatpush1.msra.mxu0 %v245
    %504 = vmatprep.subr.mxu0 0.0
    %505 = vmatpush1.msra.mxu0 %v246
    %506 = vmatprep.subr.mxu0 0.0
    %507 = vmatpush1.msra.mxu0 0.0
    %508 = vmatprep.subr.mxu0 0.0
    %509 = vmatpush1.msra.mxu0 0.0
    %510 = vmatprep.subr.mxu0 0.0
    %511 = vmatpush1.msra.mxu0 0.0
    %512 = vmatprep.subr.mxu0 0.0
    %513 = vmatpush1.msra.mxu0 0.0
    %514 = vmatprep.subr.mxu0 0.0
    %515 = vmatpush1.msra.mxu0 0.0
    %516 = vmatprep.subr.mxu0 0.0
    %517 = vmatpush1.msra.mxu0 0.0
    %518 = vmatprep.subr.mxu0 0.0
    %519 = vmatpush1.msra.mxu0 0.0
    %520 = vmatprep.subr.mxu0 0.0
    %521 = vmatpush1.msra.mxu0 0.0
    %522 = vmatprep.subr.mxu0 0.0
    %523 = vmatpush1.msra.mxu0 0.0
    %524 = vmatprep.subr.mxu0 0.0
    %525 = vmatpush1.msra.mxu0 0.0
    %526 = vmatprep.subr.mxu0 0.0
    %527 = vmatpush1.msra.mxu0 0.0
    %528 = vmatprep.subr.mxu0 0.0
    %529 = vmatpush1.msra.mxu0 0.0
    %530 = vmatprep.subr.mxu0 0.0
    %531 = vmatpush1.msra.mxu0 0.0
    %532 = vmatprep.subr.mxu0 0.0
    %533 = vmatpush1.msra.mxu0 0.0
    %534 = vmatprep.subr.mxu0 0.0
    %535 = vmatpush1.msra.mxu0 0.0
    %536 = vmatprep.subr.mxu0 0.0
    %537 = vmatpush1.msra.mxu0 0.0
    %538 = vmatprep.subr.mxu0 0.0
    %539 = vmatpush1.msra.mxu0 0.0
    %540 = vmatprep.subr.mxu0 0.0
    %541 = vmatpush1.msra.mxu0 0.0
    %542 = vmatprep.subr.mxu0 0.0
    %543 = vmatpush1.msra.mxu0 0.0
    %544 = vmatprep.subr.mxu0 0.0
    %545 = vmatpush1.msra.mxu0 0.0
    %546 = vmatprep.subr.mxu0 0.0
    %547 = vmatpush1.msra.mxu0 0.0
    %548 = vmatprep.subr.mxu0 0.0
    %549 = vmatpush1.msra.mxu0 0.0
    %550 = vmatprep.subr.mxu0 0.0
    %551 = vmatpush1.msra.mxu0 0.0
    %552 = vmatprep.subr.mxu0 0.0
    %553 = vmatpush1.msra.mxu0 0.0
    %554 = vmatprep.subr.mxu0 0.0
    %555 = vmatpush1.msra.mxu0 0.0
    %556 = vmatprep.subr.mxu0 0.0
    %557 = vmatpush1.msra.mxu0 0.0
    %558 = vmatprep.subr.mxu0 0.0
    %559 = vmatpush1.msra.mxu0 0.0
    %560 = vmatprep.subr.mxu0 0.0
    %561 = vmatpush1.msra.mxu0 0.0
    %562 = vmatprep.subr.mxu0 0.0
    %563 = vmatpush1.msra.mxu0 0.0
    %564 = vmatprep.subr.mxu0 0.0
    %565 = vmatpush1.msra.mxu0 0.0
    %566 = vmatprep.mubr.f32.mxu0 0.0
    %567 = vmatmul.mubr.f32.gmra.mrb[0].mxu0 %v500
    %v568 = vpop.f32.mrb[0].mxu0
    %v569 = vadd.f32 %v495, %v568
    %v570 = vpop.f32.mrb[0].mxu0
    %571 = vdwg.mxu0
    %572 = vmatprep.subr.mxu0 0.0
    %573 = vmatpush1.msra.mxu0 %v249
    %574 = vmatprep.subr.mxu0 0.0
    %575 = vmatpush1.msra.mxu0 %v250
    %576 = vmatprep.subr.mxu0 0.0
    %577 = vmatpush1.msra.mxu0 0.0
    %578 = vmatprep.subr.mxu0 0.0
    %579 = vmatpush1.msra.mxu0 0.0
    %580 = vmatprep.subr.mxu0 0.0
    %581 = vmatpush1.msra.mxu0 0.0
    %582 = vmatprep.subr.mxu0 0.0
    %583 = vmatpush1.msra.mxu0 0.0
    %584 = vmatprep.subr.mxu0 0.0
    %585 = vmatpush1.msra.mxu0 0.0
    %586 = vmatprep.subr.mxu0 0.0
    %587 = vmatpush1.msra.mxu0 0.0
    %588 = vmatprep.subr.mxu0 0.0
    %589 = vmatpush1.msra.mxu0 0.0
    %590 = vmatprep.subr.mxu0 0.0
    %591 = vmatpush1.msra.mxu0 0.0
    %592 = vmatprep.subr.mxu0 0.0
    %593 = vmatpush1.msra.mxu0 0.0
    %594 = vmatprep.subr.mxu0 0.0
    %595 = vmatpush1.msra.mxu0 0.0
    %596 = vmatprep.subr.mxu0 0.0
    %597 = vmatpush1.msra.mxu0 0.0
    %598 = vmatprep.subr.mxu0 0.0
    %599 = vmatpush1.msra.mxu0 0.0
    %600 = vmatprep.subr.mxu0 0.0
    %601 = vmatpush1.msra.mxu0 0.0
    %602 = vmatprep.subr.mxu0 0.0
    %603 = vmatpush1.msra.mxu0 0.0
    %604 = vmatprep.subr.mxu0 0.0
    %605 = vmatpush1.msra.mxu0 0.0
    %606 = vmatprep.subr.mxu0 0.0
    %607 = vmatpush1.msra.mxu0 0.0
    %608 = vmatprep.subr.mxu0 0.0
    %609 = vmatpush1.msra.mxu0 0.0
    %610 = vmatprep.subr.mxu0 0.0
    %611 = vmatpush1.msra.mxu0 0.0
    %612 = vmatprep.subr.mxu0 0.0
    %613 = vmatpush1.msra.mxu0 0.0
    %614 = vmatprep.subr.mxu0 0.0
    %615 = vmatpush1.msra.mxu0 0.0
    %616 = vmatprep.subr.mxu0 0.0
    %617 = vmatpush1.msra.mxu0 0.0
    %618 = vmatprep.subr.mxu0 0.0
    %619 = vmatpush1.msra.mxu0 0.0
    %620 = vmatprep.subr.mxu0 0.0
    %621 = vmatpush1.msra.mxu0 0.0
    %622 = vmatprep.subr.mxu0 0.0
    %623 = vmatpush1.msra.mxu0 0.0
    %624 = vmatprep.subr.mxu0 0.0
    %625 = vmatpush1.msra.mxu0 0.0
    %626 = vmatprep.subr.mxu0 0.0
    %627 = vmatpush1.msra.mxu0 0.0
    %628 = vmatprep.subr.mxu0 0.0
    %629 = vmatpush1.msra.mxu0 0.0
    %630 = vmatprep.subr.mxu0 0.0
    %631 = vmatpush1.msra.mxu0 0.0
    %632 = vmatprep.subr.mxu0 0.0
    %633 = vmatpush1.msra.mxu0 0.0
    %634 = vmatprep.subr.mxu0 0.0
    %635 = vmatpush1.msra.mxu0 0.0
    %636 = vmatprep.mubr.f32.mxu0 0.0
    %637 = vmatmul.mubr.f32.gmra.mrb[0].mxu0 %v394
    %v638 = vpop.f32.mrb[0].mxu0
    %v639 = vadd.f32 0.0, %v638
    %v640 = vpop.f32.mrb[0].mxu0
    %641 = vdwg.mxu0
    %v642 = vadd.f32 %v569, %v639
    %v643 = vxor.u32 %v642, 2147483648
    %v644 = vmul.f32 %v643, 1.442695
    %v645 = vpow.pop %v644
    %v646 = vadd.f32 %v645, 1.0
    %v647 = vrcp.pop %v646
    %v648 = vmul.f32 1.0, %v647
    %v649 = vmul.f32 %v648, 0.0
    %v650 = vtanh.pop %v642
    %652 = vrot.lane.b32.xlu0 %v650, 80
    %v653 = vpop.permute.xlu0 %652
    %v655 = vmul.f32 %v648, %v653
    %657 = vrot.lane.b32.xlu0 %v655, 16
    %v658 = vpop.permute.xlu0 %657
    %v660 = vadd.f32 %v649, %v658
    %v661 = vtanh.pop %v660
    %663 = vrot.lane.b32.xlu0 %v661, 16
    %v664 = vpop.permute.xlu0 %663
    %v666 = vmul.f32 %v648, %v664
    %v668 = vlaneseq
    %v669 = vshrl.u32 %v668, 7
    %v670 = vsub.s32 0, %v669
    %v671 = vrot.slane %v255, %v670
    %674 = vrot.lane.b32.xlu0 %v666, 96
    %v675 = vpop.permute.xlu0 %674
    %v676 = vsel %vm392, %v675, 0
    %678 = vmatprep.subr.mxu0 0.0
    %679 = vmatpush1.msra.mxu0 %v253
    %680 = vmatprep.subr.mxu0 0.0
    %681 = vmatpush1.msra.mxu0 %v254
    %682 = vmatprep.subr.mxu0 0.0
    %683 = vmatpush1.msra.mxu0 0.0
    %684 = vmatprep.subr.mxu0 0.0
    %685 = vmatpush1.msra.mxu0 0.0
    %686 = vmatprep.subr.mxu0 0.0
    %687 = vmatpush1.msra.mxu0 0.0
    %688 = vmatprep.subr.mxu0 0.0
    %689 = vmatpush1.msra.mxu0 0.0
    %690 = vmatprep.subr.mxu0 0.0
    %691 = vmatpush1.msra.mxu0 0.0
    %692 = vmatprep.subr.mxu0 0.0
    %693 = vmatpush1.msra.mxu0 0.0
    %694 = vmatprep.subr.mxu0 0.0
    %695 = vmatpush1.msra.mxu0 0.0
    %696 = vmatprep.subr.mxu0 0.0
    %697 = vmatpush1.msra.mxu0 0.0
    %698 = vmatprep.subr.mxu0 0.0
    %699 = vmatpush1.msra.mxu0 0.0
    %700 = vmatprep.subr.mxu0 0.0
    %701 = vmatpush1.msra.mxu0 0.0
    %702 = vmatprep.subr.mxu0 0.0
    %703 = vmatpush1.msra.mxu0 0.0
    %704 = vmatprep.subr.mxu0 0.0
    %705 = vmatpush1.msra.mxu0 0.0
    %706 = vmatprep.subr.mxu0 0.0
    %707 = vmatpush1.msra.mxu0 0.0
    %708 = vmatprep.subr.mxu0 0.0
    %709 = vmatpush1.msra.mxu0 0.0
    %710 = vmatprep.subr.mxu0 0.0
    %711 = vmatpush1.msra.mxu0 0.0
    %712 = vmatprep.subr.mxu0 0.0
    %713 = vmatpush1.msra.mxu0 0.0
    %714 = vmatprep.subr.mxu0 0.0
    %715 = vmatpush1.msra.mxu0 0.0
    %716 = vmatprep.subr.mxu0 0.0
    %717 = vmatpush1.msra.mxu0 0.0
    %718 = vmatprep.subr.mxu0 0.0
    %719 = vmatpush1.msra.mxu0 0.0
    %720 = vmatprep.subr.mxu0 0.0
    %721 = vmatpush1.msra.mxu0 0.0
    %722 = vmatprep.subr.mxu0 0.0
    %723 = vmatpush1.msra.mxu0 0.0
    %724 = vmatprep.subr.mxu0 0.0
    %725 = vmatpush1.msra.mxu0 0.0
    %726 = vmatprep.subr.mxu0 0.0
    %727 = vmatpush1.msra.mxu0 0.0
    %728 = vmatprep.subr.mxu0 0.0
    %729 = vmatpush1.msra.mxu0 0.0
    %730 = vmatprep.subr.mxu0 0.0
    %731 = vmatpush1.msra.mxu0 0.0
    %732 = vmatprep.subr.mxu0 0.0
    %733 = vmatpush1.msra.mxu0 0.0
    %734 = vmatprep.subr.mxu0 0.0
    %735 = vmatpush1.msra.mxu0 0.0
    %736 = vmatprep.subr.mxu0 0.0
    %737 = vmatpush1.msra.mxu0 0.0
    %738 = vmatprep.subr.mxu0 0.0
    %739 = vmatpush1.msra.mxu0 0.0
    %740 = vmatprep.subr.mxu0 0.0
    %741 = vmatpush1.msra.mxu0 0.0
    %742 = vmatprep.mubr.f32.mxu0 0.0
    %743 = vmatmul.mubr.f32.gmra.mrb[0].mxu0 %v676
    %v744 = vpop.f32.mrb[0].mxu0
    %v745 = vadd.f32 %v671, %v744
    %v746 = vpop.f32.mrb[0].mxu0
    %747 = vdwg.mxu0
    %748 = vst [vmem:[#allocation8] sm:$0xff] %v745
    %749 = vmatprep.subr.mxu0 0.0
    %750 = vmatpush1.msra.mxu0 %v247
    %751 = vmatprep.subr.mxu0 0.0
    %752 = vmatpush1.msra.mxu0 %v248
    %753 = vmatprep.subr.mxu0 0.0
    %754 = vmatpush1.msra.mxu0 0.0
    %755 = vmatprep.subr.mxu0 0.0
    %756 = vmatpush1.msra.mxu0 0.0
    %757 = vmatprep.subr.mxu0 0.0
    %758 = vmatpush1.msra.mxu0 0.0
    %759 = vmatprep.subr.mxu0 0.0
    %760 = vmatpush1.msra.mxu0 0.0
    %761 = vmatprep.subr.mxu0 0.0
    %762 = vmatpush1.msra.mxu0 0.0
    %763 = vmatprep.subr.mxu0 0.0
    %764 = vmatpush1.msra.mxu0 0.0
    %765 = vmatprep.subr.mxu0 0.0
    %766 = vmatpush1.msra.mxu0 0.0
    %767 = vmatprep.subr.mxu0 0.0
    %768 = vmatpush1.msra.mxu0 0.0
    %769 = vmatprep.subr.mxu0 0.0
    %770 = vmatpush1.msra.mxu0 0.0
    %771 = vmatprep.subr.mxu0 0.0
    %772 = vmatpush1.msra.mxu0 0.0
    %773 = vmatprep.subr.mxu0 0.0
    %774 = vmatpush1.msra.mxu0 0.0
    %775 = vmatprep.subr.mxu0 0.0
    %776 = vmatpush1.msra.mxu0 0.0
    %777 = vmatprep.subr.mxu0 0.0
    %778 = vmatpush1.msra.mxu0 0.0
    %779 = vmatprep.subr.mxu0 0.0
    %780 = vmatpush1.msra.mxu0 0.0
    %781 = vmatprep.subr.mxu0 0.0
    %782 = vmatpush1.msra.mxu0 0.0
    %783 = vmatprep.subr.mxu0 0.0
    %784 = vmatpush1.msra.mxu0 0.0
    %785 = vmatprep.subr.mxu0 0.0
    %786 = vmatpush1.msra.mxu0 0.0
    %787 = vmatprep.subr.mxu0 0.0
    %788 = vmatpush1.msra.mxu0 0.0
    %789 = vmatprep.subr.mxu0 0.0
    %790 = vmatpush1.msra.mxu0 0.0
    %791 = vmatprep.subr.mxu0 0.0
    %792 = vmatpush1.msra.mxu0 0.0
    %793 = vmatprep.subr.mxu0 0.0
    %794 = vmatpush1.msra.mxu0 0.0
    %795 = vmatprep.subr.mxu0 0.0
    %796 = vmatpush1.msra.mxu0 0.0
    %797 = vmatprep.subr.mxu0 0.0
    %798 = vmatpush1.msra.mxu0 0.0
    %799 = vmatprep.subr.mxu0 0.0
    %800 = vmatpush1.msra.mxu0 0.0
    %801 = vmatprep.subr.mxu0 0.0
    %802 = vmatpush1.msra.mxu0 0.0
    %803 = vmatprep.subr.mxu0 0.0
    %804 = vmatpush1.msra.mxu0 0.0
    %805 = vmatprep.subr.mxu0 0.0
    %806 = vmatpush1.msra.mxu0 0.0
    %807 = vmatprep.subr.mxu0 0.0
    %808 = vmatpush1.msra.mxu0 0.0
    %809 = vmatprep.subr.mxu0 0.0
    %810 = vmatpush1.msra.mxu0 0.0
    %811 = vmatprep.subr.mxu0 0.0
    %812 = vmatpush1.msra.mxu0 0.0
    %813 = vmatprep.mubr.f32.mxu0 0.0
    %814 = vmatmul.mubr.f32.gmra.mrb[0].mxu0 %v500
    %v815 = vpop.f32.mrb[0].mxu0
    %v816 = vadd.f32 0.0, %v815
    %v817 = vpop.f32.mrb[0].mxu0
    %818 = vdwg.mxu0
    %v819 = vadd.f32 %v359, %v816
    %v820 = vxor.u32 %v819, 2147483648
    %v821 = vmul.f32 %v820, 1.442695
    %v822 = vpow.pop %v821
    %v823 = vadd.f32 %v822, 1.0
    %v824 = vrcp.pop %v823
    %v825 = vmul.f32 1.0, %v824
    %v826 = vmul.f32 %v825, %v484
    %v827 = vtanh.pop %v819
    %829 = vrot.lane.b32.xlu0 %v827, 80
    %v830 = vpop.permute.xlu0 %829
    %v832 = vmul.f32 %v825, %v830
    %834 = vrot.lane.b32.xlu0 %v832, 16
    %v835 = vpop.permute.xlu0 %834
    %v837 = vadd.f32 %v826, %v835
    %v838 = vtanh.pop %v837
    %840 = vrot.lane.b32.xlu0 %v838, 16
    %v841 = vpop.permute.xlu0 %840
    %v843 = vmul.f32 %v825, %v841
    %845 = vrot.lane.b32.xlu0 %v843, 96
    %v846 = vpop.permute.xlu0 %845
    %v847 = vsel %vm392, %v846, 0
    %849 = vmatprep.subr.mxu0 0.0
    %850 = vmatpush1.msra.mxu0 %v245
    %851 = vmatprep.subr.mxu0 0.0
    %852 = vmatpush1.msra.mxu0 %v246
    %853 = vmatprep.subr.mxu0 0.0
    %854 = vmatpush1.msra.mxu0 0.0
    %855 = vmatprep.subr.mxu0 0.0
    %856 = vmatpush1.msra.mxu0 0.0
    %857 = vmatprep.subr.mxu0 0.0
    %858 = vmatpush1.msra.mxu0 0.0
    %859 = vmatprep.subr.mxu0 0.0
    %860 = vmatpush1.msra.mxu0 0.0
    %861 = vmatprep.subr.mxu0 0.0
    %862 = vmatpush1.msra.mxu0 0.0
    %863 = vmatprep.subr.mxu0 0.0
    %864 = vmatpush1.msra.mxu0 0.0
    %865 = vmatprep.subr.mxu0 0.0
    %866 = vmatpush1.msra.mxu0 0.0
    %867 = vmatprep.subr.mxu0 0.0
    %868 = vmatpush1.msra.mxu0 0.0
    %869 = vmatprep.subr.mxu0 0.0
    %870 = vmatpush1.msra.mxu0 0.0
    %871 = vmatprep.subr.mxu0 0.0
    %872 = vmatpush1.msra.mxu0 0.0
    %873 = vmatprep.subr.mxu0 0.0
    %874 = vmatpush1.msra.mxu0 0.0
    %875 = vmatprep.subr.mxu0 0.0
    %876 = vmatpush1.msra.mxu0 0.0
    %877 = vmatprep.subr.mxu0 0.0
    %878 = vmatpush1.msra.mxu0 0.0
    %879 = vmatprep.subr.mxu0 0.0
    %880 = vmatpush1.msra.mxu0 0.0
    %881 = vmatprep.subr.mxu0 0.0
    %882 = vmatpush1.msra.mxu0 0.0
    %883 = vmatprep.subr.mxu0 0.0
    %884 = vmatpush1.msra.mxu0 0.0
    %885 = vmatprep.subr.mxu0 0.0
    %886 = vmatpush1.msra.mxu0 0.0
    %887 = vmatprep.subr.mxu0 0.0
    %888 = vmatpush1.msra.mxu0 0.0
    %889 = vmatprep.subr.mxu0 0.0
    %890 = vmatpush1.msra.mxu0 0.0
    %891 = vmatprep.subr.mxu0 0.0
    %892 = vmatpush1.msra.mxu0 0.0
    %893 = vmatprep.subr.mxu0 0.0
    %894 = vmatpush1.msra.mxu0 0.0
    %895 = vmatprep.subr.mxu0 0.0
    %896 = vmatpush1.msra.mxu0 0.0
    %897 = vmatprep.subr.mxu0 0.0
    %898 = vmatpush1.msra.mxu0 0.0
    %899 = vmatprep.subr.mxu0 0.0
    %900 = vmatpush1.msra.mxu0 0.0
    %901 = vmatprep.subr.mxu0 0.0
    %902 = vmatpush1.msra.mxu0 0.0
    %903 = vmatprep.subr.mxu0 0.0
    %904 = vmatpush1.msra.mxu0 0.0
    %905 = vmatprep.subr.mxu0 0.0
    %906 = vmatpush1.msra.mxu0 0.0
    %907 = vmatprep.subr.mxu0 0.0
    %908 = vmatpush1.msra.mxu0 0.0
    %909 = vmatprep.subr.mxu0 0.0
    %910 = vmatpush1.msra.mxu0 0.0
    %911 = vmatprep.subr.mxu0 0.0
    %912 = vmatpush1.msra.mxu0 0.0
    %913 = vmatprep.mubr.f32.mxu0 0.0
    %914 = vmatmul.mubr.f32.gmra.mrb[0].mxu0 %v847
    %v915 = vpop.f32.mrb[0].mxu0
    %v916 = vadd.f32 %v495, %v915
    %v917 = vpop.f32.mrb[0].mxu0
    %918 = vdwg.mxu0
    %919 = vmatprep.subr.mxu0 0.0
    %920 = vmatpush1.msra.mxu0 %v249
    %921 = vmatprep.subr.mxu0 0.0
    %922 = vmatpush1.msra.mxu0 %v250
    %923 = vmatprep.subr.mxu0 0.0
    %924 = vmatpush1.msra.mxu0 0.0
    %925 = vmatprep.subr.mxu0 0.0
    %926 = vmatpush1.msra.mxu0 0.0
    %927 = vmatprep.subr.mxu0 0.0
    %928 = vmatpush1.msra.mxu0 0.0
    %929 = vmatprep.subr.mxu0 0.0
    %930 = vmatpush1.msra.mxu0 0.0
    %931 = vmatprep.subr.mxu0 0.0
    %932 = vmatpush1.msra.mxu0 0.0
    %933 = vmatprep.subr.mxu0 0.0
    %934 = vmatpush1.msra.mxu0 0.0
    %935 = vmatprep.subr.mxu0 0.0
    %936 = vmatpush1.msra.mxu0 0.0
    %937 = vmatprep.subr.mxu0 0.0
    %938 = vmatpush1.msra.mxu0 0.0
    %939 = vmatprep.subr.mxu0 0.0
    %940 = vmatpush1.msra.mxu0 0.0
    %941 = vmatprep.subr.mxu0 0.0
    %942 = vmatpush1.msra.mxu0 0.0
    %943 = vmatprep.subr.mxu0 0.0
    %944 = vmatpush1.msra.mxu0 0.0
    %945 = vmatprep.subr.mxu0 0.0
    %946 = vmatpush1.msra.mxu0 0.0
    %947 = vmatprep.subr.mxu0 0.0
    %948 = vmatpush1.msra.mxu0 0.0
    %949 = vmatprep.subr.mxu0 0.0
    %950 = vmatpush1.msra.mxu0 0.0
    %951 = vmatprep.subr.mxu0 0.0
    %952 = vmatpush1.msra.mxu0 0.0
    %953 = vmatprep.subr.mxu0 0.0
    %954 = vmatpush1.msra.mxu0 0.0
    %955 = vmatprep.subr.mxu0 0.0
    %956 = vmatpush1.msra.mxu0 0.0
    %957 = vmatprep.subr.mxu0 0.0
    %958 = vmatpush1.msra.mxu0 0.0
    %959 = vmatprep.subr.mxu0 0.0
    %960 = vmatpush1.msra.mxu0 0.0
    %961 = vmatprep.subr.mxu0 0.0
    %962 = vmatpush1.msra.mxu0 0.0
    %963 = vmatprep.subr.mxu0 0.0
    %964 = vmatpush1.msra.mxu0 0.0
    %965 = vmatprep.subr.mxu0 0.0
    %966 = vmatpush1.msra.mxu0 0.0
    %967 = vmatprep.subr.mxu0 0.0
    %968 = vmatpush1.msra.mxu0 0.0
    %969 = vmatprep.subr.mxu0 0.0
    %970 = vmatpush1.msra.mxu0 0.0
    %971 = vmatprep.subr.mxu0 0.0
    %972 = vmatpush1.msra.mxu0 0.0
    %973 = vmatprep.subr.mxu0 0.0
    %974 = vmatpush1.msra.mxu0 0.0
    %975 = vmatprep.subr.mxu0 0.0
    %976 = vmatpush1.msra.mxu0 0.0
    %977 = vmatprep.subr.mxu0 0.0
    %978 = vmatpush1.msra.mxu0 0.0
    %979 = vmatprep.subr.mxu0 0.0
    %980 = vmatpush1.msra.mxu0 0.0
    %981 = vmatprep.subr.mxu0 0.0
    %982 = vmatpush1.msra.mxu0 0.0
    %983 = vmatprep.mubr.f32.mxu0 0.0
    %984 = vmatmul.mubr.f32.gmra.mrb[0].mxu0 %v676
    %v985 = vpop.f32.mrb[0].mxu0
    %v986 = vadd.f32 0.0, %v985
    %v987 = vpop.f32.mrb[0].mxu0
    %988 = vdwg.mxu0
    %v989 = vadd.f32 %v916, %v986
    %v990 = vxor.u32 %v989, 2147483648
    %v991 = vmul.f32 %v990, 1.442695
    %v992 = vpow.pop %v991
    %v993 = vadd.f32 %v992, 1.0
    %v994 = vrcp.pop %v993
    %v995 = vmul.f32 1.0, %v994
    %v996 = vmul.f32 %v995, %v660
    %v997 = vtanh.pop %v989
    %999 = vrot.lane.b32.xlu0 %v997, 80
    %v1000 = vpop.permute.xlu0 %999
    %v1002 = vmul.f32 %v995, %v1000
    %1004 = vrot.lane.b32.xlu0 %v1002, 16
    %v1005 = vpop.permute.xlu0 %1004
    %v1007 = vadd.f32 %v996, %v1005
    %v1008 = vtanh.pop %v1007
    %1010 = vrot.lane.b32.xlu0 %v1008, 16
    %v1011 = vpop.permute.xlu0 %1010
    %v1013 = vmul.f32 %v995, %v1011
    %1015 = vrot.lane.b32.xlu0 %v1013, 96
    %v1016 = vpop.permute.xlu0 %1015
    %v1017 = vsel %vm392, %v1016, 0
    %1019 = vmatprep.subr.mxu0 0.0
    %1020 = vmatpush1.msra.mxu0 %v253
    %1021 = vmatprep.subr.mxu0 0.0
    %1022 = vmatpush1.msra.mxu0 %v254
    %1023 = vmatprep.subr.mxu0 0.0
    %1024 = vmatpush1.msra.mxu0 0.0
    %1025 = vmatprep.subr.mxu0 0.0
    %1026 = vmatpush1.msra.mxu0 0.0
    %1027 = vmatprep.subr.mxu0 0.0
    %1028 = vmatpush1.msra.mxu0 0.0
    %1029 = vmatprep.subr.mxu0 0.0
    %1030 = vmatpush1.msra.mxu0 0.0
    %1031 = vmatprep.subr.mxu0 0.0
    %1032 = vmatpush1.msra.mxu0 0.0
    %1033 = vmatprep.subr.mxu0 0.0
    %1034 = vmatpush1.msra.mxu0 0.0
    %1035 = vmatprep.subr.mxu0 0.0
    %1036 = vmatpush1.msra.mxu0 0.0
    %1037 = vmatprep.subr.mxu0 0.0
    %1038 = vmatpush1.msra.mxu0 0.0
    %1039 = vmatprep.subr.mxu0 0.0
    %1040 = vmatpush1.msra.mxu0 0.0
    %1041 = vmatprep.subr.mxu0 0.0
    %1042 = vmatpush1.msra.mxu0 0.0
    %1043 = vmatprep.subr.mxu0 0.0
    %1044 = vmatpush1.msra.mxu0 0.0
    %1045 = vmatprep.subr.mxu0 0.0
    %1046 = vmatpush1.msra.mxu0 0.0
    %1047 = vmatprep.subr.mxu0 0.0
    %1048 = vmatpush1.msra.mxu0 0.0
    %1049 = vmatprep.subr.mxu0 0.0
    %1050 = vmatpush1.msra.mxu0 0.0
    %1051 = vmatprep.subr.mxu0 0.0
    %1052 = vmatpush1.msra.mxu0 0.0
    %1053 = vmatprep.subr.mxu0 0.0
    %1054 = vmatpush1.msra.mxu0 0.0
    %1055 = vmatprep.subr.mxu0 0.0
    %1056 = vmatpush1.msra.mxu0 0.0
    %1057 = vmatprep.subr.mxu0 0.0
    %1058 = vmatpush1.msra.mxu0 0.0
    %1059 = vmatprep.subr.mxu0 0.0
    %1060 = vmatpush1.msra.mxu0 0.0
    %1061 = vmatprep.subr.mxu0 0.0
    %1062 = vmatpush1.msra.mxu0 0.0
    %1063 = vmatprep.subr.mxu0 0.0
    %1064 = vmatpush1.msra.mxu0 0.0
    %1065 = vmatprep.subr.mxu0 0.0
    %1066 = vmatpush1.msra.mxu0 0.0
    %1067 = vmatprep.subr.mxu0 0.0
    %1068 = vmatpush1.msra.mxu0 0.0
    %1069 = vmatprep.subr.mxu0 0.0
    %1070 = vmatpush1.msra.mxu0 0.0
    %1071 = vmatprep.subr.mxu0 0.0
    %1072 = vmatpush1.msra.mxu0 0.0
    %1073 = vmatprep.subr.mxu0 0.0
    %1074 = vmatpush1.msra.mxu0 0.0
    %1075 = vmatprep.subr.mxu0 0.0
    %1076 = vmatpush1.msra.mxu0 0.0
    %1077 = vmatprep.subr.mxu0 0.0
    %1078 = vmatpush1.msra.mxu0 0.0
    %1079 = vmatprep.subr.mxu0 0.0
    %1080 = vmatpush1.msra.mxu0 0.0
    %1081 = vmatprep.subr.mxu0 0.0
    %1082 = vmatpush1.msra.mxu0 0.0
    %1083 = vmatprep.mubr.f32.mxu0 0.0
    %1084 = vmatmul.mubr.f32.gmra.mrb[0].mxu0 %v1017
    %v1085 = vpop.f32.mrb[0].mxu0
    %v1086 = vadd.f32 %v671, %v1085
    %v1087 = vpop.f32.mrb[0].mxu0
    %1088 = vdwg.mxu0
    %1089 = vst [vmem:[#allocation8 + $0x8] sm:$0xff] %v1086
    %1090 = vmatprep.subr.mxu0 0.0
    %1091 = vmatpush1.msra.mxu0 %v247
    %1092 = vmatprep.subr.mxu0 0.0
    %1093 = vmatpush1.msra.mxu0 %v248
    %1094 = vmatprep.subr.mxu0 0.0
    %1095 = vmatpush1.msra.mxu0 0.0
    %1096 = vmatprep.subr.mxu0 0.0
    %1097 = vmatpush1.msra.mxu0 0.0
    %1098 = vmatprep.subr.mxu0 0.0
    %1099 = vmatpush1.msra.mxu0 0.0
    %1100 = vmatprep.subr.mxu0 0.0
    %1101 = vmatpush1.msra.mxu0 0.0
    %1102 = vmatprep.subr.mxu0 0.0
    %1103 = vmatpush1.msra.mxu0 0.0
    %1104 = vmatprep.subr.mxu0 0.0
    %1105 = vmatpush1.msra.mxu0 0.0
    %1106 = vmatprep.subr.mxu0 0.0
    %1107 = vmatpush1.msra.mxu0 0.0
    %1108 = vmatprep.subr.mxu0 0.0
    %1109 = vmatpush1.msra.mxu0 0.0
    %1110 = vmatprep.subr.mxu0 0.0
    %1111 = vmatpush1.msra.mxu0 0.0
    %1112 = vmatprep.subr.mxu0 0.0
    %1113 = vmatpush1.msra.mxu0 0.0
    %1114 = vmatprep.subr.mxu0 0.0
    %1115 = vmatpush1.msra.mxu0 0.0
    %1116 = vmatprep.subr.mxu0 0.0
    %1117 = vmatpush1.msra.mxu0 0.0
    %1118 = vmatprep.subr.mxu0 0.0
    %1119 = vmatpush1.msra.mxu0 0.0
    %1120 = vmatprep.subr.mxu0 0.0
    %1121 = vmatpush1.msra.mxu0 0.0
    %1122 = vmatprep.subr.mxu0 0.0
    %1123 = vmatpush1.msra.mxu0 0.0
    %1124 = vmatprep.subr.mxu0 0.0
    %1125 = vmatpush1.msra.mxu0 0.0
    %1126 = vmatprep.subr.mxu0 0.0
    %1127 = vmatpush1.msra.mxu0 0.0
    %1128 = vmatprep.subr.mxu0 0.0
    %1129 = vmatpush1.msra.mxu0 0.0
    %1130 = vmatprep.subr.mxu0 0.0
    %1131 = vmatpush1.msra.mxu0 0.0
    %1132 = vmatprep.subr.mxu0 0.0
    %1133 = vmatpush1.msra.mxu0 0.0
    %1134 = vmatprep.subr.mxu0 0.0
    %1135 = vmatpush1.msra.mxu0 0.0
    %1136 = vmatprep.subr.mxu0 0.0
    %1137 = vmatpush1.msra.mxu0 0.0
    %1138 = vmatprep.subr.mxu0 0.0
    %1139 = vmatpush1.msra.mxu0 0.0
    %1140 = vmatprep.subr.mxu0 0.0
    %1141 = vmatpush1.msra.mxu0 0.0
    %1142 = vmatprep.subr.mxu0 0.0
    %1143 = vmatpush1.msra.mxu0 0.0
    %1144 = vmatprep.subr.mxu0 0.0
    %1145 = vmatpush1.msra.mxu0 0.0
    %1146 = vmatprep.subr.mxu0 0.0
    %1147 = vmatpush1.msra.mxu0 0.0
    %1148 = vmatprep.subr.mxu0 0.0
    %1149 = vmatpush1.msra.mxu0 0.0
    %1150 = vmatprep.subr.mxu0 0.0
    %1151 = vmatpush1.msra.mxu0 0.0
    %1152 = vmatprep.subr.mxu0 0.0
    %1153 = vmatpush1.msra.mxu0 0.0
    %1154 = vmatprep.mubr.f32.mxu0 0.0
    %1155 = vmatmul.mubr.f32.gmra.mrb[0].mxu0 %v847
    %v1156 = vpop.f32.mrb[0].mxu0
    %v1157 = vadd.f32 0.0, %v1156
    %v1158 = vpop.f32.mrb[0].mxu0
    %1159 = vdwg.mxu0
    %v1160 = vadd.f32 %v364, %v1157
    %v1161 = vxor.u32 %v1160, 2147483648
    %v1162 = vmul.f32 %v1161, 1.442695
    %v1163 = vpow.pop %v1162
    %v1164 = vadd.f32 %v1163, 1.0
    %v1165 = vrcp.pop %v1164
    %v1166 = vmul.f32 1.0, %v1165
    %v1167 = vmul.f32 %v1166, %v837
    %v1168 = vtanh.pop %v1160
    %1170 = vrot.lane.b32.xlu0 %v1168, 80
    %v1171 = vpop.permute.xlu0 %1170
    %v1173 = vmul.f32 %v1166, %v1171
    %1175 = vrot.lane.b32.xlu0 %v1173, 16
    %v1176 = vpop.permute.xlu0 %1175
    %v1178 = vadd.f32 %v1167, %v1176
    %v1179 = vtanh.pop %v1178
    %1181 = vrot.lane.b32.xlu0 %v1179, 16
    %v1182 = vpop.permute.xlu0 %1181
    %v1184 = vmul.f32 %v1166, %v1182
    %1186 = vrot.lane.b32.xlu0 %v1184, 96
    %v1187 = vpop.permute.xlu0 %1186
    %v1188 = vsel %vm392, %v1187, 0
    %1190 = vmatprep.subr.mxu0 0.0
    %1191 = vmatpush1.msra.mxu0 %v245
    %1192 = vmatprep.subr.mxu0 0.0
    %1193 = vmatpush1.msra.mxu0 %v246
    %1194 = vmatprep.subr.mxu0 0.0
    %1195 = vmatpush1.msra.mxu0 0.0
    %1196 = vmatprep.subr.mxu0 0.0
    %1197 = vmatpush1.msra.mxu0 0.0
    %1198 = vmatprep.subr.mxu0 0.0
    %1199 = vmatpush1.msra.mxu0 0.0
    %1200 = vmatprep.subr.mxu0 0.0
    %1201 = vmatpush1.msra.mxu0 0.0
    %1202 = vmatprep.subr.mxu0 0.0
    %1203 = vmatpush1.msra.mxu0 0.0
    %1204 = vmatprep.subr.mxu0 0.0
    %1205 = vmatpush1.msra.mxu0 0.0
    %1206 = vmatprep.subr.mxu0 0.0
    %1207 = vmatpush1.msra.mxu0 0.0
    %1208 = vmatprep.subr.mxu0 0.0
    %1209 = vmatpush1.msra.mxu0 0.0
    %1210 = vmatprep.subr.mxu0 0.0
    %1211 = vmatpush1.msra.mxu0 0.0
    %1212 = vmatprep.subr.mxu0 0.0
    %1213 = vmatpush1.msra.mxu0 0.0
    %1214 = vmatprep.subr.mxu0 0.0
    %1215 = vmatpush1.msra.mxu0 0.0
    %1216 = vmatprep.subr.mxu0 0.0
    %1217 = vmatpush1.msra.mxu0 0.0
    %1218 = vmatprep.subr.mxu0 0.0
    %1219 = vmatpush1.msra.mxu0 0.0
    %1220 = vmatprep.subr.mxu0 0.0
    %1221 = vmatpush1.msra.mxu0 0.0
    %1222 = vmatprep.subr.mxu0 0.0
    %1223 = vmatpush1.msra.mxu0 0.0
    %1224 = vmatprep.subr.mxu0 0.0
    %1225 = vmatpush1.msra.mxu0 0.0
    %1226 = vmatprep.subr.mxu0 0.0
    %1227 = vmatpush1.msra.mxu0 0.0
    %1228 = vmatprep.subr.mxu0 0.0
    %1229 = vmatpush1.msra.mxu0 0.0
    %1230 = vmatprep.subr.mxu0 0.0
    %1231 = vmatpush1.msra.mxu0 0.0
    %1232 = vmatprep.subr.mxu0 0.0
    %1233 = vmatpush1.msra.mxu0 0.0
    %1234 = vmatprep.subr.mxu0 0.0
    %1235 = vmatpush1.msra.mxu0 0.0
    %1236 = vmatprep.subr.mxu0 0.0
    %1237 = vmatpush1.msra.mxu0 0.0
    %1238 = vmatprep.subr.mxu0 0.0
    %1239 = vmatpush1.msra.mxu0 0.0
    %1240 = vmatprep.subr.mxu0 0.0
    %1241 = vmatpush1.msra.mxu0 0.0
    %1242 = vmatprep.subr.mxu0 0.0
    %1243 = vmatpush1.msra.mxu0 0.0
    %1244 = vmatprep.subr.mxu0 0.0
    %1245 = vmatpush1.msra.mxu0 0.0
    %1246 = vmatprep.subr.mxu0 0.0
    %1247 = vmatpush1.msra.mxu0 0.0
    %1248 = vmatprep.subr.mxu0 0.0
    %1249 = vmatpush1.msra.mxu0 0.0
    %1250 = vmatprep.subr.mxu0 0.0
    %1251 = vmatpush1.msra.mxu0 0.0
    %1252 = vmatprep.subr.mxu0 0.0
    %1253 = vmatpush1.msra.mxu0 0.0
    %1254 = vmatprep.mubr.f32.mxu0 0.0
    %1255 = vmatmul.mubr.f32.gmra.mrb[0].mxu0 %v1188
    %v1256 = vpop.f32.mrb[0].mxu0
    %v1257 = vadd.f32 %v495, %v1256
    %v1258 = vpop.f32.mrb[0].mxu0
    %1259 = vdwg.mxu0
    %1260 = vmatprep.subr.mxu0 0.0
    %1261 = vmatpush1.msra.mxu0 %v249
    %1262 = vmatprep.subr.mxu0 0.0
    %1263 = vmatpush1.msra.mxu0 %v250
    %1264 = vmatprep.subr.mxu0 0.0
    %1265 = vmatpush1.msra.mxu0 0.0
    %1266 = vmatprep.subr.mxu0 0.0
    %1267 = vmatpush1.msra.mxu0 0.0
    %1268 = vmatprep.subr.mxu0 0.0
    %1269 = vmatpush1.msra.mxu0 0.0
    %1270 = vmatprep.subr.mxu0 0.0
    %1271 = vmatpush1.msra.mxu0 0.0
    %1272 = vmatprep.subr.mxu0 0.0
    %1273 = vmatpush1.msra.mxu0 0.0
    %1274 = vmatprep.subr.mxu0 0.0
    %1275 = vmatpush1.msra.mxu0 0.0
    %1276 = vmatprep.subr.mxu0 0.0
    %1277 = vmatpush1.msra.mxu0 0.0
    %1278 = vmatprep.subr.mxu0 0.0
    %1279 = vmatpush1.msra.mxu0 0.0
    %1280 = vmatprep.subr.mxu0 0.0
    %1281 = vmatpush1.msra.mxu0 0.0
    %1282 = vmatprep.subr.mxu0 0.0
    %1283 = vmatpush1.msra.mxu0 0.0
    %1284 = vmatprep.subr.mxu0 0.0
    %1285 = vmatpush1.msra.mxu0 0.0
    %1286 = vmatprep.subr.mxu0 0.0
    %1287 = vmatpush1.msra.mxu0 0.0
    %1288 = vmatprep.subr.mxu0 0.0
    %1289 = vmatpush1.msra.mxu0 0.0
    %1290 = vmatprep.subr.mxu0 0.0
    %1291 = vmatpush1.msra.mxu0 0.0
    %1292 = vmatprep.subr.mxu0 0.0
    %1293 = vmatpush1.msra.mxu0 0.0
    %1294 = vmatprep.subr.mxu0 0.0
    %1295 = vmatpush1.msra.mxu0 0.0
    %1296 = vmatprep.subr.mxu0 0.0
    %1297 = vmatpush1.msra.mxu0 0.0
    %1298 = vmatprep.subr.mxu0 0.0
    %1299 = vmatpush1.msra.mxu0 0.0
    %1300 = vmatprep.subr.mxu0 0.0
    %1301 = vmatpush1.msra.mxu0 0.0
    %1302 = vmatprep.subr.mxu0 0.0
    %1303 = vmatpush1.msra.mxu0 0.0
    %1304 = vmatprep.subr.mxu0 0.0
    %1305 = vmatpush1.msra.mxu0 0.0
    %1306 = vmatprep.subr.mxu0 0.0
    %1307 = vmatpush1.msra.mxu0 0.0
    %1308 = vmatprep.subr.mxu0 0.0
    %1309 = vmatpush1.msra.mxu0 0.0
    %1310 = vmatprep.subr.mxu0 0.0
    %1311 = vmatpush1.msra.mxu0 0.0
    %1312 = vmatprep.subr.mxu0 0.0
    %1313 = vmatpush1.msra.mxu0 0.0
    %1314 = vmatprep.subr.mxu0 0.0
    %1315 = vmatpush1.msra.mxu0 0.0
    %1316 = vmatprep.subr.mxu0 0.0
    %1317 = vmatpush1.msra.mxu0 0.0
    %1318 = vmatprep.subr.mxu0 0.0
    %1319 = vmatpush1.msra.mxu0 0.0
    %1320 = vmatprep.subr.mxu0 0.0
    %1321 = vmatpush1.msra.mxu0 0.0
    %1322 = vmatprep.subr.mxu0 0.0
    %1323 = vmatpush1.msra.mxu0 0.0
    %1324 = vmatprep.mubr.f32.mxu0 0.0
    %1325 = vmatmul.mubr.f32.gmra.mrb[0].mxu0 %v1017
    %v1326 = vpop.f32.mrb[0].mxu0
    %v1327 = vadd.f32 0.0, %v1326
    %v1328 = vpop.f32.mrb[0].mxu0
    %1329 = vdwg.mxu0
    %v1330 = vadd.f32 %v1257, %v1327
    %v1331 = vxor.u32 %v1330, 2147483648
    %v1332 = vmul.f32 %v1331, 1.442695
    %v1333 = vpow.pop %v1332
    %v1334 = vadd.f32 %v1333, 1.0
    %v1335 = vrcp.pop %v1334
    %v1336 = vmul.f32 1.0, %v1335
    %v1337 = vmul.f32 %v1336, %v1007
    %v1338 = vtanh.pop %v1330
    %1340 = vrot.lane.b32.xlu0 %v1338, 80
    %v1341 = vpop.permute.xlu0 %1340
    %v1343 = vmul.f32 %v1336, %v1341
    %1345 = vrot.lane.b32.xlu0 %v1343, 16
    %v1346 = vpop.permute.xlu0 %1345
    %v1348 = vadd.f32 %v1337, %v1346
    %v1349 = vtanh.pop %v1348
    %1351 = vrot.lane.b32.xlu0 %v1349, 16
    %v1352 = vpop.permute.xlu0 %1351
    %v1354 = vmul.f32 %v1336, %v1352
    %1356 = vrot.lane.b32.xlu0 %v1354, 96
    %v1357 = vpop.permute.xlu0 %1356
    %v1358 = vsel %vm392, %v1357, 0
    %1360 = vmatprep.subr.mxu0 0.0
    %1361 = vmatpush1.msra.mxu0 %v253
    %1362 = vmatprep.subr.mxu0 0.0
    %1363 = vmatpush1.msra.mxu0 %v254
    %1364 = vmatprep.subr.mxu0 0.0
    %1365 = vmatpush1.msra.mxu0 0.0
    %1366 = vmatprep.subr.mxu0 0.0
    %1367 = vmatpush1.msra.mxu0 0.0
    %1368 = vmatprep.subr.mxu0 0.0
    %1369 = vmatpush1.msra.mxu0 0.0
    %1370 = vmatprep.subr.mxu0 0.0
    %1371 = vmatpush1.msra.mxu0 0.0
    %1372 = vmatprep.subr.mxu0 0.0
    %1373 = vmatpush1.msra.mxu0 0.0
    %1374 = vmatprep.subr.mxu0 0.0
    %1375 = vmatpush1.msra.mxu0 0.0
    %1376 = vmatprep.subr.mxu0 0.0
    %1377 = vmatpush1.msra.mxu0 0.0
    %1378 = vmatprep.subr.mxu0 0.0
    %1379 = vmatpush1.msra.mxu0 0.0
    %1380 = vmatprep.subr.mxu0 0.0
    %1381 = vmatpush1.msra.mxu0 0.0
    %1382 = vmatprep.subr.mxu0 0.0
    %1383 = vmatpush1.msra.mxu0 0.0
    %1384 = vmatprep.subr.mxu0 0.0
    %1385 = vmatpush1.msra.mxu0 0.0
    %1386 = vmatprep.subr.mxu0 0.0
    %1387 = vmatpush1.msra.mxu0 0.0
    %1388 = vmatprep.subr.mxu0 0.0
    %1389 = vmatpush1.msra.mxu0 0.0
    %1390 = vmatprep.subr.mxu0 0.0
    %1391 = vmatpush1.msra.mxu0 0.0
    %1392 = vmatprep.subr.mxu0 0.0
    %1393 = vmatpush1.msra.mxu0 0.0
    %1394 = vmatprep.subr.mxu0 0.0
    %1395 = vmatpush1.msra.mxu0 0.0
    %1396 = vmatprep.subr.mxu0 0.0
    %1397 = vmatpush1.msra.mxu0 0.0
    %1398 = vmatprep.subr.mxu0 0.0
    %1399 = vmatpush1.msra.mxu0 0.0
    %1400 = vmatprep.subr.mxu0 0.0
    %1401 = vmatpush1.msra.mxu0 0.0
    %1402 = vmatprep.subr.mxu0 0.0
    %1403 = vmatpush1.msra.mxu0 0.0
    %1404 = vmatprep.subr.mxu0 0.0
    %1405 = vmatpush1.msra.mxu0 0.0
    %1406 = vmatprep.subr.mxu0 0.0
    %1407 = vmatpush1.msra.mxu0 0.0
    %1408 = vmatprep.subr.mxu0 0.0
    %1409 = vmatpush1.msra.mxu0 0.0
    %1410 = vmatprep.subr.mxu0 0.0
    %1411 = vmatpush1.msra.mxu0 0.0
    %1412 = vmatprep.subr.mxu0 0.0
    %1413 = vmatpush1.msra.mxu0 0.0
    %1414 = vmatprep.subr.mxu0 0.0
    %1415 = vmatpush1.msra.mxu0 0.0
    %1416 = vmatprep.subr.mxu0 0.0
    %1417 = vmatpush1.msra.mxu0 0.0
    %1418 = vmatprep.subr.mxu0 0.0
    %1419 = vmatpush1.msra.mxu0 0.0
    %1420 = vmatprep.subr.mxu0 0.0
    %1421 = vmatpush1.msra.mxu0 0.0
    %1422 = vmatprep.subr.mxu0 0.0
    %1423 = vmatpush1.msra.mxu0 0.0
    %1424 = vmatprep.mubr.f32.mxu0 0.0
    %1425 = vmatmul.mubr.f32.gmra.mrb[0].mxu0 %v1358
    %v1426 = vpop.f32.mrb[0].mxu0
    %v1427 = vadd.f32 %v671, %v1426
    %v1428 = vpop.f32.mrb[0].mxu0
    %1429 = vdwg.mxu0
    %1430 = vst [vmem:[#allocation8 + $0x10] sm:$0xff] %v1427
    %1431 = vmatprep.subr.mxu0 0.0
    %1432 = vmatpush1.msra.mxu0 %v247
    %1433 = vmatprep.subr.mxu0 0.0
    %1434 = vmatpush1.msra.mxu0 %v248
    %1435 = vmatprep.subr.mxu0 0.0
    %1436 = vmatpush1.msra.mxu0 0.0
    %1437 = vmatprep.subr.mxu0 0.0
    %1438 = vmatpush1.msra.mxu0 0.0
    %1439 = vmatprep.subr.mxu0 0.0
    %1440 = vmatpush1.msra.mxu0 0.0
    %1441 = vmatprep.subr.mxu0 0.0
    %1442 = vmatpush1.msra.mxu0 0.0
    %1443 = vmatprep.subr.mxu0 0.0
    %1444 = vmatpush1.msra.mxu0 0.0
    %1445 = vmatprep.subr.mxu0 0.0
    %1446 = vmatpush1.msra.mxu0 0.0
    %1447 = vmatprep.subr.mxu0 0.0
    %1448 = vmatpush1.msra.mxu0 0.0
    %1449 = vmatprep.subr.mxu0 0.0
    %1450 = vmatpush1.msra.mxu0 0.0
    %1451 = vmatprep.subr.mxu0 0.0
    %1452 = vmatpush1.msra.mxu0 0.0
    %1453 = vmatprep.subr.mxu0 0.0
    %1454 = vmatpush1.msra.mxu0 0.0
    %1455 = vmatprep.subr.mxu0 0.0
    %1456 = vmatpush1.msra.mxu0 0.0
    %1457 = vmatprep.subr.mxu0 0.0
    %1458 = vmatpush1.msra.mxu0 0.0
    %1459 = vmatprep.subr.mxu0 0.0
    %1460 = vmatpush1.msra.mxu0 0.0
    %1461 = vmatprep.subr.mxu0 0.0
    %1462 = vmatpush1.msra.mxu0 0.0
    %1463 = vmatprep.subr.mxu0 0.0
    %1464 = vmatpush1.msra.mxu0 0.0
    %1465 = vmatprep.subr.mxu0 0.0
    %1466 = vmatpush1.msra.mxu0 0.0
    %1467 = vmatprep.subr.mxu0 0.0
    %1468 = vmatpush1.msra.mxu0 0.0
    %1469 = vmatprep.subr.mxu0 0.0
    %1470 = vmatpush1.msra.mxu0 0.0
    %1471 = vmatprep.subr.mxu0 0.0
    %1472 = vmatpush1.msra.mxu0 0.0
    %1473 = vmatprep.subr.mxu0 0.0
    %1474 = vmatpush1.msra.mxu0 0.0
    %1475 = vmatprep.subr.mxu0 0.0
    %1476 = vmatpush1.msra.mxu0 0.0
    %1477 = vmatprep.subr.mxu0 0.0
    %1478 = vmatpush1.msra.mxu0 0.0
    %1479 = vmatprep.subr.mxu0 0.0
    %1480 = vmatpush1.msra.mxu0 0.0
    %1481 = vmatprep.subr.mxu0 0.0
    %1482 = vmatpush1.msra.mxu0 0.0
    %1483 = vmatprep.subr.mxu0 0.0
    %1484 = vmatpush1.msra.mxu0 0.0
    %1485 = vmatprep.subr.mxu0 0.0
    %1486 = vmatpush1.msra.mxu0 0.0
    %1487 = vmatprep.subr.mxu0 0.0
    %1488 = vmatpush1.msra.mxu0 0.0
    %1489 = vmatprep.subr.mxu0 0.0
    %1490 = vmatpush1.msra.mxu0 0.0
    %1491 = vmatprep.subr.mxu0 0.0
    %1492 = vmatpush1.msra.mxu0 0.0
    %1493 = vmatprep.subr.mxu0 0.0
    %1494 = vmatpush1.msra.mxu0 0.0
    %1495 = vmatprep.mubr.f32.mxu0 0.0
    %1496 = vmatmul.mubr.f32.gmra.mrb[0].mxu0 %v1188
    %v1497 = vpop.f32.mrb[0].mxu0
    %v1498 = vadd.f32 0.0, %v1497
    %v1499 = vpop.f32.mrb[0].mxu0
    %1500 = vdwg.mxu0
    %v1501 = vadd.f32 %v369, %v1498
    %v1502 = vxor.u32 %v1501, 2147483648
    %v1503 = vmul.f32 %v1502, 1.442695
    %v1504 = vpow.pop %v1503
    %v1505 = vadd.f32 %v1504, 1.0
    %v1506 = vrcp.pop %v1505
    %v1507 = vmul.f32 1.0, %v1506
    %v1508 = vmul.f32 %v1507, %v1178
    %v1509 = vtanh.pop %v1501
    %1511 = vrot.lane.b32.xlu0 %v1509, 80
    %v1512 = vpop.permute.xlu0 %1511
    %v1514 = vmul.f32 %v1507, %v1512
    %1516 = vrot.lane.b32.xlu0 %v1514, 16
    %v1517 = vpop.permute.xlu0 %1516
    %v1519 = vadd.f32 %v1508, %v1517
    %v1520 = vtanh.pop %v1519
    %1522 = vrot.lane.b32.xlu0 %v1520, 16
    %v1523 = vpop.permute.xlu0 %1522
    %v1525 = vmul.f32 %v1507, %v1523
    %1527 = vrot.lane.b32.xlu0 %v1525, 96
    %v1528 = vpop.permute.xlu0 %1527
    %v1529 = vsel %vm392, %v1528, 0
    %1531 = vmatprep.subr.mxu0 0.0
    %1532 = vmatpush1.msra.mxu0 %v245
    %1533 = vmatprep.subr.mxu0 0.0
    %1534 = vmatpush1.msra.mxu0 %v246
    %1535 = vmatprep.subr.mxu0 0.0
    %1536 = vmatpush1.msra.mxu0 0.0
    %1537 = vmatprep.subr.mxu0 0.0
    %1538 = vmatpush1.msra.mxu0 0.0
    %1539 = vmatprep.subr.mxu0 0.0
    %1540 = vmatpush1.msra.mxu0 0.0
    %1541 = vmatprep.subr.mxu0 0.0
    %1542 = vmatpush1.msra.mxu0 0.0
    %1543 = vmatprep.subr.mxu0 0.0
    %1544 = vmatpush1.msra.mxu0 0.0
    %1545 = vmatprep.subr.mxu0 0.0
    %1546 = vmatpush1.msra.mxu0 0.0
    %1547 = vmatprep.subr.mxu0 0.0
    %1548 = vmatpush1.msra.mxu0 0.0
    %1549 = vmatprep.subr.mxu0 0.0
    %1550 = vmatpush1.msra.mxu0 0.0
    %1551 = vmatprep.subr.mxu0 0.0
    %1552 = vmatpush1.msra.mxu0 0.0
    %1553 = vmatprep.subr.mxu0 0.0
    %1554 = vmatpush1.msra.mxu0 0.0
    %1555 = vmatprep.subr.mxu0 0.0
    %1556 = vmatpush1.msra.mxu0 0.0
    %1557 = vmatprep.subr.mxu0 0.0
    %1558 = vmatpush1.msra.mxu0 0.0
    %1559 = vmatprep.subr.mxu0 0.0
    %1560 = vmatpush1.msra.mxu0 0.0
    %1561 = vmatprep.subr.mxu0 0.0
    %1562 = vmatpush1.msra.mxu0 0.0
    %1563 = vmatprep.subr.mxu0 0.0
    %1564 = vmatpush1.msra.mxu0 0.0
    %1565 = vmatprep.subr.mxu0 0.0
    %1566 = vmatpush1.msra.mxu0 0.0
    %1567 = vmatprep.subr.mxu0 0.0
    %1568 = vmatpush1.msra.mxu0 0.0
    %1569 = vmatprep.subr.mxu0 0.0
    %1570 = vmatpush1.msra.mxu0 0.0
    %1571 = vmatprep.subr.mxu0 0.0
    %1572 = vmatpush1.msra.mxu0 0.0
    %1573 = vmatprep.subr.mxu0 0.0
    %1574 = vmatpush1.msra.mxu0 0.0
    %1575 = vmatprep.subr.mxu0 0.0
    %1576 = vmatpush1.msra.mxu0 0.0
    %1577 = vmatprep.subr.mxu0 0.0
    %1578 = vmatpush1.msra.mxu0 0.0
    %1579 = vmatprep.subr.mxu0 0.0
    %1580 = vmatpush1.msra.mxu0 0.0
    %1581 = vmatprep.subr.mxu0 0.0
    %1582 = vmatpush1.msra.mxu0 0.0
    %1583 = vmatprep.subr.mxu0 0.0
    %1584 = vmatpush1.msra.mxu0 0.0
    %1585 = vmatprep.subr.mxu0 0.0
    %1586 = vmatpush1.msra.mxu0 0.0
    %1587 = vmatprep.subr.mxu0 0.0
    %1588 = vmatpush1.msra.mxu0 0.0
    %1589 = vmatprep.subr.mxu0 0.0
    %1590 = vmatpush1.msra.mxu0 0.0
    %1591 = vmatprep.subr.mxu0 0.0
    %1592 = vmatpush1.msra.mxu0 0.0
    %1593 = vmatprep.subr.mxu0 0.0
    %1594 = vmatpush1.msra.mxu0 0.0
    %1595 = vmatprep.mubr.f32.mxu0 0.0
    %1596 = vmatmul.mubr.f32.gmra.mrb[0].mxu0 %v1529
    %v1597 = vpop.f32.mrb[0].mxu0
    %v1598 = vadd.f32 %v495, %v1597
    %v1599 = vpop.f32.mrb[0].mxu0
    %1600 = vdwg.mxu0
    %1601 = vmatprep.subr.mxu0 0.0
    %1602 = vmatpush1.msra.mxu0 %v249
    %1603 = vmatprep.subr.mxu0 0.0
    %1604 = vmatpush1.msra.mxu0 %v250
    %1605 = vmatprep.subr.mxu0 0.0
    %1606 = vmatpush1.msra.mxu0 0.0
    %1607 = vmatprep.subr.mxu0 0.0
    %1608 = vmatpush1.msra.mxu0 0.0
    %1609 = vmatprep.subr.mxu0 0.0
    %1610 = vmatpush1.msra.mxu0 0.0
    %1611 = vmatprep.subr.mxu0 0.0
    %1612 = vmatpush1.msra.mxu0 0.0
    %1613 = vmatprep.subr.mxu0 0.0
    %1614 = vmatpush1.msra.mxu0 0.0
    %1615 = vmatprep.subr.mxu0 0.0
    %1616 = vmatpush1.msra.mxu0 0.0
    %1617 = vmatprep.subr.mxu0 0.0
    %1618 = vmatpush1.msra.mxu0 0.0
    %1619 = vmatprep.subr.mxu0 0.0
    %1620 = vmatpush1.msra.mxu0 0.0
    %1621 = vmatprep.subr.mxu0 0.0
    %1622 = vmatpush1.msra.mxu0 0.0
    %1623 = vmatprep.subr.mxu0 0.0
    %1624 = vmatpush1.msra.mxu0 0.0
    %1625 = vmatprep.subr.mxu0 0.0
    %1626 = vmatpush1.msra.mxu0 0.0
    %1627 = vmatprep.subr.mxu0 0.0
    %1628 = vmatpush1.msra.mxu0 0.0
    %1629 = vmatprep.subr.mxu0 0.0
    %1630 = vmatpush1.msra.mxu0 0.0
    %1631 = vmatprep.subr.mxu0 0.0
    %1632 = vmatpush1.msra.mxu0 0.0
    %1633 = vmatprep.subr.mxu0 0.0
    %1634 = vmatpush1.msra.mxu0 0.0
    %1635 = vmatprep.subr.mxu0 0.0
    %1636 = vmatpush1.msra.mxu0 0.0
    %1637 = vmatprep.subr.mxu0 0.0
    %1638 = vmatpush1.msra.mxu0 0.0
    %1639 = vmatprep.subr.mxu0 0.0
    %1640 = vmatpush1.msra.mxu0 0.0
    %1641 = vmatprep.subr.mxu0 0.0
    %1642 = vmatpush1.msra.mxu0 0.0
    %1643 = vmatprep.subr.mxu0 0.0
    %1644 = vmatpush1.msra.mxu0 0.0
    %1645 = vmatprep.subr.mxu0 0.0
    %1646 = vmatpush1.msra.mxu0 0.0
    %1647 = vmatprep.subr.mxu0 0.0
    %1648 = vmatpush1.msra.mxu0 0.0
    %1649 = vmatprep.subr.mxu0 0.0
    %1650 = vmatpush1.msra.mxu0 0.0
    %1651 = vmatprep.subr.mxu0 0.0
    %1652 = vmatpush1.msra.mxu0 0.0
    %1653 = vmatprep.subr.mxu0 0.0
    %1654 = vmatpush1.msra.mxu0 0.0
    %1655 = vmatprep.subr.mxu0 0.0
    %1656 = vmatpush1.msra.mxu0 0.0
    %1657 = vmatprep.subr.mxu0 0.0
    %1658 = vmatpush1.msra.mxu0 0.0
    %1659 = vmatprep.subr.mxu0 0.0
    %1660 = vmatpush1.msra.mxu0 0.0
    %1661 = vmatprep.subr.mxu0 0.0
    %1662 = vmatpush1.msra.mxu0 0.0
    %1663 = vmatprep.subr.mxu0 0.0
    %1664 = vmatpush1.msra.mxu0 0.0
    %1665 = vmatprep.mubr.f32.mxu0 0.0
    %1666 = vmatmul.mubr.f32.gmra.mrb[0].mxu0 %v1358
    %v1667 = vpop.f32.mrb[0].mxu0
    %v1668 = vadd.f32 0.0, %v1667
    %v1669 = vpop.f32.mrb[0].mxu0
    %1670 = vdwg.mxu0
    %v1671 = vadd.f32 %v1598, %v1668
    %v1672 = vxor.u32 %v1671, 2147483648
    %v1673 = vmul.f32 %v1672, 1.442695
    %v1674 = vpow.pop %v1673
    %v1675 = vadd.f32 %v1674, 1.0
    %v1676 = vrcp.pop %v1675
    %v1677 = vmul.f32 1.0, %v1676
    %v1678 = vmul.f32 %v1677, %v1348
    %v1679 = vtanh.pop %v1671
    %1681 = vrot.lane.b32.xlu0 %v1679, 80
    %v1682 = vpop.permute.xlu0 %1681
    %v1684 = vmul.f32 %v1677, %v1682
    %1686 = vrot.lane.b32.xlu0 %v1684, 16
    %v1687 = vpop.permute.xlu0 %1686
    %v1689 = vadd.f32 %v1678, %v1687
    %v1690 = vtanh.pop %v1689
    %1692 = vrot.lane.b32.xlu0 %v1690, 16
    %v1693 = vpop.permute.xlu0 %1692
    %v1695 = vmul.f32 %v1677, %v1693
    %1697 = vrot.lane.b32.xlu0 %v1695, 96
    %v1698 = vpop.permute.xlu0 %1697
    %v1699 = vsel %vm392, %v1698, 0
    %1701 = vmatprep.subr.mxu0 0.0
    %1702 = vmatpush1.msra.mxu0 %v253
    %1703 = vmatprep.subr.mxu0 0.0
    %1704 = vmatpush1.msra.mxu0 %v254
    %1705 = vmatprep.subr.mxu0 0.0
    %1706 = vmatpush1.msra.mxu0 0.0
    %1707 = vmatprep.subr.mxu0 0.0
    %1708 = vmatpush1.msra.mxu0 0.0
    %1709 = vmatprep.subr.mxu0 0.0
    %1710 = vmatpush1.msra.mxu0 0.0
    %1711 = vmatprep.subr.mxu0 0.0
    %1712 = vmatpush1.msra.mxu0 0.0
    %1713 = vmatprep.subr.mxu0 0.0
    %1714 = vmatpush1.msra.mxu0 0.0
    %1715 = vmatprep.subr.mxu0 0.0
    %1716 = vmatpush1.msra.mxu0 0.0
    %1717 = vmatprep.subr.mxu0 0.0
    %1718 = vmatpush1.msra.mxu0 0.0
    %1719 = vmatprep.subr.mxu0 0.0
    %1720 = vmatpush1.msra.mxu0 0.0
    %1721 = vmatprep.subr.mxu0 0.0
    %1722 = vmatpush1.msra.mxu0 0.0
    %1723 = vmatprep.subr.mxu0 0.0
    %1724 = vmatpush1.msra.mxu0 0.0
    %1725 = vmatprep.subr.mxu0 0.0
    %1726 = vmatpush1.msra.mxu0 0.0
    %1727 = vmatprep.subr.mxu0 0.0
    %1728 = vmatpush1.msra.mxu0 0.0
    %1729 = vmatprep.subr.mxu0 0.0
    %1730 = vmatpush1.msra.mxu0 0.0
    %1731 = vmatprep.subr.mxu0 0.0
    %1732 = vmatpush1.msra.mxu0 0.0
    %1733 = vmatprep.subr.mxu0 0.0
    %1734 = vmatpush1.msra.mxu0 0.0
    %1735 = vmatprep.subr.mxu0 0.0
    %1736 = vmatpush1.msra.mxu0 0.0
    %1737 = vmatprep.subr.mxu0 0.0
    %1738 = vmatpush1.msra.mxu0 0.0
    %1739 = vmatprep.subr.mxu0 0.0
    %1740 = vmatpush1.msra.mxu0 0.0
    %1741 = vmatprep.subr.mxu0 0.0
    %1742 = vmatpush1.msra.mxu0 0.0
    %1743 = vmatprep.subr.mxu0 0.0
    %1744 = vmatpush1.msra.mxu0 0.0
    %1745 = vmatprep.subr.mxu0 0.0
    %1746 = vmatpush1.msra.mxu0 0.0
    %1747 = vmatprep.subr.mxu0 0.0
    %1748 = vmatpush1.msra.mxu0 0.0
    %1749 = vmatprep.subr.mxu0 0.0
    %1750 = vmatpush1.msra.mxu0 0.0
    %1751 = vmatprep.subr.mxu0 0.0
    %1752 = vmatpush1.msra.mxu0 0.0
    %1753 = vmatprep.subr.mxu0 0.0
    %1754 = vmatpush1.msra.mxu0 0.0
    %1755 = vmatprep.subr.mxu0 0.0
    %1756 = vmatpush1.msra.mxu0 0.0
    %1757 = vmatprep.subr.mxu0 0.0
    %1758 = vmatpush1.msra.mxu0 0.0
    %1759 = vmatprep.subr.mxu0 0.0
    %1760 = vmatpush1.msra.mxu0 0.0
    %1761 = vmatprep.subr.mxu0 0.0
    %1762 = vmatpush1.msra.mxu0 0.0
    %1763 = vmatprep.subr.mxu0 0.0
    %1764 = vmatpush1.msra.mxu0 0.0
    %1765 = vmatprep.mubr.f32.mxu0 0.0
    %1766 = vmatmul.mubr.f32.gmra.mrb[0].mxu0 %v1699
    %v1767 = vpop.f32.mrb[0].mxu0
    %v1768 = vadd.f32 %v671, %v1767
    %v1769 = vpop.f32.mrb[0].mxu0
    %1770 = vdwg.mxu0
    %1771 = vst [vmem:[#allocation8 + $0x18] sm:$0xff] %v1768
    %1772 = vmatprep.subr.mxu0 0.0
    %1773 = vmatpush1.msra.mxu0 %v247
    %1774 = vmatprep.subr.mxu0 0.0
    %1775 = vmatpush1.msra.mxu0 %v248
    %1776 = vmatprep.subr.mxu0 0.0
    %1777 = vmatpush1.msra.mxu0 0.0
    %1778 = vmatprep.subr.mxu0 0.0
    %1779 = vmatpush1.msra.mxu0 0.0
    %1780 = vmatprep.subr.mxu0 0.0
    %1781 = vmatpush1.msra.mxu0 0.0
    %1782 = vmatprep.subr.mxu0 0.0
    %1783 = vmatpush1.msra.mxu0 0.0
    %1784 = vmatprep.subr.mxu0 0.0
    %1785 = vmatpush1.msra.mxu0 0.0
    %1786 = vmatprep.subr.mxu0 0.0
    %1787 = vmatpush1.msra.mxu0 0.0
    %1788 = vmatprep.subr.mxu0 0.0
    %1789 = vmatpush1.msra.mxu0 0.0
    %1790 = vmatprep.subr.mxu0 0.0
    %1791 = vmatpush1.msra.mxu0 0.0
    %1792 = vmatprep.subr.mxu0 0.0
    %1793 = vmatpush1.msra.mxu0 0.0
    %1794 = vmatprep.subr.mxu0 0.0
    %1795 = vmatpush1.msra.mxu0 0.0
    %1796 = vmatprep.subr.mxu0 0.0
    %1797 = vmatpush1.msra.mxu0 0.0
    %1798 = vmatprep.subr.mxu0 0.0
    %1799 = vmatpush1.msra.mxu0 0.0
    %1800 = vmatprep.subr.mxu0 0.0
    %1801 = vmatpush1.msra.mxu0 0.0
    %1802 = vmatprep.subr.mxu0 0.0
    %1803 = vmatpush1.msra.mxu0 0.0
    %1804 = vmatprep.subr.mxu0 0.0
    %1805 = vmatpush1.msra.mxu0 0.0
    %1806 = vmatprep.subr.mxu0 0.0
    %1807 = vmatpush1.msra.mxu0 0.0
    %1808 = vmatprep.subr.mxu0 0.0
    %1809 = vmatpush1.msra.mxu0 0.0
    %1810 = vmatprep.subr.mxu0 0.0
    %1811 = vmatpush1.msra.mxu0 0.0
    %1812 = vmatprep.subr.mxu0 0.0
    %1813 = vmatpush1.msra.mxu0 0.0
    %1814 = vmatprep.subr.mxu0 0.0
    %1815 = vmatpush1.msra.mxu0 0.0
    %1816 = vmatprep.subr.mxu0 0.0
    %1817 = vmatpush1.msra.mxu0 0.0
    %1818 = vmatprep.subr.mxu0 0.0
    %1819 = vmatpush1.msra.mxu0 0.0
    %1820 = vmatprep.subr.mxu0 0.0
    %1821 = vmatpush1.msra.mxu0 0.0
    %1822 = vmatprep.subr.mxu0 0.0
    %1823 = vmatpush1.msra.mxu0 0.0
    %1824 = vmatprep.subr.mxu0 0.0
    %1825 = vmatpush1.msra.mxu0 0.0
    %1826 = vmatprep.subr.mxu0 0.0
    %1827 = vmatpush1.msra.mxu0 0.0
    %1828 = vmatprep.subr.mxu0 0.0
    %1829 = vmatpush1.msra.mxu0 0.0
    %1830 = vmatprep.subr.mxu0 0.0
    %1831 = vmatpush1.msra.mxu0 0.0
    %1832 = vmatprep.subr.mxu0 0.0
    %1833 = vmatpush1.msra.mxu0 0.0
    %1834 = vmatprep.subr.mxu0 0.0
    %1835 = vmatpush1.msra.mxu0 0.0
    %1836 = vmatprep.mubr.f32.mxu0 0.0
    %1837 = vmatmul.mubr.f32.gmra.mrb[0].mxu0 %v1529
    %v1838 = vpop.f32.mrb[0].mxu0
    %v1839 = vadd.f32 0.0, %v1838
    %v1840 = vpop.f32.mrb[0].mxu0
    %1841 = vdwg.mxu0
    %v1842 = vadd.f32 %v374, %v1839
    %v1843 = vxor.u32 %v1842, 2147483648
    %v1844 = vmul.f32 %v1843, 1.442695
    %v1845 = vpow.pop %v1844
    %v1846 = vadd.f32 %v1845, 1.0
    %v1847 = vrcp.pop %v1846
    %v1848 = vmul.f32 1.0, %v1847
    %v1849 = vmul.f32 %v1848, %v1519
    %v1850 = vtanh.pop %v1842
    %1852 = vrot.lane.b32.xlu0 %v1850, 80
    %v1853 = vpop.permute.xlu0 %1852
    %v1855 = vmul.f32 %v1848, %v1853
    %1857 = vrot.lane.b32.xlu0 %v1855, 16
    %v1858 = vpop.permute.xlu0 %1857
    %v1860 = vadd.f32 %v1849, %v1858
    %v1861 = vtanh.pop %v1860
    %1863 = vrot.lane.b32.xlu0 %v1861, 16
    %v1864 = vpop.permute.xlu0 %1863
    %v1866 = vmul.f32 %v1848, %v1864
    %1868 = vrot.lane.b32.xlu0 %v1866, 96
    %v1869 = vpop.permute.xlu0 %1868
    %v1870 = vsel %vm392, %v1869, 0
    %1872 = vmatprep.subr.mxu0 0.0
    %1873 = vmatpush1.msra.mxu0 %v245
    %1874 = vmatprep.subr.mxu0 0.0
    %1875 = vmatpush1.msra.mxu0 %v246
    %1876 = vmatprep.subr.mxu0 0.0
    %1877 = vmatpush1.msra.mxu0 0.0
    %1878 = vmatprep.subr.mxu0 0.0
    %1879 = vmatpush1.msra.mxu0 0.0
    %1880 = vmatprep.subr.mxu0 0.0
    %1881 = vmatpush1.msra.mxu0 0.0
    %1882 = vmatprep.subr.mxu0 0.0
    %1883 = vmatpush1.msra.mxu0 0.0
    %1884 = vmatprep.subr.mxu0 0.0
    %1885 = vmatpush1.msra.mxu0 0.0
    %1886 = vmatprep.subr.mxu0 0.0
    %1887 = vmatpush1.msra.mxu0 0.0
    %1888 = vmatprep.subr.mxu0 0.0
    %1889 = vmatpush1.msra.mxu0 0.0
    %1890 = vmatprep.subr.mxu0 0.0
    %1891 = vmatpush1.msra.mxu0 0.0
    %1892 = vmatprep.subr.mxu0 0.0
    %1893 = vmatpush1.msra.mxu0 0.0
    %1894 = vmatprep.subr.mxu0 0.0
    %1895 = vmatpush1.msra.mxu0 0.0
    %1896 = vmatprep.subr.mxu0 0.0
    %1897 = vmatpush1.msra.mxu0 0.0
    %1898 = vmatprep.subr.mxu0 0.0
    %1899 = vmatpush1.msra.mxu0 0.0
    %1900 = vmatprep.subr.mxu0 0.0
    %1901 = vmatpush1.msra.mxu0 0.0
    %1902 = vmatprep.subr.mxu0 0.0
    %1903 = vmatpush1.msra.mxu0 0.0
    %1904 = vmatprep.subr.mxu0 0.0
    %1905 = vmatpush1.msra.mxu0 0.0
    %1906 = vmatprep.subr.mxu0 0.0
    %1907 = vmatpush1.msra.mxu0 0.0
    %1908 = vmatprep.subr.mxu0 0.0
    %1909 = vmatpush1.msra.mxu0 0.0
    %1910 = vmatprep.subr.mxu0 0.0
    %1911 = vmatpush1.msra.mxu0 0.0
    %1912 = vmatprep.subr.mxu0 0.0
    %1913 = vmatpush1.msra.mxu0 0.0
    %1914 = vmatprep.subr.mxu0 0.0
    %1915 = vmatpush1.msra.mxu0 0.0
    %1916 = vmatprep.subr.mxu0 0.0
    %1917 = vmatpush1.msra.mxu0 0.0
    %1918 = vmatprep.subr.mxu0 0.0
    %1919 = vmatpush1.msra.mxu0 0.0
    %1920 = vmatprep.subr.mxu0 0.0
    %1921 = vmatpush1.msra.mxu0 0.0
    %1922 = vmatprep.subr.mxu0 0.0
    %1923 = vmatpush1.msra.mxu0 0.0
    %1924 = vmatprep.subr.mxu0 0.0
    %1925 = vmatpush1.msra.mxu0 0.0
    %1926 = vmatprep.subr.mxu0 0.0
    %1927 = vmatpush1.msra.mxu0 0.0
    %1928 = vmatprep.subr.mxu0 0.0
    %1929 = vmatpush1.msra.mxu0 0.0
    %1930 = vmatprep.subr.mxu0 0.0
    %1931 = vmatpush1.msra.mxu0 0.0
    %1932 = vmatprep.subr.mxu0 0.0
    %1933 = vmatpush1.msra.mxu0 0.0
    %1934 = vmatprep.subr.mxu0 0.0
    %1935 = vmatpush1.msra.mxu0 0.0
    %1936 = vmatprep.mubr.f32.mxu0 0.0
    %1937 = vmatmul.mubr.f32.gmra.mrb[0].mxu0 %v1870
    %v1938 = vpop.f32.mrb[0].mxu0
    %v1939 = vadd.f32 %v495, %v1938
    %v1940 = vpop.f32.mrb[0].mxu0
    %1941 = vdwg.mxu0
    %1942 = vmatprep.subr.mxu0 0.0
    %1943 = vmatpush1.msra.mxu0 %v249
    %1944 = vmatprep.subr.mxu0 0.0
    %1945 = vmatpush1.msra.mxu0 %v250
    %1946 = vmatprep.subr.mxu0 0.0
    %1947 = vmatpush1.msra.mxu0 0.0
    %1948 = vmatprep.subr.mxu0 0.0
    %1949 = vmatpush1.msra.mxu0 0.0
    %1950 = vmatprep.subr.mxu0 0.0
    %1951 = vmatpush1.msra.mxu0 0.0
    %1952 = vmatprep.subr.mxu0 0.0
    %1953 = vmatpush1.msra.mxu0 0.0
    %1954 = vmatprep.subr.mxu0 0.0
    %1955 = vmatpush1.msra.mxu0 0.0
    %1956 = vmatprep.subr.mxu0 0.0
    %1957 = vmatpush1.msra.mxu0 0.0
    %1958 = vmatprep.subr.mxu0 0.0
    %1959 = vmatpush1.msra.mxu0 0.0
    %1960 = vmatprep.subr.mxu0 0.0
    %1961 = vmatpush1.msra.mxu0 0.0
    %1962 = vmatprep.subr.mxu0 0.0
    %1963 = vmatpush1.msra.mxu0 0.0
    %1964 = vmatprep.subr.mxu0 0.0
    %1965 = vmatpush1.msra.mxu0 0.0
    %1966 = vmatprep.subr.mxu0 0.0
    %1967 = vmatpush1.msra.mxu0 0.0
    %1968 = vmatprep.subr.mxu0 0.0
    %1969 = vmatpush1.msra.mxu0 0.0
    %1970 = vmatprep.subr.mxu0 0.0
    %1971 = vmatpush1.msra.mxu0 0.0
    %1972 = vmatprep.subr.mxu0 0.0
    %1973 = vmatpush1.msra.mxu0 0.0
    %1974 = vmatprep.subr.mxu0 0.0
    %1975 = vmatpush1.msra.mxu0 0.0
    %1976 = vmatprep.subr.mxu0 0.0
    %1977 = vmatpush1.msra.mxu0 0.0
    %1978 = vmatprep.subr.mxu0 0.0
    %1979 = vmatpush1.msra.mxu0 0.0
    %1980 = vmatprep.subr.mxu0 0.0
    %1981 = vmatpush1.msra.mxu0 0.0
    %1982 = vmatprep.subr.mxu0 0.0
    %1983 = vmatpush1.msra.mxu0 0.0
    %1984 = vmatprep.subr.mxu0 0.0
    %1985 = vmatpush1.msra.mxu0 0.0
    %1986 = vmatprep.subr.mxu0 0.0
    %1987 = vmatpush1.msra.mxu0 0.0
    %1988 = vmatprep.subr.mxu0 0.0
    %1989 = vmatpush1.msra.mxu0 0.0
    %1990 = vmatprep.subr.mxu0 0.0
    %1991 = vmatpush1.msra.mxu0 0.0
    %1992 = vmatprep.subr.mxu0 0.0
    %1993 = vmatpush1.msra.mxu0 0.0
    %1994 = vmatprep.subr.mxu0 0.0
    %1995 = vmatpush1.msra.mxu0 0.0
    %1996 = vmatprep.subr.mxu0 0.0
    %1997 = vmatpush1.msra.mxu0 0.0
    %1998 = vmatprep.subr.mxu0 0.0
    %1999 = vmatpush1.msra.mxu0 0.0
    %2000 = vmatprep.subr.mxu0 0.0
    %2001 = vmatpush1.msra.mxu0 0.0
    %2002 = vmatprep.subr.mxu0 0.0
    %2003 = vmatpush1.msra.mxu0 0.0
    %2004 = vmatprep.subr.mxu0 0.0
    %2005 = vmatpush1.msra.mxu0 0.0
    %2006 = vmatprep.mubr.f32.mxu0 0.0
    %2007 = vmatmul.mubr.f32.gmra.mrb[0].mxu0 %v1699
    %v2008 = vpop.f32.mrb[0].mxu0
    %v2009 = vadd.f32 0.0, %v2008
    %v2010 = vpop.f32.mrb[0].mxu0
    %2011 = vdwg.mxu0
    %v2012 = vadd.f32 %v1939, %v2009
    %v2013 = vxor.u32 %v2012, 2147483648
    %v2014 = vmul.f32 %v2013, 1.442695
    %v2015 = vpow.pop %v2014
    %v2016 = vadd.f32 %v2015, 1.0
    %v2017 = vrcp.pop %v2016
    %v2018 = vmul.f32 1.0, %v2017
    %v2019 = vmul.f32 %v2018, %v1689
    %v2020 = vtanh.pop %v2012
    %2022 = vrot.lane.b32.xlu0 %v2020, 80
    %v2023 = vpop.permute.xlu0 %2022
    %v2025 = vmul.f32 %v2018, %v2023
    %2027 = vrot.lane.b32.xlu0 %v2025, 16
    %v2028 = vpop.permute.xlu0 %2027
    %v2030 = vadd.f32 %v2019, %v2028
    %v2031 = vtanh.pop %v2030
    %2033 = vrot.lane.b32.xlu0 %v2031, 16
    %v2034 = vpop.permute.xlu0 %2033
    %v2036 = vmul.f32 %v2018, %v2034
    %2038 = vrot.lane.b32.xlu0 %v2036, 96
    %v2039 = vpop.permute.xlu0 %2038
    %v2040 = vsel %vm392, %v2039, 0
    %2042 = vmatprep.subr.mxu0 0.0
    %2043 = vmatpush1.msra.mxu0 %v253
    %2044 = vmatprep.subr.mxu0 0.0
    %2045 = vmatpush1.msra.mxu0 %v254
    %2046 = vmatprep.subr.mxu0 0.0
    %2047 = vmatpush1.msra.mxu0 0.0
    %2048 = vmatprep.subr.mxu0 0.0
    %2049 = vmatpush1.msra.mxu0 0.0
    %2050 = vmatprep.subr.mxu0 0.0
    %2051 = vmatpush1.msra.mxu0 0.0
    %2052 = vmatprep.subr.mxu0 0.0
    %2053 = vmatpush1.msra.mxu0 0.0
    %2054 = vmatprep.subr.mxu0 0.0
    %2055 = vmatpush1.msra.mxu0 0.0
    %2056 = vmatprep.subr.mxu0 0.0
    %2057 = vmatpush1.msra.mxu0 0.0
    %2058 = vmatprep.subr.mxu0 0.0
    %2059 = vmatpush1.msra.mxu0 0.0
    %2060 = vmatprep.subr.mxu0 0.0
    %2061 = vmatpush1.msra.mxu0 0.0
    %2062 = vmatprep.subr.mxu0 0.0
    %2063 = vmatpush1.msra.mxu0 0.0
    %2064 = vmatprep.subr.mxu0 0.0
    %2065 = vmatpush1.msra.mxu0 0.0
    %2066 = vmatprep.subr.mxu0 0.0
    %2067 = vmatpush1.msra.mxu0 0.0
    %2068 = vmatprep.subr.mxu0 0.0
    %2069 = vmatpush1.msra.mxu0 0.0
    %2070 = vmatprep.subr.mxu0 0.0
    %2071 = vmatpush1.msra.mxu0 0.0
    %2072 = vmatprep.subr.mxu0 0.0
    %2073 = vmatpush1.msra.mxu0 0.0
    %2074 = vmatprep.subr.mxu0 0.0
    %2075 = vmatpush1.msra.mxu0 0.0
    %2076 = vmatprep.subr.mxu0 0.0
    %2077 = vmatpush1.msra.mxu0 0.0
    %2078 = vmatprep.subr.mxu0 0.0
    %2079 = vmatpush1.msra.mxu0 0.0
    %2080 = vmatprep.subr.mxu0 0.0
    %2081 = vmatpush1.msra.mxu0 0.0
    %2082 = vmatprep.subr.mxu0 0.0
    %2083 = vmatpush1.msra.mxu0 0.0
    %2084 = vmatprep.subr.mxu0 0.0
    %2085 = vmatpush1.msra.mxu0 0.0
    %2086 = vmatprep.subr.mxu0 0.0
    %2087 = vmatpush1.msra.mxu0 0.0
    %2088 = vmatprep.subr.mxu0 0.0
    %2089 = vmatpush1.msra.mxu0 0.0
    %2090 = vmatprep.subr.mxu0 0.0
    %2091 = vmatpush1.msra.mxu0 0.0
    %2092 = vmatprep.subr.mxu0 0.0
    %2093 = vmatpush1.msra.mxu0 0.0
    %2094 = vmatprep.subr.mxu0 0.0
    %2095 = vmatpush1.msra.mxu0 0.0
    %2096 = vmatprep.subr.mxu0 0.0
    %2097 = vmatpush1.msra.mxu0 0.0
    %2098 = vmatprep.subr.mxu0 0.0
    %2099 = vmatpush1.msra.mxu0 0.0
    %2100 = vmatprep.subr.mxu0 0.0
    %2101 = vmatpush1.msra.mxu0 0.0
    %2102 = vmatprep.subr.mxu0 0.0
    %2103 = vmatpush1.msra.mxu0 0.0
    %2104 = vmatprep.subr.mxu0 0.0
    %2105 = vmatpush1.msra.mxu0 0.0
    %2106 = vmatprep.mubr.f32.mxu0 0.0
    %2107 = vmatmul.mubr.f32.gmra.mrb[0].mxu0 %v2040
    %v2108 = vpop.f32.mrb[0].mxu0
    %v2109 = vadd.f32 %v671, %v2108
    %v2110 = vpop.f32.mrb[0].mxu0
    %2111 = vdwg.mxu0
    %2112 = vst [vmem:[#allocation8 + $0x20] sm:$0xff] %v2109
    %2113 = vmatprep.subr.mxu0 0.0
    %2114 = vmatpush1.msra.mxu0 %v247
    %2115 = vmatprep.subr.mxu0 0.0
    %2116 = vmatpush1.msra.mxu0 %v248
    %2117 = vmatprep.subr.mxu0 0.0
    %2118 = vmatpush1.msra.mxu0 0.0
    %2119 = vmatprep.subr.mxu0 0.0
    %2120 = vmatpush1.msra.mxu0 0.0
    %2121 = vmatprep.subr.mxu0 0.0
    %2122 = vmatpush1.msra.mxu0 0.0
    %2123 = vmatprep.subr.mxu0 0.0
    %2124 = vmatpush1.msra.mxu0 0.0
    %2125 = vmatprep.subr.mxu0 0.0
    %2126 = vmatpush1.msra.mxu0 0.0
    %2127 = vmatprep.subr.mxu0 0.0
    %2128 = vmatpush1.msra.mxu0 0.0
    %2129 = vmatprep.subr.mxu0 0.0
    %2130 = vmatpush1.msra.mxu0 0.0
    %2131 = vmatprep.subr.mxu0 0.0
    %2132 = vmatpush1.msra.mxu0 0.0
    %2133 = vmatprep.subr.mxu0 0.0
    %2134 = vmatpush1.msra.mxu0 0.0
    %2135 = vmatprep.subr.mxu0 0.0
    %2136 = vmatpush1.msra.mxu0 0.0
    %2137 = vmatprep.subr.mxu0 0.0
    %2138 = vmatpush1.msra.mxu0 0.0
    %2139 = vmatprep.subr.mxu0 0.0
    %2140 = vmatpush1.msra.mxu0 0.0
    %2141 = vmatprep.subr.mxu0 0.0
    %2142 = vmatpush1.msra.mxu0 0.0
    %2143 = vmatprep.subr.mxu0 0.0
    %2144 = vmatpush1.msra.mxu0 0.0
    %2145 = vmatprep.subr.mxu0 0.0
    %2146 = vmatpush1.msra.mxu0 0.0
    %2147 = vmatprep.subr.mxu0 0.0
    %2148 = vmatpush1.msra.mxu0 0.0
    %2149 = vmatprep.subr.mxu0 0.0
    %2150 = vmatpush1.msra.mxu0 0.0
    %2151 = vmatprep.subr.mxu0 0.0
    %2152 = vmatpush1.msra.mxu0 0.0
    %2153 = vmatprep.subr.mxu0 0.0
    %2154 = vmatpush1.msra.mxu0 0.0
    %2155 = vmatprep.subr.mxu0 0.0
    %2156 = vmatpush1.msra.mxu0 0.0
    %2157 = vmatprep.subr.mxu0 0.0
    %2158 = vmatpush1.msra.mxu0 0.0
    %2159 = vmatprep.subr.mxu0 0.0
    %2160 = vmatpush1.msra.mxu0 0.0
    %2161 = vmatprep.subr.mxu0 0.0
    %2162 = vmatpush1.msra.mxu0 0.0
    %2163 = vmatprep.subr.mxu0 0.0
    %2164 = vmatpush1.msra.mxu0 0.0
    %2165 = vmatprep.subr.mxu0 0.0
    %2166 = vmatpush1.msra.mxu0 0.0
    %2167 = vmatprep.subr.mxu0 0.0
    %2168 = vmatpush1.msra.mxu0 0.0
    %2169 = vmatprep.subr.mxu0 0.0
    %2170 = vmatpush1.msra.mxu0 0.0
    %2171 = vmatprep.subr.mxu0 0.0
    %2172 = vmatpush1.msra.mxu0 0.0
    %2173 = vmatprep.subr.mxu0 0.0
    %2174 = vmatpush1.msra.mxu0 0.0
    %2175 = vmatprep.subr.mxu0 0.0
    %2176 = vmatpush1.msra.mxu0 0.0
    %2177 = vmatprep.mubr.f32.mxu0 0.0
    %2178 = vmatmul.mubr.f32.gmra.mrb[0].mxu0 %v1870
    %v2179 = vpop.f32.mrb[0].mxu0
    %v2180 = vadd.f32 0.0, %v2179
    %v2181 = vpop.f32.mrb[0].mxu0
    %2182 = vdwg.mxu0
    %v2183 = vadd.f32 %v379, %v2180
    %v2184 = vxor.u32 %v2183, 2147483648
    %v2185 = vmul.f32 %v2184, 1.442695
    %v2186 = vpow.pop %v2185
    %v2187 = vadd.f32 %v2186, 1.0
    %v2188 = vrcp.pop %v2187
    %v2189 = vmul.f32 1.0, %v2188
    %v2190 = vmul.f32 %v2189, %v1860
    %v2191 = vtanh.pop %v2183
    %2193 = vrot.lane.b32.xlu0 %v2191, 80
    %v2194 = vpop.permute.xlu0 %2193
    %v2196 = vmul.f32 %v2189, %v2194
    %2198 = vrot.lane.b32.xlu0 %v2196, 16
    %v2199 = vpop.permute.xlu0 %2198
    %v2201 = vadd.f32 %v2190, %v2199
    %v2202 = vtanh.pop %v2201
    %2204 = vrot.lane.b32.xlu0 %v2202, 16
    %v2205 = vpop.permute.xlu0 %2204
    %v2207 = vmul.f32 %v2189, %v2205
    %2209 = vrot.lane.b32.xlu0 %v2207, 96
    %v2210 = vpop.permute.xlu0 %2209
    %v2211 = vsel %vm392, %v2210, 0
    %2213 = vmatprep.subr.mxu0 0.0
    %2214 = vmatpush1.msra.mxu0 %v245
    %2215 = vmatprep.subr.mxu0 0.0
    %2216 = vmatpush1.msra.mxu0 %v246
    %2217 = vmatprep.subr.mxu0 0.0
    %2218 = vmatpush1.msra.mxu0 0.0
    %2219 = vmatprep.subr.mxu0 0.0
    %2220 = vmatpush1.msra.mxu0 0.0
    %2221 = vmatprep.subr.mxu0 0.0
    %2222 = vmatpush1.msra.mxu0 0.0
    %2223 = vmatprep.subr.mxu0 0.0
    %2224 = vmatpush1.msra.mxu0 0.0
    %2225 = vmatprep.subr.mxu0 0.0
    %2226 = vmatpush1.msra.mxu0 0.0
    %2227 = vmatprep.subr.mxu0 0.0
    %2228 = vmatpush1.msra.mxu0 0.0
    %2229 = vmatprep.subr.mxu0 0.0
    %2230 = vmatpush1.msra.mxu0 0.0
    %2231 = vmatprep.subr.mxu0 0.0
    %2232 = vmatpush1.msra.mxu0 0.0
    %2233 = vmatprep.subr.mxu0 0.0
    %2234 = vmatpush1.msra.mxu0 0.0
    %2235 = vmatprep.subr.mxu0 0.0
    %2236 = vmatpush1.msra.mxu0 0.0
    %2237 = vmatprep.subr.mxu0 0.0
    %2238 = vmatpush1.msra.mxu0 0.0
    %2239 = vmatprep.subr.mxu0 0.0
    %2240 = vmatpush1.msra.mxu0 0.0
    %2241 = vmatprep.subr.mxu0 0.0
    %2242 = vmatpush1.msra.mxu0 0.0
    %2243 = vmatprep.subr.mxu0 0.0
    %2244 = vmatpush1.msra.mxu0 0.0
    %2245 = vmatprep.subr.mxu0 0.0
    %2246 = vmatpush1.msra.mxu0 0.0
    %2247 = vmatprep.subr.mxu0 0.0
    %2248 = vmatpush1.msra.mxu0 0.0
    %2249 = vmatprep.subr.mxu0 0.0
    %2250 = vmatpush1.msra.mxu0 0.0
    %2251 = vmatprep.subr.mxu0 0.0
    %2252 = vmatpush1.msra.mxu0 0.0
    %2253 = vmatprep.subr.mxu0 0.0
    %2254 = vmatpush1.msra.mxu0 0.0
    %2255 = vmatprep.subr.mxu0 0.0
    %2256 = vmatpush1.msra.mxu0 0.0
    %2257 = vmatprep.subr.mxu0 0.0
    %2258 = vmatpush1.msra.mxu0 0.0
    %2259 = vmatprep.subr.mxu0 0.0
    %2260 = vmatpush1.msra.mxu0 0.0
    %2261 = vmatprep.subr.mxu0 0.0
    %2262 = vmatpush1.msra.mxu0 0.0
    %2263 = vmatprep.subr.mxu0 0.0
    %2264 = vmatpush1.msra.mxu0 0.0
    %2265 = vmatprep.subr.mxu0 0.0
    %2266 = vmatpush1.msra.mxu0 0.0
    %2267 = vmatprep.subr.mxu0 0.0
    %2268 = vmatpush1.msra.mxu0 0.0
    %2269 = vmatprep.subr.mxu0 0.0
    %2270 = vmatpush1.msra.mxu0 0.0
    %2271 = vmatprep.subr.mxu0 0.0
    %2272 = vmatpush1.msra.mxu0 0.0
    %2273 = vmatprep.subr.mxu0 0.0
    %2274 = vmatpush1.msra.mxu0 0.0
    %2275 = vmatprep.subr.mxu0 0.0
    %2276 = vmatpush1.msra.mxu0 0.0
    %2277 = vmatprep.mubr.f32.mxu0 0.0
    %2278 = vmatmul.mubr.f32.gmra.mrb[0].mxu0 %v2211
    %v2279 = vpop.f32.mrb[0].mxu0
    %v2280 = vadd.f32 %v495, %v2279
    %v2281 = vpop.f32.mrb[0].mxu0
    %2282 = vdwg.mxu0
    %2283 = vmatprep.subr.mxu0 0.0
    %2284 = vmatpush1.msra.mxu0 %v249
    %2285 = vmatprep.subr.mxu0 0.0
    %2286 = vmatpush1.msra.mxu0 %v250
    %2287 = vmatprep.subr.mxu0 0.0
    %2288 = vmatpush1.msra.mxu0 0.0
    %2289 = vmatprep.subr.mxu0 0.0
    %2290 = vmatpush1.msra.mxu0 0.0
    %2291 = vmatprep.subr.mxu0 0.0
    %2292 = vmatpush1.msra.mxu0 0.0
    %2293 = vmatprep.subr.mxu0 0.0
    %2294 = vmatpush1.msra.mxu0 0.0
    %2295 = vmatprep.subr.mxu0 0.0
    %2296 = vmatpush1.msra.mxu0 0.0
    %2297 = vmatprep.subr.mxu0 0.0
    %2298 = vmatpush1.msra.mxu0 0.0
    %2299 = vmatprep.subr.mxu0 0.0
    %2300 = vmatpush1.msra.mxu0 0.0
    %2301 = vmatprep.subr.mxu0 0.0
    %2302 = vmatpush1.msra.mxu0 0.0
    %2303 = vmatprep.subr.mxu0 0.0
    %2304 = vmatpush1.msra.mxu0 0.0
    %2305 = vmatprep.subr.mxu0 0.0
    %2306 = vmatpush1.msra.mxu0 0.0
    %2307 = vmatprep.subr.mxu0 0.0
    %2308 = vmatpush1.msra.mxu0 0.0
    %2309 = vmatprep.subr.mxu0 0.0
    %2310 = vmatpush1.msra.mxu0 0.0
    %2311 = vmatprep.subr.mxu0 0.0
    %2312 = vmatpush1.msra.mxu0 0.0
    %2313 = vmatprep.subr.mxu0 0.0
    %2314 = vmatpush1.msra.mxu0 0.0
    %2315 = vmatprep.subr.mxu0 0.0
    %2316 = vmatpush1.msra.mxu0 0.0
    %2317 = vmatprep.subr.mxu0 0.0
    %2318 = vmatpush1.msra.mxu0 0.0
    %2319 = vmatprep.subr.mxu0 0.0
    %2320 = vmatpush1.msra.mxu0 0.0
    %2321 = vmatprep.subr.mxu0 0.0
    %2322 = vmatpush1.msra.mxu0 0.0
    %2323 = vmatprep.subr.mxu0 0.0
    %2324 = vmatpush1.msra.mxu0 0.0
    %2325 = vmatprep.subr.mxu0 0.0
    %2326 = vmatpush1.msra.mxu0 0.0
    %2327 = vmatprep.subr.mxu0 0.0
    %2328 = vmatpush1.msra.mxu0 0.0
    %2329 = vmatprep.subr.mxu0 0.0
    %2330 = vmatpush1.msra.mxu0 0.0
    %2331 = vmatprep.subr.mxu0 0.0
    %2332 = vmatpush1.msra.mxu0 0.0
    %2333 = vmatprep.subr.mxu0 0.0
    %2334 = vmatpush1.msra.mxu0 0.0
    %2335 = vmatprep.subr.mxu0 0.0
    %2336 = vmatpush1.msra.mxu0 0.0
    %2337 = vmatprep.subr.mxu0 0.0
    %2338 = vmatpush1.msra.mxu0 0.0
    %2339 = vmatprep.subr.mxu0 0.0
    %2340 = vmatpush1.msra.mxu0 0.0
    %2341 = vmatprep.subr.mxu0 0.0
    %2342 = vmatpush1.msra.mxu0 0.0
    %2343 = vmatprep.subr.mxu0 0.0
    %2344 = vmatpush1.msra.mxu0 0.0
    %2345 = vmatprep.subr.mxu0 0.0
    %2346 = vmatpush1.msra.mxu0 0.0
    %2347 = vmatprep.mubr.f32.mxu0 0.0
    %2348 = vmatmul.mubr.f32.gmra.mrb[0].mxu0 %v2040
    %v2349 = vpop.f32.mrb[0].mxu0
    %v2350 = vadd.f32 0.0, %v2349
    %v2351 = vpop.f32.mrb[0].mxu0
    %2352 = vdwg.mxu0
    %v2353 = vadd.f32 %v2280, %v2350
    %v2354 = vxor.u32 %v2353, 2147483648
    %v2355 = vmul.f32 %v2354, 1.442695
    %v2356 = vpow.pop %v2355
    %v2357 = vadd.f32 %v2356, 1.0
    %v2358 = vrcp.pop %v2357
    %v2359 = vmul.f32 1.0, %v2358
    %v2360 = vmul.f32 %v2359, %v2030
    %v2361 = vtanh.pop %v2353
    %2363 = vrot.lane.b32.xlu0 %v2361, 80
    %v2364 = vpop.permute.xlu0 %2363
    %v2366 = vmul.f32 %v2359, %v2364
    %2368 = vrot.lane.b32.xlu0 %v2366, 16
    %v2369 = vpop.permute.xlu0 %2368
    %v2371 = vadd.f32 %v2360, %v2369
    %v2372 = vtanh.pop %v2371
    %2374 = vrot.lane.b32.xlu0 %v2372, 16
    %v2375 = vpop.permute.xlu0 %2374
    %v2377 = vmul.f32 %v2359, %v2375
    %2379 = vrot.lane.b32.xlu0 %v2377, 96
    %v2380 = vpop.permute.xlu0 %2379
    %v2381 = vsel %vm392, %v2380, 0
    %2383 = vmatprep.subr.mxu0 0.0
    %2384 = vmatpush1.msra.mxu0 %v253
    %2385 = vmatprep.subr.mxu0 0.0
    %2386 = vmatpush1.msra.mxu0 %v254
    %2387 = vmatprep.subr.mxu0 0.0
    %2388 = vmatpush1.msra.mxu0 0.0
    %2389 = vmatprep.subr.mxu0 0.0
    %2390 = vmatpush1.msra.mxu0 0.0
    %2391 = vmatprep.subr.mxu0 0.0
    %2392 = vmatpush1.msra.mxu0 0.0
    %2393 = vmatprep.subr.mxu0 0.0
    %2394 = vmatpush1.msra.mxu0 0.0
    %2395 = vmatprep.subr.mxu0 0.0
    %2396 = vmatpush1.msra.mxu0 0.0
    %2397 = vmatprep.subr.mxu0 0.0
    %2398 = vmatpush1.msra.mxu0 0.0
    %2399 = vmatprep.subr.mxu0 0.0
    %2400 = vmatpush1.msra.mxu0 0.0
    %2401 = vmatprep.subr.mxu0 0.0
    %2402 = vmatpush1.msra.mxu0 0.0
    %2403 = vmatprep.subr.mxu0 0.0
    %2404 = vmatpush1.msra.mxu0 0.0
    %2405 = vmatprep.subr.mxu0 0.0
    %2406 = vmatpush1.msra.mxu0 0.0
    %2407 = vmatprep.subr.mxu0 0.0
    %2408 = vmatpush1.msra.mxu0 0.0
    %2409 = vmatprep.subr.mxu0 0.0
    %2410 = vmatpush1.msra.mxu0 0.0
    %2411 = vmatprep.subr.mxu0 0.0
    %2412 = vmatpush1.msra.mxu0 0.0
    %2413 = vmatprep.subr.mxu0 0.0
    %2414 = vmatpush1.msra.mxu0 0.0
    %2415 = vmatprep.subr.mxu0 0.0
    %2416 = vmatpush1.msra.mxu0 0.0
    %2417 = vmatprep.subr.mxu0 0.0
    %2418 = vmatpush1.msra.mxu0 0.0
    %2419 = vmatprep.subr.mxu0 0.0
    %2420 = vmatpush1.msra.mxu0 0.0
    %2421 = vmatprep.subr.mxu0 0.0
    %2422 = vmatpush1.msra.mxu0 0.0
    %2423 = vmatprep.subr.mxu0 0.0
    %2424 = vmatpush1.msra.mxu0 0.0
    %2425 = vmatprep.subr.mxu0 0.0
    %2426 = vmatpush1.msra.mxu0 0.0
    %2427 = vmatprep.subr.mxu0 0.0
    %2428 = vmatpush1.msra.mxu0 0.0
    %2429 = vmatprep.subr.mxu0 0.0
    %2430 = vmatpush1.msra.mxu0 0.0
    %2431 = vmatprep.subr.mxu0 0.0
    %2432 = vmatpush1.msra.mxu0 0.0
    %2433 = vmatprep.subr.mxu0 0.0
    %2434 = vmatpush1.msra.mxu0 0.0
    %2435 = vmatprep.subr.mxu0 0.0
    %2436 = vmatpush1.msra.mxu0 0.0
    %2437 = vmatprep.subr.mxu0 0.0
    %2438 = vmatpush1.msra.mxu0 0.0
    %2439 = vmatprep.subr.mxu0 0.0
    %2440 = vmatpush1.msra.mxu0 0.0
    %2441 = vmatprep.subr.mxu0 0.0
    %2442 = vmatpush1.msra.mxu0 0.0
    %2443 = vmatprep.subr.mxu0 0.0
    %2444 = vmatpush1.msra.mxu0 0.0
    %2445 = vmatprep.subr.mxu0 0.0
    %2446 = vmatpush1.msra.mxu0 0.0
    %2447 = vmatprep.mubr.f32.mxu0 0.0
    %2448 = vmatmul.mubr.f32.gmra.mrb[0].mxu0 %v2381
    %v2449 = vpop.f32.mrb[0].mxu0
    %v2450 = vadd.f32 %v671, %v2449
    %v2451 = vpop.f32.mrb[0].mxu0
    %2452 = vdwg.mxu0
    %2453 = vst [vmem:[#allocation8 + $0x28] sm:$0xff] %v2450
    %2454 = vmatprep.subr.mxu0 0.0
    %2455 = vmatpush1.msra.mxu0 %v247
    %2456 = vmatprep.subr.mxu0 0.0
    %2457 = vmatpush1.msra.mxu0 %v248
    %2458 = vmatprep.subr.mxu0 0.0
    %2459 = vmatpush1.msra.mxu0 0.0
    %2460 = vmatprep.subr.mxu0 0.0
    %2461 = vmatpush1.msra.mxu0 0.0
    %2462 = vmatprep.subr.mxu0 0.0
    %2463 = vmatpush1.msra.mxu0 0.0
    %2464 = vmatprep.subr.mxu0 0.0
    %2465 = vmatpush1.msra.mxu0 0.0
    %2466 = vmatprep.subr.mxu0 0.0
    %2467 = vmatpush1.msra.mxu0 0.0
    %2468 = vmatprep.subr.mxu0 0.0
    %2469 = vmatpush1.msra.mxu0 0.0
    %2470 = vmatprep.subr.mxu0 0.0
    %2471 = vmatpush1.msra.mxu0 0.0
    %2472 = vmatprep.subr.mxu0 0.0
    %2473 = vmatpush1.msra.mxu0 0.0
    %2474 = vmatprep.subr.mxu0 0.0
    %2475 = vmatpush1.msra.mxu0 0.0
    %2476 = vmatprep.subr.mxu0 0.0
    %2477 = vmatpush1.msra.mxu0 0.0
    %2478 = vmatprep.subr.mxu0 0.0
    %2479 = vmatpush1.msra.mxu0 0.0
    %2480 = vmatprep.subr.mxu0 0.0
    %2481 = vmatpush1.msra.mxu0 0.0
    %2482 = vmatprep.subr.mxu0 0.0
    %2483 = vmatpush1.msra.mxu0 0.0
    %2484 = vmatprep.subr.mxu0 0.0
    %2485 = vmatpush1.msra.mxu0 0.0
    %2486 = vmatprep.subr.mxu0 0.0
    %2487 = vmatpush1.msra.mxu0 0.0
    %2488 = vmatprep.subr.mxu0 0.0
    %2489 = vmatpush1.msra.mxu0 0.0
    %2490 = vmatprep.subr.mxu0 0.0
    %2491 = vmatpush1.msra.mxu0 0.0
    %2492 = vmatprep.subr.mxu0 0.0
    %2493 = vmatpush1.msra.mxu0 0.0
    %2494 = vmatprep.subr.mxu0 0.0
    %2495 = vmatpush1.msra.mxu0 0.0
    %2496 = vmatprep.subr.mxu0 0.0
    %2497 = vmatpush1.msra.mxu0 0.0
    %2498 = vmatprep.subr.mxu0 0.0
    %2499 = vmatpush1.msra.mxu0 0.0
    %2500 = vmatprep.subr.mxu0 0.0
    %2501 = vmatpush1.msra.mxu0 0.0
    %2502 = vmatprep.subr.mxu0 0.0
    %2503 = vmatpush1.msra.mxu0 0.0
    %2504 = vmatprep.subr.mxu0 0.0
    %2505 = vmatpush1.msra.mxu0 0.0
    %2506 = vmatprep.subr.mxu0 0.0
    %2507 = vmatpush1.msra.mxu0 0.0
    %2508 = vmatprep.subr.mxu0 0.0
    %2509 = vmatpush1.msra.mxu0 0.0
    %2510 = vmatprep.subr.mxu0 0.0
    %2511 = vmatpush1.msra.mxu0 0.0
    %2512 = vmatprep.subr.mxu0 0.0
    %2513 = vmatpush1.msra.mxu0 0.0
    %2514 = vmatprep.subr.mxu0 0.0
    %2515 = vmatpush1.msra.mxu0 0.0
    %2516 = vmatprep.subr.mxu0 0.0
    %2517 = vmatpush1.msra.mxu0 0.0
    %2518 = vmatprep.mubr.f32.mxu0 0.0
    %2519 = vmatmul.mubr.f32.gmra.mrb[0].mxu0 %v2211
    %v2520 = vpop.f32.mrb[0].mxu0
    %v2521 = vadd.f32 0.0, %v2520
    %v2522 = vpop.f32.mrb[0].mxu0
    %2523 = vdwg.mxu0
    %v2524 = vadd.f32 %v384, %v2521
    %v2525 = vxor.u32 %v2524, 2147483648
    %v2526 = vmul.f32 %v2525, 1.442695
    %v2527 = vpow.pop %v2526
    %v2528 = vadd.f32 %v2527, 1.0
    %v2529 = vrcp.pop %v2528
    %v2530 = vmul.f32 1.0, %v2529
    %v2531 = vmul.f32 %v2530, %v2201
    %v2532 = vtanh.pop %v2524
    %2534 = vrot.lane.b32.xlu0 %v2532, 80
    %v2535 = vpop.permute.xlu0 %2534
    %v2537 = vmul.f32 %v2530, %v2535
    %2539 = vrot.lane.b32.xlu0 %v2537, 16
    %v2540 = vpop.permute.xlu0 %2539
    %v2542 = vadd.f32 %v2531, %v2540
    %v2543 = vtanh.pop %v2542
    %2545 = vrot.lane.b32.xlu0 %v2543, 16
    %v2546 = vpop.permute.xlu0 %2545
    %v2548 = vmul.f32 %v2530, %v2546
    %2550 = vrot.lane.b32.xlu0 %v2548, 96
    %v2551 = vpop.permute.xlu0 %2550
    %v2552 = vsel %vm392, %v2551, 0
    %2554 = vmatprep.subr.mxu0 0.0
    %2555 = vmatpush1.msra.mxu0 %v245
    %2556 = vmatprep.subr.mxu0 0.0
    %2557 = vmatpush1.msra.mxu0 %v246
    %2558 = vmatprep.subr.mxu0 0.0
    %2559 = vmatpush1.msra.mxu0 0.0
    %2560 = vmatprep.subr.mxu0 0.0
    %2561 = vmatpush1.msra.mxu0 0.0
    %2562 = vmatprep.subr.mxu0 0.0
    %2563 = vmatpush1.msra.mxu0 0.0
    %2564 = vmatprep.subr.mxu0 0.0
    %2565 = vmatpush1.msra.mxu0 0.0
    %2566 = vmatprep.subr.mxu0 0.0
    %2567 = vmatpush1.msra.mxu0 0.0
    %2568 = vmatprep.subr.mxu0 0.0
    %2569 = vmatpush1.msra.mxu0 0.0
    %2570 = vmatprep.subr.mxu0 0.0
    %2571 = vmatpush1.msra.mxu0 0.0
    %2572 = vmatprep.subr.mxu0 0.0
    %2573 = vmatpush1.msra.mxu0 0.0
    %2574 = vmatprep.subr.mxu0 0.0
    %2575 = vmatpush1.msra.mxu0 0.0
    %2576 = vmatprep.subr.mxu0 0.0
    %2577 = vmatpush1.msra.mxu0 0.0
    %2578 = vmatprep.subr.mxu0 0.0
    %2579 = vmatpush1.msra.mxu0 0.0
    %2580 = vmatprep.subr.mxu0 0.0
    %2581 = vmatpush1.msra.mxu0 0.0
    %2582 = vmatprep.subr.mxu0 0.0
    %2583 = vmatpush1.msra.mxu0 0.0
    %2584 = vmatprep.subr.mxu0 0.0
    %2585 = vmatpush1.msra.mxu0 0.0
    %2586 = vmatprep.subr.mxu0 0.0
    %2587 = vmatpush1.msra.mxu0 0.0
    %2588 = vmatprep.subr.mxu0 0.0
    %2589 = vmatpush1.msra.mxu0 0.0
    %2590 = vmatprep.subr.mxu0 0.0
    %2591 = vmatpush1.msra.mxu0 0.0
    %2592 = vmatprep.subr.mxu0 0.0
    %2593 = vmatpush1.msra.mxu0 0.0
    %2594 = vmatprep.subr.mxu0 0.0
    %2595 = vmatpush1.msra.mxu0 0.0
    %2596 = vmatprep.subr.mxu0 0.0
    %2597 = vmatpush1.msra.mxu0 0.0
    %2598 = vmatprep.subr.mxu0 0.0
    %2599 = vmatpush1.msra.mxu0 0.0
    %2600 = vmatprep.subr.mxu0 0.0
    %2601 = vmatpush1.msra.mxu0 0.0
    %2602 = vmatprep.subr.mxu0 0.0
    %2603 = vmatpush1.msra.mxu0 0.0
    %2604 = vmatprep.subr.mxu0 0.0
    %2605 = vmatpush1.msra.mxu0 0.0
    %2606 = vmatprep.subr.mxu0 0.0
    %2607 = vmatpush1.msra.mxu0 0.0
    %2608 = vmatprep.subr.mxu0 0.0
    %2609 = vmatpush1.msra.mxu0 0.0
    %2610 = vmatprep.subr.mxu0 0.0
    %2611 = vmatpush1.msra.mxu0 0.0
    %2612 = vmatprep.subr.mxu0 0.0
    %2613 = vmatpush1.msra.mxu0 0.0
    %2614 = vmatprep.subr.mxu0 0.0
    %2615 = vmatpush1.msra.mxu0 0.0
    %2616 = vmatprep.subr.mxu0 0.0
    %2617 = vmatpush1.msra.mxu0 0.0
    %2618 = vmatprep.mubr.f32.mxu0 0.0
    %2619 = vmatmul.mubr.f32.gmra.mrb[0].mxu0 %v2552
    %v2620 = vpop.f32.mrb[0].mxu0
    %v2621 = vadd.f32 %v495, %v2620
    %v2622 = vpop.f32.mrb[0].mxu0
    %2623 = vdwg.mxu0
    %2624 = vmatprep.subr.mxu0 0.0
    %2625 = vmatpush1.msra.mxu0 %v249
    %2626 = vmatprep.subr.mxu0 0.0
    %2627 = vmatpush1.msra.mxu0 %v250
    %2628 = vmatprep.subr.mxu0 0.0
    %2629 = vmatpush1.msra.mxu0 0.0
    %2630 = vmatprep.subr.mxu0 0.0
    %2631 = vmatpush1.msra.mxu0 0.0
    %2632 = vmatprep.subr.mxu0 0.0
    %2633 = vmatpush1.msra.mxu0 0.0
    %2634 = vmatprep.subr.mxu0 0.0
    %2635 = vmatpush1.msra.mxu0 0.0
    %2636 = vmatprep.subr.mxu0 0.0
    %2637 = vmatpush1.msra.mxu0 0.0
    %2638 = vmatprep.subr.mxu0 0.0
    %2639 = vmatpush1.msra.mxu0 0.0
    %2640 = vmatprep.subr.mxu0 0.0
    %2641 = vmatpush1.msra.mxu0 0.0
    %2642 = vmatprep.subr.mxu0 0.0
    %2643 = vmatpush1.msra.mxu0 0.0
    %2644 = vmatprep.subr.mxu0 0.0
    %2645 = vmatpush1.msra.mxu0 0.0
    %2646 = vmatprep.subr.mxu0 0.0
    %2647 = vmatpush1.msra.mxu0 0.0
    %2648 = vmatprep.subr.mxu0 0.0
    %2649 = vmatpush1.msra.mxu0 0.0
    %2650 = vmatprep.subr.mxu0 0.0
    %2651 = vmatpush1.msra.mxu0 0.0
    %2652 = vmatprep.subr.mxu0 0.0
    %2653 = vmatpush1.msra.mxu0 0.0
    %2654 = vmatprep.subr.mxu0 0.0
    %2655 = vmatpush1.msra.mxu0 0.0
    %2656 = vmatprep.subr.mxu0 0.0
    %2657 = vmatpush1.msra.mxu0 0.0
    %2658 = vmatprep.subr.mxu0 0.0
    %2659 = vmatpush1.msra.mxu0 0.0
    %2660 = vmatprep.subr.mxu0 0.0
    %2661 = vmatpush1.msra.mxu0 0.0
    %2662 = vmatprep.subr.mxu0 0.0
    %2663 = vmatpush1.msra.mxu0 0.0
    %2664 = vmatprep.subr.mxu0 0.0
    %2665 = vmatpush1.msra.mxu0 0.0
    %2666 = vmatprep.subr.mxu0 0.0
    %2667 = vmatpush1.msra.mxu0 0.0
    %2668 = vmatprep.subr.mxu0 0.0
    %2669 = vmatpush1.msra.mxu0 0.0
    %2670 = vmatprep.subr.mxu0 0.0
    %2671 = vmatpush1.msra.mxu0 0.0
    %2672 = vmatprep.subr.mxu0 0.0
    %2673 = vmatpush1.msra.mxu0 0.0
    %2674 = vmatprep.subr.mxu0 0.0
    %2675 = vmatpush1.msra.mxu0 0.0
    %2676 = vmatprep.subr.mxu0 0.0
    %2677 = vmatpush1.msra.mxu0 0.0
    %2678 = vmatprep.subr.mxu0 0.0
    %2679 = vmatpush1.msra.mxu0 0.0
    %2680 = vmatprep.subr.mxu0 0.0
    %2681 = vmatpush1.msra.mxu0 0.0
    %2682 = vmatprep.subr.mxu0 0.0
    %2683 = vmatpush1.msra.mxu0 0.0
    %2684 = vmatprep.subr.mxu0 0.0
    %2685 = vmatpush1.msra.mxu0 0.0
    %2686 = vmatprep.subr.mxu0 0.0
    %2687 = vmatpush1.msra.mxu0 0.0
    %2688 = vmatprep.mubr.f32.mxu0 0.0
    %2689 = vmatmul.mubr.f32.gmra.mrb[0].mxu0 %v2381
    %v2690 = vpop.f32.mrb[0].mxu0
    %v2691 = vadd.f32 0.0, %v2690
    %v2692 = vpop.f32.mrb[0].mxu0
    %2693 = vdwg.mxu0
    %v2694 = vadd.f32 %v2621, %v2691
    %v2695 = vxor.u32 %v2694, 2147483648
    %v2696 = vmul.f32 %v2695, 1.442695
    %v2697 = vpow.pop %v2696
    %v2698 = vadd.f32 %v2697, 1.0
    %v2699 = vrcp.pop %v2698
    %v2700 = vmul.f32 1.0, %v2699
    %v2701 = vmul.f32 %v2700, %v2371
    %v2702 = vtanh.pop %v2694
    %2704 = vrot.lane.b32.xlu0 %v2702, 80
    %v2705 = vpop.permute.xlu0 %2704
    %v2707 = vmul.f32 %v2700, %v2705
    %2709 = vrot.lane.b32.xlu0 %v2707, 16
    %v2710 = vpop.permute.xlu0 %2709
    %v2712 = vadd.f32 %v2701, %v2710
    %v2713 = vtanh.pop %v2712
    %2715 = vrot.lane.b32.xlu0 %v2713, 16
    %v2716 = vpop.permute.xlu0 %2715
    %v2718 = vmul.f32 %v2700, %v2716
    %2720 = vrot.lane.b32.xlu0 %v2718, 96
    %v2721 = vpop.permute.xlu0 %2720
    %v2722 = vsel %vm392, %v2721, 0
    %2724 = vmatprep.subr.mxu0 0.0
    %2725 = vmatpush1.msra.mxu0 %v253
    %2726 = vmatprep.subr.mxu0 0.0
    %2727 = vmatpush1.msra.mxu0 %v254
    %2728 = vmatprep.subr.mxu0 0.0
    %2729 = vmatpush1.msra.mxu0 0.0
    %2730 = vmatprep.subr.mxu0 0.0
    %2731 = vmatpush1.msra.mxu0 0.0
    %2732 = vmatprep.subr.mxu0 0.0
    %2733 = vmatpush1.msra.mxu0 0.0
    %2734 = vmatprep.subr.mxu0 0.0
    %2735 = vmatpush1.msra.mxu0 0.0
    %2736 = vmatprep.subr.mxu0 0.0
    %2737 = vmatpush1.msra.mxu0 0.0
    %2738 = vmatprep.subr.mxu0 0.0
    %2739 = vmatpush1.msra.mxu0 0.0
    %2740 = vmatprep.subr.mxu0 0.0
    %2741 = vmatpush1.msra.mxu0 0.0
    %2742 = vmatprep.subr.mxu0 0.0
    %2743 = vmatpush1.msra.mxu0 0.0
    %2744 = vmatprep.subr.mxu0 0.0
    %2745 = vmatpush1.msra.mxu0 0.0
    %2746 = vmatprep.subr.mxu0 0.0
    %2747 = vmatpush1.msra.mxu0 0.0
    %2748 = vmatprep.subr.mxu0 0.0
    %2749 = vmatpush1.msra.mxu0 0.0
    %2750 = vmatprep.subr.mxu0 0.0
    %2751 = vmatpush1.msra.mxu0 0.0
    %2752 = vmatprep.subr.mxu0 0.0
    %2753 = vmatpush1.msra.mxu0 0.0
    %2754 = vmatprep.subr.mxu0 0.0
    %2755 = vmatpush1.msra.mxu0 0.0
    %2756 = vmatprep.subr.mxu0 0.0
    %2757 = vmatpush1.msra.mxu0 0.0
    %2758 = vmatprep.subr.mxu0 0.0
    %2759 = vmatpush1.msra.mxu0 0.0
    %2760 = vmatprep.subr.mxu0 0.0
    %2761 = vmatpush1.msra.mxu0 0.0
    %2762 = vmatprep.subr.mxu0 0.0
    %2763 = vmatpush1.msra.mxu0 0.0
    %2764 = vmatprep.subr.mxu0 0.0
    %2765 = vmatpush1.msra.mxu0 0.0
    %2766 = vmatprep.subr.mxu0 0.0
    %2767 = vmatpush1.msra.mxu0 0.0
    %2768 = vmatprep.subr.mxu0 0.0
    %2769 = vmatpush1.msra.mxu0 0.0
    %2770 = vmatprep.subr.mxu0 0.0
    %2771 = vmatpush1.msra.mxu0 0.0
    %2772 = vmatprep.subr.mxu0 0.0
    %2773 = vmatpush1.msra.mxu0 0.0
    %2774 = vmatprep.subr.mxu0 0.0
    %2775 = vmatpush1.msra.mxu0 0.0
    %2776 = vmatprep.subr.mxu0 0.0
    %2777 = vmatpush1.msra.mxu0 0.0
    %2778 = vmatprep.subr.mxu0 0.0
    %2779 = vmatpush1.msra.mxu0 0.0
    %2780 = vmatprep.subr.mxu0 0.0
    %2781 = vmatpush1.msra.mxu0 0.0
    %2782 = vmatprep.subr.mxu0 0.0
    %2783 = vmatpush1.msra.mxu0 0.0
    %2784 = vmatprep.subr.mxu0 0.0
    %2785 = vmatpush1.msra.mxu0 0.0
    %2786 = vmatprep.subr.mxu0 0.0
    %2787 = vmatpush1.msra.mxu0 0.0
    %2788 = vmatprep.mubr.f32.mxu0 0.0
    %2789 = vmatmul.mubr.f32.gmra.mrb[0].mxu0 %v2722
    %v2790 = vpop.f32.mrb[0].mxu0
    %v2791 = vadd.f32 %v671, %v2790
    %v2792 = vpop.f32.mrb[0].mxu0
    %2793 = vdwg.mxu0
    %2794 = vst [vmem:[#allocation8 + $0x30] sm:$0xff] %v2791
    %2795 = vmatprep.subr.mxu0 0.0
    %2796 = vmatpush1.msra.mxu0 %v247
    %2797 = vmatprep.subr.mxu0 0.0
    %2798 = vmatpush1.msra.mxu0 %v248
    %2799 = vmatprep.subr.mxu0 0.0
    %2800 = vmatpush1.msra.mxu0 0.0
    %2801 = vmatprep.subr.mxu0 0.0
    %2802 = vmatpush1.msra.mxu0 0.0
    %2803 = vmatprep.subr.mxu0 0.0
    %2804 = vmatpush1.msra.mxu0 0.0
    %2805 = vmatprep.subr.mxu0 0.0
    %2806 = vmatpush1.msra.mxu0 0.0
    %2807 = vmatprep.subr.mxu0 0.0
    %2808 = vmatpush1.msra.mxu0 0.0
    %2809 = vmatprep.subr.mxu0 0.0
    %2810 = vmatpush1.msra.mxu0 0.0
    %2811 = vmatprep.subr.mxu0 0.0
    %2812 = vmatpush1.msra.mxu0 0.0
    %2813 = vmatprep.subr.mxu0 0.0
    %2814 = vmatpush1.msra.mxu0 0.0
    %2815 = vmatprep.subr.mxu0 0.0
    %2816 = vmatpush1.msra.mxu0 0.0
    %2817 = vmatprep.subr.mxu0 0.0
    %2818 = vmatpush1.msra.mxu0 0.0
    %2819 = vmatprep.subr.mxu0 0.0
    %2820 = vmatpush1.msra.mxu0 0.0
    %2821 = vmatprep.subr.mxu0 0.0
    %2822 = vmatpush1.msra.mxu0 0.0
    %2823 = vmatprep.subr.mxu0 0.0
    %2824 = vmatpush1.msra.mxu0 0.0
    %2825 = vmatprep.subr.mxu0 0.0
    %2826 = vmatpush1.msra.mxu0 0.0
    %2827 = vmatprep.subr.mxu0 0.0
    %2828 = vmatpush1.msra.mxu0 0.0
    %2829 = vmatprep.subr.mxu0 0.0
    %2830 = vmatpush1.msra.mxu0 0.0
    %2831 = vmatprep.subr.mxu0 0.0
    %2832 = vmatpush1.msra.mxu0 0.0
    %2833 = vmatprep.subr.mxu0 0.0
    %2834 = vmatpush1.msra.mxu0 0.0
    %2835 = vmatprep.subr.mxu0 0.0
    %2836 = vmatpush1.msra.mxu0 0.0
    %2837 = vmatprep.subr.mxu0 0.0
    %2838 = vmatpush1.msra.mxu0 0.0
    %2839 = vmatprep.subr.mxu0 0.0
    %2840 = vmatpush1.msra.mxu0 0.0
    %2841 = vmatprep.subr.mxu0 0.0
    %2842 = vmatpush1.msra.mxu0 0.0
    %2843 = vmatprep.subr.mxu0 0.0
    %2844 = vmatpush1.msra.mxu0 0.0
    %2845 = vmatprep.subr.mxu0 0.0
    %2846 = vmatpush1.msra.mxu0 0.0
    %2847 = vmatprep.subr.mxu0 0.0
    %2848 = vmatpush1.msra.mxu0 0.0
    %2849 = vmatprep.subr.mxu0 0.0
    %2850 = vmatpush1.msra.mxu0 0.0
    %2851 = vmatprep.subr.mxu0 0.0
    %2852 = vmatpush1.msra.mxu0 0.0
    %2853 = vmatprep.subr.mxu0 0.0
    %2854 = vmatpush1.msra.mxu0 0.0
    %2855 = vmatprep.subr.mxu0 0.0
    %2856 = vmatpush1.msra.mxu0 0.0
    %2857 = vmatprep.subr.mxu0 0.0
    %2858 = vmatpush1.msra.mxu0 0.0
    %2859 = vmatprep.mubr.f32.mxu0 0.0
    %2860 = vmatmul.mubr.f32.gmra.mrb[0].mxu0 %v2552
    %v2861 = vpop.f32.mrb[0].mxu0
    %v2862 = vadd.f32 0.0, %v2861
    %v2863 = vpop.f32.mrb[0].mxu0
    %2864 = vdwg.mxu0
    %v2865 = vadd.f32 %v389, %v2862
    %v2866 = vxor.u32 %v2865, 2147483648
    %v2867 = vmul.f32 %v2866, 1.442695
    %v2868 = vpow.pop %v2867
    %v2869 = vadd.f32 %v2868, 1.0
    %v2870 = vrcp.pop %v2869
    %v2871 = vmul.f32 1.0, %v2870
    %v2872 = vmul.f32 %v2871, %v2542
    %v2873 = vtanh.pop %v2865
    %2875 = vrot.lane.b32.xlu0 %v2873, 80
    %v2876 = vpop.permute.xlu0 %2875
    %v2878 = vmul.f32 %v2871, %v2876
    %2880 = vrot.lane.b32.xlu0 %v2878, 16
    %v2881 = vpop.permute.xlu0 %2880
    %v2883 = vadd.f32 %v2872, %v2881
    %v2884 = vtanh.pop %v2883
    %2886 = vrot.lane.b32.xlu0 %v2884, 16
    %v2887 = vpop.permute.xlu0 %2886
    %v2889 = vmul.f32 %v2871, %v2887
    %2891 = vrot.lane.b32.xlu0 %v2889, 96
    %v2892 = vpop.permute.xlu0 %2891
    %v2893 = vsel %vm392, %v2892, 0
    %2895 = vmatprep.subr.mxu0 0.0
    %2896 = vmatpush1.msra.mxu0 %v245
    %2897 = vmatprep.subr.mxu0 0.0
    %2898 = vmatpush1.msra.mxu0 %v246
    %2899 = vmatprep.subr.mxu0 0.0
    %2900 = vmatpush1.msra.mxu0 0.0
    %2901 = vmatprep.subr.mxu0 0.0
    %2902 = vmatpush1.msra.mxu0 0.0
    %2903 = vmatprep.subr.mxu0 0.0
    %2904 = vmatpush1.msra.mxu0 0.0
    %2905 = vmatprep.subr.mxu0 0.0
    %2906 = vmatpush1.msra.mxu0 0.0
    %2907 = vmatprep.subr.mxu0 0.0
    %2908 = vmatpush1.msra.mxu0 0.0
    %2909 = vmatprep.subr.mxu0 0.0
    %2910 = vmatpush1.msra.mxu0 0.0
    %2911 = vmatprep.subr.mxu0 0.0
    %2912 = vmatpush1.msra.mxu0 0.0
    %2913 = vmatprep.subr.mxu0 0.0
    %2914 = vmatpush1.msra.mxu0 0.0
    %2915 = vmatprep.subr.mxu0 0.0
    %2916 = vmatpush1.msra.mxu0 0.0
    %2917 = vmatprep.subr.mxu0 0.0
    %2918 = vmatpush1.msra.mxu0 0.0
    %2919 = vmatprep.subr.mxu0 0.0
    %2920 = vmatpush1.msra.mxu0 0.0
    %2921 = vmatprep.subr.mxu0 0.0
    %2922 = vmatpush1.msra.mxu0 0.0
    %2923 = vmatprep.subr.mxu0 0.0
    %2924 = vmatpush1.msra.mxu0 0.0
    %2925 = vmatprep.subr.mxu0 0.0
    %2926 = vmatpush1.msra.mxu0 0.0
    %2927 = vmatprep.subr.mxu0 0.0
    %2928 = vmatpush1.msra.mxu0 0.0
    %2929 = vmatprep.subr.mxu0 0.0
    %2930 = vmatpush1.msra.mxu0 0.0
    %2931 = vmatprep.subr.mxu0 0.0
    %2932 = vmatpush1.msra.mxu0 0.0
    %2933 = vmatprep.subr.mxu0 0.0
    %2934 = vmatpush1.msra.mxu0 0.0
    %2935 = vmatprep.subr.mxu0 0.0
    %2936 = vmatpush1.msra.mxu0 0.0
    %2937 = vmatprep.subr.mxu0 0.0
    %2938 = vmatpush1.msra.mxu0 0.0
    %2939 = vmatprep.subr.mxu0 0.0
    %2940 = vmatpush1.msra.mxu0 0.0
    %2941 = vmatprep.subr.mxu0 0.0
    %2942 = vmatpush1.msra.mxu0 0.0
    %2943 = vmatprep.subr.mxu0 0.0
    %2944 = vmatpush1.msra.mxu0 0.0
    %2945 = vmatprep.subr.mxu0 0.0
    %2946 = vmatpush1.msra.mxu0 0.0
    %2947 = vmatprep.subr.mxu0 0.0
    %2948 = vmatpush1.msra.mxu0 0.0
    %2949 = vmatprep.subr.mxu0 0.0
    %2950 = vmatpush1.msra.mxu0 0.0
    %2951 = vmatprep.subr.mxu0 0.0
    %2952 = vmatpush1.msra.mxu0 0.0
    %2953 = vmatprep.subr.mxu0 0.0
    %2954 = vmatpush1.msra.mxu0 0.0
    %2955 = vmatprep.subr.mxu0 0.0
    %2956 = vmatpush1.msra.mxu0 0.0
    %2957 = vmatprep.subr.mxu0 0.0
    %2958 = vmatpush1.msra.mxu0 0.0
    %2959 = vmatprep.mubr.f32.mxu0 0.0
    %2960 = vmatmul.mubr.f32.gmra.mrb[0].mxu0 %v2893
    %v2961 = vpop.f32.mrb[0].mxu0
    %v2962 = vadd.f32 %v495, %v2961
    %v2963 = vpop.f32.mrb[0].mxu0
    %2964 = vdwg.mxu0
    %2965 = vmatprep.subr.mxu0 0.0
    %2966 = vmatpush1.msra.mxu0 %v249
    %2967 = vmatprep.subr.mxu0 0.0
    %2968 = vmatpush1.msra.mxu0 %v250
    %2969 = vmatprep.subr.mxu0 0.0
    %2970 = vmatpush1.msra.mxu0 0.0
    %2971 = vmatprep.subr.mxu0 0.0
    %2972 = vmatpush1.msra.mxu0 0.0
    %2973 = vmatprep.subr.mxu0 0.0
    %2974 = vmatpush1.msra.mxu0 0.0
    %2975 = vmatprep.subr.mxu0 0.0
    %2976 = vmatpush1.msra.mxu0 0.0
    %2977 = vmatprep.subr.mxu0 0.0
    %2978 = vmatpush1.msra.mxu0 0.0
    %2979 = vmatprep.subr.mxu0 0.0
    %2980 = vmatpush1.msra.mxu0 0.0
    %2981 = vmatprep.subr.mxu0 0.0
    %2982 = vmatpush1.msra.mxu0 0.0
    %2983 = vmatprep.subr.mxu0 0.0
    %2984 = vmatpush1.msra.mxu0 0.0
    %2985 = vmatprep.subr.mxu0 0.0
    %2986 = vmatpush1.msra.mxu0 0.0
    %2987 = vmatprep.subr.mxu0 0.0
    %2988 = vmatpush1.msra.mxu0 0.0
    %2989 = vmatprep.subr.mxu0 0.0
    %2990 = vmatpush1.msra.mxu0 0.0
    %2991 = vmatprep.subr.mxu0 0.0
    %2992 = vmatpush1.msra.mxu0 0.0
    %2993 = vmatprep.subr.mxu0 0.0
    %2994 = vmatpush1.msra.mxu0 0.0
    %2995 = vmatprep.subr.mxu0 0.0
    %2996 = vmatpush1.msra.mxu0 0.0
    %2997 = vmatprep.subr.mxu0 0.0
    %2998 = vmatpush1.msra.mxu0 0.0
    %2999 = vmatprep.subr.mxu0 0.0
    %3000 = vmatpush1.msra.mxu0 0.0
    %3001 = vmatprep.subr.mxu0 0.0
    %3002 = vmatpush1.msra.mxu0 0.0
    %3003 = vmatprep.subr.mxu0 0.0
    %3004 = vmatpush1.msra.mxu0 0.0
    %3005 = vmatprep.subr.mxu0 0.0
    %3006 = vmatpush1.msra.mxu0 0.0
    %3007 = vmatprep.subr.mxu0 0.0
    %3008 = vmatpush1.msra.mxu0 0.0
    %3009 = vmatprep.subr.mxu0 0.0
    %3010 = vmatpush1.msra.mxu0 0.0
    %3011 = vmatprep.subr.mxu0 0.0
    %3012 = vmatpush1.msra.mxu0 0.0
    %3013 = vmatprep.subr.mxu0 0.0
    %3014 = vmatpush1.msra.mxu0 0.0
    %3015 = vmatprep.subr.mxu0 0.0
    %3016 = vmatpush1.msra.mxu0 0.0
    %3017 = vmatprep.subr.mxu0 0.0
    %3018 = vmatpush1.msra.mxu0 0.0
    %3019 = vmatprep.subr.mxu0 0.0
    %3020 = vmatpush1.msra.mxu0 0.0
    %3021 = vmatprep.subr.mxu0 0.0
    %3022 = vmatpush1.msra.mxu0 0.0
    %3023 = vmatprep.subr.mxu0 0.0
    %3024 = vmatpush1.msra.mxu0 0.0
    %3025 = vmatprep.subr.mxu0 0.0
    %3026 = vmatpush1.msra.mxu0 0.0
    %3027 = vmatprep.subr.mxu0 0.0
    %3028 = vmatpush1.msra.mxu0 0.0
    %3029 = vmatprep.mubr.f32.mxu0 0.0
    %3030 = vmatmul.mubr.f32.gmra.mrb[0].mxu0 %v2722
    %v3031 = vpop.f32.mrb[0].mxu0
    %v3032 = vadd.f32 0.0, %v3031
    %v3033 = vpop.f32.mrb[0].mxu0
    %3034 = vdwg.mxu0
    %v3035 = vadd.f32 %v2962, %v3032
    %v3036 = vxor.u32 %v3035, 2147483648
    %v3037 = vmul.f32 %v3036, 1.442695
    %v3038 = vpow.pop %v3037
    %v3039 = vadd.f32 %v3038, 1.0
    %v3040 = vrcp.pop %v3039
    %v3041 = vmul.f32 1.0, %v3040
    %v3042 = vmul.f32 %v3041, %v2712
    %v3043 = vtanh.pop %v3035
    %3045 = vrot.lane.b32.xlu0 %v3043, 80
    %v3046 = vpop.permute.xlu0 %3045
    %v3048 = vmul.f32 %v3041, %v3046
    %3050 = vrot.lane.b32.xlu0 %v3048, 16
    %v3051 = vpop.permute.xlu0 %3050
    %v3053 = vadd.f32 %v3042, %v3051
    %v3054 = vtanh.pop %v3053
    %3056 = vrot.lane.b32.xlu0 %v3054, 16
    %v3057 = vpop.permute.xlu0 %3056
    %v3059 = vmul.f32 %v3041, %v3057
    %3061 = vrot.lane.b32.xlu0 %v3059, 96
    %v3062 = vpop.permute.xlu0 %3061
    %v3063 = vsel %vm392, %v3062, 0
    %3065 = vmatprep.subr.mxu0 0.0
    %3066 = vmatpush1.msra.mxu0 %v253
    %3067 = vmatprep.subr.mxu0 0.0
    %3068 = vmatpush1.msra.mxu0 %v254
    %3069 = vmatprep.subr.mxu0 0.0
    %3070 = vmatpush1.msra.mxu0 0.0
    %3071 = vmatprep.subr.mxu0 0.0
    %3072 = vmatpush1.msra.mxu0 0.0
    %3073 = vmatprep.subr.mxu0 0.0
    %3074 = vmatpush1.msra.mxu0 0.0
    %3075 = vmatprep.subr.mxu0 0.0
    %3076 = vmatpush1.msra.mxu0 0.0
    %3077 = vmatprep.subr.mxu0 0.0
    %3078 = vmatpush1.msra.mxu0 0.0
    %3079 = vmatprep.subr.mxu0 0.0
    %3080 = vmatpush1.msra.mxu0 0.0
    %3081 = vmatprep.subr.mxu0 0.0
    %3082 = vmatpush1.msra.mxu0 0.0
    %3083 = vmatprep.subr.mxu0 0.0
    %3084 = vmatpush1.msra.mxu0 0.0
    %3085 = vmatprep.subr.mxu0 0.0
    %3086 = vmatpush1.msra.mxu0 0.0
    %3087 = vmatprep.subr.mxu0 0.0
    %3088 = vmatpush1.msra.mxu0 0.0
    %3089 = vmatprep.subr.mxu0 0.0
    %3090 = vmatpush1.msra.mxu0 0.0
    %3091 = vmatprep.subr.mxu0 0.0
    %3092 = vmatpush1.msra.mxu0 0.0
    %3093 = vmatprep.subr.mxu0 0.0
    %3094 = vmatpush1.msra.mxu0 0.0
    %3095 = vmatprep.subr.mxu0 0.0
    %3096 = vmatpush1.msra.mxu0 0.0
    %3097 = vmatprep.subr.mxu0 0.0
    %3098 = vmatpush1.msra.mxu0 0.0
    %3099 = vmatprep.subr.mxu0 0.0
    %3100 = vmatpush1.msra.mxu0 0.0
    %3101 = vmatprep.subr.mxu0 0.0
    %3102 = vmatpush1.msra.mxu0 0.0
    %3103 = vmatprep.subr.mxu0 0.0
    %3104 = vmatpush1.msra.mxu0 0.0
    %3105 = vmatprep.subr.mxu0 0.0
    %3106 = vmatpush1.msra.mxu0 0.0
    %3107 = vmatprep.subr.mxu0 0.0
    %3108 = vmatpush1.msra.mxu0 0.0
    %3109 = vmatprep.subr.mxu0 0.0
    %3110 = vmatpush1.msra.mxu0 0.0
    %3111 = vmatprep.subr.mxu0 0.0
    %3112 = vmatpush1.msra.mxu0 0.0
    %3113 = vmatprep.subr.mxu0 0.0
    %3114 = vmatpush1.msra.mxu0 0.0
    %3115 = vmatprep.subr.mxu0 0.0
    %3116 = vmatpush1.msra.mxu0 0.0
    %3117 = vmatprep.subr.mxu0 0.0
    %3118 = vmatpush1.msra.mxu0 0.0
    %3119 = vmatprep.subr.mxu0 0.0
    %3120 = vmatpush1.msra.mxu0 0.0
    %3121 = vmatprep.subr.mxu0 0.0
    %3122 = vmatpush1.msra.mxu0 0.0
    %3123 = vmatprep.subr.mxu0 0.0
    %3124 = vmatpush1.msra.mxu0 0.0
    %3125 = vmatprep.subr.mxu0 0.0
    %3126 = vmatpush1.msra.mxu0 0.0
    %3127 = vmatprep.subr.mxu0 0.0
    %3128 = vmatpush1.msra.mxu0 0.0
    %3129 = vmatprep.mubr.f32.mxu0 0.0
    %3130 = vmatmul.mubr.f32.gmra.mrb[0].mxu0 %v3063
    %v3131 = vpop.f32.mrb[0].mxu0
    %v3132 = vadd.f32 %v671, %v3131
    %v3133 = vpop.f32.mrb[0].mxu0
    %3134 = vdwg.mxu0
    %3135 = vst [vmem:[#allocation8 + $0x38] sm:$0xff] %v3132
    // Predicated region
    $region58: #{tpu_custom_call.1} parent=1 // pred_check
      _
    $region59: #{tpu_custom_call.1} parent=1 // pred_check_branch
      %3137 = sbr.rel (0) target = $region61
    $region60: #{tpu_custom_call.1} parent=1 // pred_region
      %s3139 = ssub.s32 1024, 1024
      %3140 = vsyncadd [#allocation4], %s3139
      %s3141 = sshll.u32 [#allocation8], 4
      %s3142 = int_to_ptr.vmem [resolvable:$true] %s3141
      %3147 = dma.vmem_to_hbm [thread:$0]  %s3142, 1024, %s11, [#allocation4], 128, 128, 8
    $region61: #{tpu_custom_call.1} parent=1 // pred_fallthru
      _
    // Predicated region
    $region62: #{tpu_custom_call.1} parent=1 // pred_check
      _
    $region63: #{tpu_custom_call.1} parent=1 // pred_check_branch
      %3149 = sbr.rel (0) target = $region65
    $region64: #{tpu_custom_call.1} parent=1 // pred_region
      %3150 = dma.done [#allocation4], 1024
    $region65: #{tpu_custom_call.1} parent=1 // pred_fallthru
      _
    %3151 = vsyncpa [#allocation3], 1
    %3152 = vsyncpa [#allocation6], 1
    %3153 = vsyncpa [#allocation4], 1

</llo_original>
